<compile_context>
chip_gen: v5e
topology: v5e:2x2
jax: 0.10.0
libtpu: 0.0.40
codegen_flags: <defaults>
</compile_context>

<pallas_src>
import functools
import math

import jax
import jax.numpy as jnp
from jax.experimental import pallas as pl
from jax.experimental.pallas import tpu as pltpu

PAD = 128  # lane width; every feature dim is zero-padded to this

# row indices inside the packed (NUM_ROWS, PAD) per-layer row buffer
R_LNQ_G, R_LNQ_B, R_LNKV_G, R_LNKV_B, R_LNP_G, R_LNP_B = 0, 1, 2, 3, 4, 5
R_BQ, R_BK, R_BV, R_BO, R_B1, R_B2 = 6, 7, 8, 9, 10, 11
NUM_ROWS = 16  # padded to a sublane multiple

# weight indices inside the packed per-layer (NUM_MATS, PAD, PAD) group
W_Q, W_K, W_V, W_O, W_1, W_2 = 0, 1, 2, 3, 4, 5
NUM_MATS = 6


# ----------------------------- in-kernel helpers -----------------------------

def _gelu(x):
  # TODO(synk): torch nn.GELU() defaults to exact erf; tanh approximation used
  # for guaranteed Mosaic lowering (|err| ~ 1e-3).
  c = math.sqrt(2.0 / math.pi)
  return 0.5 * x * (1.0 + jnp.tanh(c * (x + 0.044715 * x * x * x)))


def _layernorm_padded(x, g, b, d, eps=1e-5):
  """LayerNorm over the first `d` lanes of a zero-padded (rows, PAD) array.

  Requires x == 0 and g == b == 0 in lanes >= d; uses E[x^2] - E[x]^2 so no
  lane mask is needed and padded lanes stay zero in the output.
  """
  inv_d = 1.0 / float(d)
  mu = jnp.sum(x, axis=-1, keepdims=True) * inv_d
  ex2 = jnp.sum(x * x, axis=-1, keepdims=True) * inv_d
  var = ex2 - mu * mu
  return (x - mu) * jax.lax.rsqrt(var + eps) * g + b


def _mm(a, b):
  """(M,K) @ (K,N): bf16 MXU operands, f32 accumulation."""
  return jnp.dot(a.astype(jnp.bfloat16), b.astype(jnp.bfloat16),
                 preferred_element_type=jnp.float32)


def _mm_t(a, b):
  """(M,K) x (N,K) -> (M,N), contracting the last axes (a @ b.T)."""
  return jax.lax.dot_general(a.astype(jnp.bfloat16), b.astype(jnp.bfloat16),
                             (((1,), (1,)), ((), ())),
                             preferred_element_type=jnp.float32)


# ------------------------------ fused model kernel ----------------------------

def _fused_perceiver_kernel(inputs_ref, latents_ref, outq_ref, w_ref, r_ref,
                            out_ref, *, schedule, num_heads):
  """Whole PerceiverModel forward (batch=1), all layers unrolled in-kernel."""
  inputs = inputs_ref[...]     # (S,  PAD) zero-padded past d_inputs
  latents = latents_ref[...]   # (Nl, PAD) zero-padded past d_latents
  outq = outq_ref[...]         # (No, PAD) zero-padded past d_outputs

  lane = jax.lax.broadcasted_iota(jnp.int32, (1, PAD), 1)
  mask_cache = {}

  def head_mask(lo, hi, val):
    key = (lo, hi, float(val))
    if key not in mask_cache:   # trace-time cache -> constants are hoisted
      mask_cache[key] = jnp.where((lane >= lo) & (lane < hi),
                                  jnp.float32(val), jnp.float32(0.0))
    return mask_cache[key]

  x = latents
  for (pidx, q_src, kv_src, q_dim, kv_dim) in schedule:
    rows = r_ref[pidx]                          # (NUM_ROWS, PAD) f32

    def row(i, _rows=rows):
      return _rows[i:i + 1, :]                  # (1, PAD)

    def mat(i, _p=pidx):
      return w_ref[_p * NUM_MATS + i]           # (PAD, PAD) bf16

    q_in = {"x": x, "latents": latents, "outq": outq}[q_src]
    qn = _layernorm_padded(q_in, row(R_LNQ_G), row(R_LNQ_B), q_dim)
    if kv_src == "self":
      kvn = qn                                  # self-attn: attention(qn, qn, qn)
    else:
      kv_in = inputs if kv_src == "inputs" else x
      kvn = _layernorm_padded(kv_in, row(R_LNKV_G), row(R_LNKV_B), kv_dim)

    # ---- multi-head attention (nn.MultiheadAttention, dropout=0, eval) ----
    q_p = _mm(qn, mat(W_Q)) + row(R_BQ)
    k_p = _mm(kvn, mat(W_K)) + row(R_BK)
    v_p = _mm(kvn, mat(W_V)) + row(R_BV)

    head_dim = q_dim // num_heads
    scale = 1.0 / math.sqrt(head_dim)
    ctx = jnp.zeros_like(q_p)
    for h in range(num_heads):                  # static unroll; full-width vregs
      lo, hi = h * head_dim, (h + 1) * head_dim
      qh = q_p * head_mask(lo, hi, scale)       # 1/sqrt(hd) folded into the mask
      s = _mm_t(qh, k_p)                        # (Lq, Lkv) head-h scores
      s = s - jnp.max(s, axis=-1, keepdims=True)
      p = jnp.exp(s)
      p = p * pl.reciprocal(jnp.sum(p, axis=-1, keepdims=True), approx=True)
      ctx = ctx + _mm(p, v_p) * head_mask(lo, hi, 1.0)
    attn = _mm(ctx, mat(W_O)) + row(R_BO)

    # ---- residual onto the *normed* q (per module) + pre-MLP LayerNorm ----
    y = _layernorm_padded(qn + attn, row(R_LNP_G), row(R_LNP_B), q_dim)

    # ---- MLP: Linear -> GELU -> (dropout p=0) -> Linear -> GELU, residual ----
    h1 = _gelu(_mm(y, mat(W_1)) + row(R_B1))
    h2 = _gelu(_mm(h1, mat(W_2)) + row(R_B2))
    x = y + h2

  out_ref[...] = x                              # (num_outputs, PAD), lane-dense


# ------------------------------ schedule & packing ----------------------------

def build_schedule(cfg):
  """Static plan: (param_set_idx, q_src, kv_src, q_dim, kv_dim) per layer."""
  idx_cross = 0
  idx_tower = list(range(1, 1 + cfg.num_self_attentions))
  idx_out = 1 + cfg.num_self_attentions
  idx_first = idx_out + 1
  first = idx_first if cfg.ignore_first_cross_attention else idx_cross

  sched = [(first, "latents", "inputs", cfg.d_latents, cfg.d_inputs)]

  def tower():
    for i in idx_tower:
      sched.append((i, "x", "self", cfg.d_latents, cfg.d_latents))

  tower()
  for _ in range(cfg.num_blocks - 1):
    sched.append((idx_cross, "x", "inputs", cfg.d_latents, cfg.d_inputs))
    tower()
  sched.append((idx_out, "outq", "x", cfg.d_outputs, cfg.d_latents))
  return tuple(sched)


def _pad_row(v):
  out = jnp.zeros((PAD,), jnp.float32)
  return out.at[:v.shape[0]].set(v)


def _pad_mat(m):
  out = jnp.zeros((PAD, PAD), jnp.float32)
  return out.at[:m.shape[0], :m.shape[1]].set(m)


def _pad_cols(a):
  out = jnp.zeros((a.shape[0], PAD), jnp.float32)
  return out.at[:, :a.shape[1]].set(a)


def pack_layer(p):
  rows = jnp.zeros((NUM_ROWS, PAD), jnp.float32)
  for i, name in ((R_LNQ_G, "lnq_g"), (R_LNQ_B, "lnq_b"),
                  (R_LNKV_G, "lnkv_g"), (R_LNKV_B, "lnkv_b"),
                  (R_LNP_G, "lnp_g"), (R_LNP_B, "lnp_b"),
                  (R_BQ, "bq"), (R_BK, "bk"), (R_BV, "bv"), (R_BO, "bo"),
                  (R_B1, "b1"), (R_B2, "b2")):
    rows = rows.at[i].set(_pad_row(p[name]))
  mats = [_pad_mat(p[n]) for n in ("wq", "wk", "wv", "wo", "w1", "w2")]
  return rows, mats


def pack_params(params, cfg):
  layer_list = [params["cross"]] + list(params["tower"]) + [params["out_cross"]]
  if cfg.ignore_first_cross_attention:
    layer_list.append(params["first_cross"])
  rows_all, mats_all = [], []
  for p in layer_list:
    r, m = pack_layer(p)
    rows_all.append(r)
    mats_all.extend(m)
  return dict(
      r_stack=jnp.stack(rows_all),                        # (L, NUM_ROWS, PAD) f32
      w_stack=jnp.stack(mats_all).astype(jnp.bfloat16),   # (L*NUM_MATS, PAD, PAD)
      latents=_pad_cols(params["latents"][0]),            # (num_latents, PAD)
      output_queries=_pad_cols(params["output_queries"][0]),
  )


# ------------------------------ parameters & model ----------------------------

def init_layer_params(key, q_dim, kv_dim, hidden_dim):
  ks = jax.random.split(key, 10)
  w = lambda k, shape: 0.05 * jax.random.normal(k, shape, jnp.float32)
  # NOTE: weights stored (in_dim, out_dim); loading real torch weights would
  # require transposing/splitting the fused (out,in) MultiheadAttention params.
  return dict(
      lnq_g=jnp.ones((q_dim,), jnp.float32),
      lnq_b=jnp.zeros((q_dim,), jnp.float32),
      lnkv_g=jnp.ones((kv_dim,), jnp.float32),
      lnkv_b=jnp.zeros((kv_dim,), jnp.float32),
      lnp_g=jnp.ones((q_dim,), jnp.float32),
      lnp_b=jnp.zeros((q_dim,), jnp.float32),
      wq=w(ks[0], (q_dim, q_dim)), bq=w(ks[1], (q_dim,)),
      wk=w(ks[2], (kv_dim, q_dim)), bk=w(ks[3], (q_dim,)),
      wv=w(ks[4], (kv_dim, q_dim)), bv=w(ks[5], (q_dim,)),
      wo=w(ks[6], (q_dim, q_dim)), bo=w(ks[7], (q_dim,)),
      w1=w(ks[8], (q_dim, hidden_dim)), b1=jnp.zeros((hidden_dim,), jnp.float32),
      w2=w(ks[9], (hidden_dim, q_dim)), b2=jnp.zeros((q_dim,), jnp.float32),
  )


class Config:
  num_latents = 8
  d_latents = 32
  num_outputs = 8
  d_outputs = 32
  d_inputs = 16
  num_heads = 2
  widening_factor = 2
  dropout = 0.0
  num_self_attentions = 2
  num_blocks = 2
  ignore_first_cross_attention = False


def perceiver_forward(inputs, packed, cfg):
  """inputs: (1, S, d_inputs) -> (1, num_outputs, d_outputs). One fused kernel."""
  inp = _pad_cols(inputs[0])                    # squeeze batch=1, pad lanes
  schedule = build_schedule(cfg)
  kernel = functools.partial(_fused_perceiver_kernel,
                             schedule=schedule, num_heads=cfg.num_heads)
  out_pad = pl.pallas_call(
      kernel,
      out_shape=jax.ShapeDtypeStruct((cfg.num_outputs, PAD), jnp.float32),
      in_specs=[pl.BlockSpec(memory_space=pltpu.MemorySpace.VMEM)] * 5,
      out_specs=pl.BlockSpec(memory_space=pltpu.MemorySpace.VMEM),
  )(inp, packed["latents"], packed["output_queries"],
    packed["w_stack"], packed["r_stack"])
  return out_pad[None, :, :cfg.d_outputs]       # restore batch dim, drop padding


# ------------------------------------ main ------------------------------------

if __name__ == "__main__":
  cfg = Config()
  key = jax.random.PRNGKey(0)
  k_in, k_lat, k_out, k_cross, k_tower, k_ocross, k_first = jax.random.split(key, 7)

  seq_len = 16
  inputs = jax.random.normal(k_in, (1, seq_len, cfg.d_inputs), jnp.float32)

  hidden = cfg.d_latents * cfg.widening_factor
  params = {
      "latents": jax.random.normal(k_lat, (1, cfg.num_latents, cfg.d_latents),
                                   jnp.float32),
      "output_queries": jax.random.normal(
          k_out, (1, cfg.num_outputs, cfg.d_outputs), jnp.float32),
      "cross": init_layer_params(k_cross, cfg.d_latents, cfg.d_inputs, hidden),
      "tower": [init_layer_params(k, cfg.d_latents, cfg.d_latents, hidden)
                for k in jax.random.split(k_tower, cfg.num_self_attentions)],
      "out_cross": init_layer_params(k_ocross, cfg.d_outputs, cfg.d_latents,
                                     cfg.d_outputs * cfg.widening_factor),
  }
  if cfg.ignore_first_cross_attention:
    params["first_cross"] = init_layer_params(
        k_first, cfg.d_latents, cfg.d_inputs, hidden)

  packed = pack_params(params, cfg)             # one-time parameter packing
  fwd = jax.jit(functools.partial(perceiver_forward, cfg=cfg))

  out = jax.block_until_ready(fwd(inputs, packed))
  assert out.shape == (1, cfg.num_outputs, cfg.d_outputs), out.shape
  assert jnp.all(jnp.isfinite(out))
  print("KERNEL_OK")
</pallas_src>

<mosaic_0001>
module attributes {stable_mosaic.version = 11 : i64} {
  func.func @_fused_perceiver_kernel(%arg0: memref<16x128xf32, #tpu.memory_space<vmem>>, %arg1: memref<8x128xf32, #tpu.memory_space<vmem>>, %arg2: memref<8x128xf32, #tpu.memory_space<vmem>>, %arg3: memref<24x128x128xbf16, #tpu.memory_space<vmem>>, %arg4: memref<4x16x128xf32, #tpu.memory_space<vmem>>, %arg5: memref<8x128xf32, #tpu.memory_space<vmem>>) attributes {dimension_semantics = [], scalar_prefetch = 0 : i64, scratch_operands = 0 : i64, tpu.core_type = #tpu.core_type<tc>} {
    %c0 = arith.constant 0 : index
    %c0_0 = arith.constant 0 : index
    %0 = vector.load %arg0[%c0, %c0_0] : memref<16x128xf32, #tpu.memory_space<vmem>>, vector<16x128xf32>
    %c0_1 = arith.constant 0 : index
    %c0_2 = arith.constant 0 : index
    %1 = vector.load %arg1[%c0_1, %c0_2] : memref<8x128xf32, #tpu.memory_space<vmem>>, vector<8x128xf32>
    %c0_3 = arith.constant 0 : index
    %c0_4 = arith.constant 0 : index
    %2 = vector.load %arg2[%c0_3, %c0_4] : memref<8x128xf32, #tpu.memory_space<vmem>>, vector<8x128xf32>
    %3 = tpu.iota {dimensions = array<i32: 1>} : vector<1x128xi32>
    %c0_5 = arith.constant 0 : index
    %c0_6 = arith.constant 0 : index
    %c0_7 = arith.constant 0 : index
    %4 = vector.load %arg4[%c0_5, %c0_6, %c0_7] : memref<4x16x128xf32, #tpu.memory_space<vmem>>, vector<1x16x128xf32>
    %5 = vector.shape_cast %4 : vector<1x16x128xf32> to vector<16x128xf32>
    %6 = vector.extract_strided_slice %5 {offsets = [0, 0], sizes = [1, 128], strides = [1, 1]} : vector<16x128xf32> to vector<1x128xf32>
    %7 = vector.extract_strided_slice %5 {offsets = [1, 0], sizes = [1, 128], strides = [1, 1]} : vector<16x128xf32> to vector<1x128xf32>
    %cst = arith.constant dense<0.000000e+00> : vector<8xf32>
    %8 = vector.multi_reduction <add>, %1, %cst [1] : vector<8x128xf32> to vector<8xf32>
    %9 = vector.shape_cast %8 : vector<8xf32> to vector<8x1xf32>
    %cst_8 = arith.constant 3.125000e-02 : f32
    %10 = vector.broadcast %cst_8 : f32 to vector<8x1xf32>
    %11 = arith.mulf %9, %10 : vector<8x1xf32>
    %12 = arith.mulf %1, %1 : vector<8x128xf32>
    %cst_9 = arith.constant dense<0.000000e+00> : vector<8xf32>
    %13 = vector.multi_reduction <add>, %12, %cst_9 [1] : vector<8x128xf32> to vector<8xf32>
    %14 = vector.shape_cast %13 : vector<8xf32> to vector<8x1xf32>
    %cst_10 = arith.constant 3.125000e-02 : f32
    %15 = vector.broadcast %cst_10 : f32 to vector<8x1xf32>
    %16 = arith.mulf %14, %15 : vector<8x1xf32>
    %17 = arith.mulf %11, %11 : vector<8x1xf32>
    %18 = arith.subf %16, %17 : vector<8x1xf32>
    %19 = vector.broadcast %11 : vector<8x1xf32> to vector<8x128xf32>
    %20 = arith.subf %1, %19 : vector<8x128xf32>
    %cst_11 = arith.constant 9.99999974E-6 : f32
    %21 = vector.broadcast %cst_11 : f32 to vector<8x1xf32>
    %22 = arith.addf %18, %21 : vector<8x1xf32>
    %23 = math.rsqrt %22 : vector<8x1xf32>
    %24 = vector.broadcast %23 : vector<8x1xf32> to vector<8x128xf32>
    %25 = arith.mulf %20, %24 : vector<8x128xf32>
    %26 = vector.broadcast %6 : vector<1x128xf32> to vector<8x128xf32>
    %27 = arith.mulf %25, %26 : vector<8x128xf32>
    %28 = vector.broadcast %7 : vector<1x128xf32> to vector<8x128xf32>
    %29 = arith.addf %27, %28 : vector<8x128xf32>
    %30 = vector.extract_strided_slice %5 {offsets = [2, 0], sizes = [1, 128], strides = [1, 1]} : vector<16x128xf32> to vector<1x128xf32>
    %31 = vector.extract_strided_slice %5 {offsets = [3, 0], sizes = [1, 128], strides = [1, 1]} : vector<16x128xf32> to vector<1x128xf32>
    %cst_12 = arith.constant dense<0.000000e+00> : vector<16xf32>
    %32 = vector.multi_reduction <add>, %0, %cst_12 [1] : vector<16x128xf32> to vector<16xf32>
    %33 = vector.shape_cast %32 : vector<16xf32> to vector<16x1xf32>
    %cst_13 = arith.constant 6.250000e-02 : f32
    %34 = vector.broadcast %cst_13 : f32 to vector<16x1xf32>
    %35 = arith.mulf %33, %34 : vector<16x1xf32>
    %36 = arith.mulf %0, %0 : vector<16x128xf32>
    %cst_14 = arith.constant dense<0.000000e+00> : vector<16xf32>
    %37 = vector.multi_reduction <add>, %36, %cst_14 [1] : vector<16x128xf32> to vector<16xf32>
    %38 = vector.shape_cast %37 : vector<16xf32> to vector<16x1xf32>
    %cst_15 = arith.constant 6.250000e-02 : f32
    %39 = vector.broadcast %cst_15 : f32 to vector<16x1xf32>
    %40 = arith.mulf %38, %39 : vector<16x1xf32>
    %41 = arith.mulf %35, %35 : vector<16x1xf32>
    %42 = arith.subf %40, %41 : vector<16x1xf32>
    %43 = vector.broadcast %35 : vector<16x1xf32> to vector<16x128xf32>
    %44 = arith.subf %0, %43 : vector<16x128xf32>
    %cst_16 = arith.constant 9.99999974E-6 : f32
    %45 = vector.broadcast %cst_16 : f32 to vector<16x1xf32>
    %46 = arith.addf %42, %45 : vector<16x1xf32>
    %47 = math.rsqrt %46 : vector<16x1xf32>
    %48 = vector.broadcast %47 : vector<16x1xf32> to vector<16x128xf32>
    %49 = arith.mulf %44, %48 : vector<16x128xf32>
    %50 = vector.broadcast %30 : vector<1x128xf32> to vector<16x128xf32>
    %51 = arith.mulf %49, %50 : vector<16x128xf32>
    %52 = vector.broadcast %31 : vector<1x128xf32> to vector<16x128xf32>
    %53 = arith.addf %51, %52 : vector<16x128xf32>
    %c0_17 = arith.constant 0 : index
    %c0_18 = arith.constant 0 : index
    %c0_19 = arith.constant 0 : index
    %54 = vector.load %arg3[%c0_17, %c0_18, %c0_19] : memref<24x128x128xbf16, #tpu.memory_space<vmem>>, vector<1x128x128xbf16>
    %55 = vector.shape_cast %54 : vector<1x128x128xbf16> to vector<128x128xbf16>
    %56 = arith.truncf %29 : vector<8x128xf32> to vector<8x128xbf16>
    %cst_20 = arith.constant dense<0.000000e+00> : vector<8x128xf32>
    %57 = tpu.matmul %56, %55, %cst_20 {dimension_numbers = #tpu.dot_dimension_numbers<[1], [0], [0], [1], [0, 0, 1, 1], [], []>} : vector<8x128xbf16>, vector<128x128xbf16>, vector<8x128xf32> -> vector<8x128xf32>
    %58 = vector.extract_strided_slice %5 {offsets = [6, 0], sizes = [1, 128], strides = [1, 1]} : vector<16x128xf32> to vector<1x128xf32>
    %59 = vector.broadcast %58 : vector<1x128xf32> to vector<8x128xf32>
    %60 = arith.addf %57, %59 : vector<8x128xf32>
    %c1 = arith.constant 1 : index
    %c0_21 = arith.constant 0 : index
    %c0_22 = arith.constant 0 : index
    %61 = vector.load %arg3[%c1, %c0_21, %c0_22] : memref<24x128x128xbf16, #tpu.memory_space<vmem>>, vector<1x128x128xbf16>
    %62 = vector.shape_cast %61 : vector<1x128x128xbf16> to vector<128x128xbf16>
    %63 = arith.truncf %53 : vector<16x128xf32> to vector<16x128xbf16>
    %cst_23 = arith.constant dense<0.000000e+00> : vector<16x128xf32>
    %64 = tpu.matmul %63, %62, %cst_23 {dimension_numbers = #tpu.dot_dimension_numbers<[1], [0], [0], [1], [0, 0, 1, 1], [], []>} : vector<16x128xbf16>, vector<128x128xbf16>, vector<16x128xf32> -> vector<16x128xf32>
    %65 = vector.extract_strided_slice %5 {offsets = [7, 0], sizes = [1, 128], strides = [1, 1]} : vector<16x128xf32> to vector<1x128xf32>
    %66 = vector.broadcast %65 : vector<1x128xf32> to vector<16x128xf32>
    %67 = arith.addf %64, %66 : vector<16x128xf32>
    %c2 = arith.constant 2 : index
    %c0_24 = arith.constant 0 : index
    %c0_25 = arith.constant 0 : index
    %68 = vector.load %arg3[%c2, %c0_24, %c0_25] : memref<24x128x128xbf16, #tpu.memory_space<vmem>>, vector<1x128x128xbf16>
    %69 = vector.shape_cast %68 : vector<1x128x128xbf16> to vector<128x128xbf16>
    %70 = arith.truncf %53 : vector<16x128xf32> to vector<16x128xbf16>
    %cst_26 = arith.constant dense<0.000000e+00> : vector<16x128xf32>
    %71 = tpu.matmul %70, %69, %cst_26 {dimension_numbers = #tpu.dot_dimension_numbers<[1], [0], [0], [1], [0, 0, 1, 1], [], []>} : vector<16x128xbf16>, vector<128x128xbf16>, vector<16x128xf32> -> vector<16x128xf32>
    %72 = vector.extract_strided_slice %5 {offsets = [8, 0], sizes = [1, 128], strides = [1, 1]} : vector<16x128xf32> to vector<1x128xf32>
    %73 = vector.broadcast %72 : vector<1x128xf32> to vector<16x128xf32>
    %74 = arith.addf %71, %73 : vector<16x128xf32>
    %cst_27 = arith.constant 0.000000e+00 : f32
    %75 = vector.broadcast %cst_27 : f32 to vector<8x128xf32>
    %c0_i32 = arith.constant 0 : i32
    %76 = vector.broadcast %c0_i32 : i32 to vector<1x128xi32>
    %77 = arith.cmpi sge, %3, %76 : vector<1x128xi32>
    %c16_i32 = arith.constant 16 : i32
    %78 = vector.broadcast %c16_i32 : i32 to vector<1x128xi32>
    %79 = arith.cmpi slt, %3, %78 : vector<1x128xi32>
    %80 = arith.andi %77, %79 : vector<1x128xi1>
    %cst_28 = arith.constant 2.500000e-01 : f32
    %cst_29 = arith.constant 0.000000e+00 : f32
    %81 = vector.broadcast %cst_28 : f32 to vector<1x128xf32>
    %82 = vector.broadcast %cst_29 : f32 to vector<1x128xf32>
    %83 = arith.select %80, %81, %82 : vector<1x128xi1>, vector<1x128xf32>
    %84 = vector.broadcast %83 : vector<1x128xf32> to vector<8x128xf32>
    %85 = arith.mulf %60, %84 : vector<8x128xf32>
    %86 = arith.truncf %85 : vector<8x128xf32> to vector<8x128xbf16>
    %87 = arith.truncf %67 : vector<16x128xf32> to vector<16x128xbf16>
    %cst_30 = arith.constant dense<0.000000e+00> : vector<8x16xf32>
    %88 = tpu.matmul %86, %87, %cst_30 {dimension_numbers = #tpu.dot_dimension_numbers<[1], [1], [0], [0], [0, 0, 1, 0], [], []>} : vector<8x128xbf16>, vector<16x128xbf16>, vector<8x16xf32> -> vector<8x16xf32>
    %cst_31 = arith.constant dense<0xFF800000> : vector<8xf32>
    %89 = vector.multi_reduction <maximumf>, %88, %cst_31 [1] : vector<8x16xf32> to vector<8xf32>
    %90 = vector.shape_cast %89 : vector<8xf32> to vector<8x1xf32>
    %91 = vector.broadcast %90 : vector<8x1xf32> to vector<8x16xf32>
    %92 = arith.subf %88, %91 : vector<8x16xf32>
    %93 = math.exp %92 : vector<8x16xf32>
    %cst_32 = arith.constant dense<0.000000e+00> : vector<8xf32>
    %94 = vector.multi_reduction <add>, %93, %cst_32 [1] : vector<8x16xf32> to vector<8xf32>
    %95 = vector.shape_cast %94 : vector<8xf32> to vector<8x1xf32>
    %96 = tpu.reciprocal %95 {approx = true} : vector<8x1xf32> -> vector<8x1xf32>
    %97 = vector.broadcast %96 : vector<8x1xf32> to vector<8x16xf32>
    %98 = arith.mulf %93, %97 : vector<8x16xf32>
    %99 = arith.truncf %98 : vector<8x16xf32> to vector<8x16xbf16>
    %100 = arith.truncf %74 : vector<16x128xf32> to vector<16x128xbf16>
    %cst_33 = arith.constant dense<0.000000e+00> : vector<8x128xf32>
    %101 = tpu.matmul %99, %100, %cst_33 {dimension_numbers = #tpu.dot_dimension_numbers<[1], [0], [0], [1], [0, 0, 1, 1], [], []>} : vector<8x16xbf16>, vector<16x128xbf16>, vector<8x128xf32> -> vector<8x128xf32>
    %c0_i32_34 = arith.constant 0 : i32
    %102 = vector.broadcast %c0_i32_34 : i32 to vector<1x128xi32>
    %103 = arith.cmpi sge, %3, %102 : vector<1x128xi32>
    %c16_i32_35 = arith.constant 16 : i32
    %104 = vector.broadcast %c16_i32_35 : i32 to vector<1x128xi32>
    %105 = arith.cmpi slt, %3, %104 : vector<1x128xi32>
    %106 = arith.andi %103, %105 : vector<1x128xi1>
    %cst_36 = arith.constant 1.000000e+00 : f32
    %cst_37 = arith.constant 0.000000e+00 : f32
    %107 = vector.broadcast %cst_36 : f32 to vector<1x128xf32>
    %108 = vector.broadcast %cst_37 : f32 to vector<1x128xf32>
    %109 = arith.select %106, %107, %108 : vector<1x128xi1>, vector<1x128xf32>
    %110 = vector.broadcast %109 : vector<1x128xf32> to vector<8x128xf32>
    %111 = arith.mulf %101, %110 : vector<8x128xf32>
    %112 = arith.addf %75, %111 : vector<8x128xf32>
    %c16_i32_38 = arith.constant 16 : i32
    %113 = vector.broadcast %c16_i32_38 : i32 to vector<1x128xi32>
    %114 = arith.cmpi sge, %3, %113 : vector<1x128xi32>
    %c32_i32 = arith.constant 32 : i32
    %115 = vector.broadcast %c32_i32 : i32 to vector<1x128xi32>
    %116 = arith.cmpi slt, %3, %115 : vector<1x128xi32>
    %117 = arith.andi %114, %116 : vector<1x128xi1>
    %cst_39 = arith.constant 2.500000e-01 : f32
    %cst_40 = arith.constant 0.000000e+00 : f32
    %118 = vector.broadcast %cst_39 : f32 to vector<1x128xf32>
    %119 = vector.broadcast %cst_40 : f32 to vector<1x128xf32>
    %120 = arith.select %117, %118, %119 : vector<1x128xi1>, vector<1x128xf32>
    %121 = vector.broadcast %120 : vector<1x128xf32> to vector<8x128xf32>
    %122 = arith.mulf %60, %121 : vector<8x128xf32>
    %123 = arith.truncf %122 : vector<8x128xf32> to vector<8x128xbf16>
    %124 = arith.truncf %67 : vector<16x128xf32> to vector<16x128xbf16>
    %cst_41 = arith.constant dense<0.000000e+00> : vector<8x16xf32>
    %125 = tpu.matmul %123, %124, %cst_41 {dimension_numbers = #tpu.dot_dimension_numbers<[1], [1], [0], [0], [0, 0, 1, 0], [], []>} : vector<8x128xbf16>, vector<16x128xbf16>, vector<8x16xf32> -> vector<8x16xf32>
    %cst_42 = arith.constant dense<0xFF800000> : vector<8xf32>
    %126 = vector.multi_reduction <maximumf>, %125, %cst_42 [1] : vector<8x16xf32> to vector<8xf32>
    %127 = vector.shape_cast %126 : vector<8xf32> to vector<8x1xf32>
    %128 = vector.broadcast %127 : vector<8x1xf32> to vector<8x16xf32>
    %129 = arith.subf %125, %128 : vector<8x16xf32>
    %130 = math.exp %129 : vector<8x16xf32>
    %cst_43 = arith.constant dense<0.000000e+00> : vector<8xf32>
    %131 = vector.multi_reduction <add>, %130, %cst_43 [1] : vector<8x16xf32> to vector<8xf32>
    %132 = vector.shape_cast %131 : vector<8xf32> to vector<8x1xf32>
    %133 = tpu.reciprocal %132 {approx = true} : vector<8x1xf32> -> vector<8x1xf32>
    %134 = vector.broadcast %133 : vector<8x1xf32> to vector<8x16xf32>
    %135 = arith.mulf %130, %134 : vector<8x16xf32>
    %136 = arith.truncf %135 : vector<8x16xf32> to vector<8x16xbf16>
    %137 = arith.truncf %74 : vector<16x128xf32> to vector<16x128xbf16>
    %cst_44 = arith.constant dense<0.000000e+00> : vector<8x128xf32>
    %138 = tpu.matmul %136, %137, %cst_44 {dimension_numbers = #tpu.dot_dimension_numbers<[1], [0], [0], [1], [0, 0, 1, 1], [], []>} : vector<8x16xbf16>, vector<16x128xbf16>, vector<8x128xf32> -> vector<8x128xf32>
    %c16_i32_45 = arith.constant 16 : i32
    %139 = vector.broadcast %c16_i32_45 : i32 to vector<1x128xi32>
    %140 = arith.cmpi sge, %3, %139 : vector<1x128xi32>
    %c32_i32_46 = arith.constant 32 : i32
    %141 = vector.broadcast %c32_i32_46 : i32 to vector<1x128xi32>
    %142 = arith.cmpi slt, %3, %141 : vector<1x128xi32>
    %143 = arith.andi %140, %142 : vector<1x128xi1>
    %cst_47 = arith.constant 1.000000e+00 : f32
    %cst_48 = arith.constant 0.000000e+00 : f32
    %144 = vector.broadcast %cst_47 : f32 to vector<1x128xf32>
    %145 = vector.broadcast %cst_48 : f32 to vector<1x128xf32>
    %146 = arith.select %143, %144, %145 : vector<1x128xi1>, vector<1x128xf32>
    %147 = vector.broadcast %146 : vector<1x128xf32> to vector<8x128xf32>
    %148 = arith.mulf %138, %147 : vector<8x128xf32>
    %149 = arith.addf %112, %148 : vector<8x128xf32>
    %c3 = arith.constant 3 : index
    %c0_49 = arith.constant 0 : index
    %c0_50 = arith.constant 0 : index
    %150 = vector.load %arg3[%c3, %c0_49, %c0_50] : memref<24x128x128xbf16, #tpu.memory_space<vmem>>, vector<1x128x128xbf16>
    %151 = vector.shape_cast %150 : vector<1x128x128xbf16> to vector<128x128xbf16>
    %152 = arith.truncf %149 : vector<8x128xf32> to vector<8x128xbf16>
    %cst_51 = arith.constant dense<0.000000e+00> : vector<8x128xf32>
    %153 = tpu.matmul %152, %151, %cst_51 {dimension_numbers = #tpu.dot_dimension_numbers<[1], [0], [0], [1], [0, 0, 1, 1], [], []>} : vector<8x128xbf16>, vector<128x128xbf16>, vector<8x128xf32> -> vector<8x128xf32>
    %154 = vector.extract_strided_slice %5 {offsets = [9, 0], sizes = [1, 128], strides = [1, 1]} : vector<16x128xf32> to vector<1x128xf32>
    %155 = vector.broadcast %154 : vector<1x128xf32> to vector<8x128xf32>
    %156 = arith.addf %153, %155 : vector<8x128xf32>
    %157 = arith.addf %29, %156 : vector<8x128xf32>
    %158 = vector.extract_strided_slice %5 {offsets = [4, 0], sizes = [1, 128], strides = [1, 1]} : vector<16x128xf32> to vector<1x128xf32>
    %159 = vector.extract_strided_slice %5 {offsets = [5, 0], sizes = [1, 128], strides = [1, 1]} : vector<16x128xf32> to vector<1x128xf32>
    %cst_52 = arith.constant dense<0.000000e+00> : vector<8xf32>
    %160 = vector.multi_reduction <add>, %157, %cst_52 [1] : vector<8x128xf32> to vector<8xf32>
    %161 = vector.shape_cast %160 : vector<8xf32> to vector<8x1xf32>
    %cst_53 = arith.constant 3.125000e-02 : f32
    %162 = vector.broadcast %cst_53 : f32 to vector<8x1xf32>
    %163 = arith.mulf %161, %162 : vector<8x1xf32>
    %164 = arith.mulf %157, %157 : vector<8x128xf32>
    %cst_54 = arith.constant dense<0.000000e+00> : vector<8xf32>
    %165 = vector.multi_reduction <add>, %164, %cst_54 [1] : vector<8x128xf32> to vector<8xf32>
    %166 = vector.shape_cast %165 : vector<8xf32> to vector<8x1xf32>
    %cst_55 = arith.constant 3.125000e-02 : f32
    %167 = vector.broadcast %cst_55 : f32 to vector<8x1xf32>
    %168 = arith.mulf %166, %167 : vector<8x1xf32>
    %169 = arith.mulf %163, %163 : vector<8x1xf32>
    %170 = arith.subf %168, %169 : vector<8x1xf32>
    %171 = vector.broadcast %163 : vector<8x1xf32> to vector<8x128xf32>
    %172 = arith.subf %157, %171 : vector<8x128xf32>
    %cst_56 = arith.constant 9.99999974E-6 : f32
    %173 = vector.broadcast %cst_56 : f32 to vector<8x1xf32>
    %174 = arith.addf %170, %173 : vector<8x1xf32>
    %175 = math.rsqrt %174 : vector<8x1xf32>
    %176 = vector.broadcast %175 : vector<8x1xf32> to vector<8x128xf32>
    %177 = arith.mulf %172, %176 : vector<8x128xf32>
    %178 = vector.broadcast %158 : vector<1x128xf32> to vector<8x128xf32>
    %179 = arith.mulf %177, %178 : vector<8x128xf32>
    %180 = vector.broadcast %159 : vector<1x128xf32> to vector<8x128xf32>
    %181 = arith.addf %179, %180 : vector<8x128xf32>
    %c4 = arith.constant 4 : index
    %c0_57 = arith.constant 0 : index
    %c0_58 = arith.constant 0 : index
    %182 = vector.load %arg3[%c4, %c0_57, %c0_58] : memref<24x128x128xbf16, #tpu.memory_space<vmem>>, vector<1x128x128xbf16>
    %183 = vector.shape_cast %182 : vector<1x128x128xbf16> to vector<128x128xbf16>
    %184 = arith.truncf %181 : vector<8x128xf32> to vector<8x128xbf16>
    %cst_59 = arith.constant dense<0.000000e+00> : vector<8x128xf32>
    %185 = tpu.matmul %184, %183, %cst_59 {dimension_numbers = #tpu.dot_dimension_numbers<[1], [0], [0], [1], [0, 0, 1, 1], [], []>} : vector<8x128xbf16>, vector<128x128xbf16>, vector<8x128xf32> -> vector<8x128xf32>
    %186 = vector.extract_strided_slice %5 {offsets = [10, 0], sizes = [1, 128], strides = [1, 1]} : vector<16x128xf32> to vector<1x128xf32>
    %187 = vector.broadcast %186 : vector<1x128xf32> to vector<8x128xf32>
    %188 = arith.addf %185, %187 : vector<8x128xf32>
    %cst_60 = arith.constant 5.000000e-01 : f32
    %189 = vector.broadcast %cst_60 : f32 to vector<8x128xf32>
    %190 = arith.mulf %189, %188 : vector<8x128xf32>
    %cst_61 = arith.constant 4.471500e-02 : f32
    %191 = vector.broadcast %cst_61 : f32 to vector<8x128xf32>
    %192 = arith.mulf %191, %188 : vector<8x128xf32>
    %193 = arith.mulf %192, %188 : vector<8x128xf32>
    %194 = arith.mulf %193, %188 : vector<8x128xf32>
    %195 = arith.addf %188, %194 : vector<8x128xf32>
    %cst_62 = arith.constant 0.797884583 : f32
    %196 = vector.broadcast %cst_62 : f32 to vector<8x128xf32>
    %197 = arith.mulf %196, %195 : vector<8x128xf32>
    %198 = math.tanh %197 : vector<8x128xf32>
    %cst_63 = arith.constant 1.000000e+00 : f32
    %199 = vector.broadcast %cst_63 : f32 to vector<8x128xf32>
    %200 = arith.addf %199, %198 : vector<8x128xf32>
    %201 = arith.mulf %190, %200 : vector<8x128xf32>
    %c5 = arith.constant 5 : index
    %c0_64 = arith.constant 0 : index
    %c0_65 = arith.constant 0 : index
    %202 = vector.load %arg3[%c5, %c0_64, %c0_65] : memref<24x128x128xbf16, #tpu.memory_space<vmem>>, vector<1x128x128xbf16>
    %203 = vector.shape_cast %202 : vector<1x128x128xbf16> to vector<128x128xbf16>
    %204 = arith.truncf %201 : vector<8x128xf32> to vector<8x128xbf16>
    %cst_66 = arith.constant dense<0.000000e+00> : vector<8x128xf32>
    %205 = tpu.matmul %204, %203, %cst_66 {dimension_numbers = #tpu.dot_dimension_numbers<[1], [0], [0], [1], [0, 0, 1, 1], [], []>} : vector<8x128xbf16>, vector<128x128xbf16>, vector<8x128xf32> -> vector<8x128xf32>
    %206 = vector.extract_strided_slice %5 {offsets = [11, 0], sizes = [1, 128], strides = [1, 1]} : vector<16x128xf32> to vector<1x128xf32>
    %207 = vector.broadcast %206 : vector<1x128xf32> to vector<8x128xf32>
    %208 = arith.addf %205, %207 : vector<8x128xf32>
    %cst_67 = arith.constant 5.000000e-01 : f32
    %209 = vector.broadcast %cst_67 : f32 to vector<8x128xf32>
    %210 = arith.mulf %209, %208 : vector<8x128xf32>
    %cst_68 = arith.constant 4.471500e-02 : f32
    %211 = vector.broadcast %cst_68 : f32 to vector<8x128xf32>
    %212 = arith.mulf %211, %208 : vector<8x128xf32>
    %213 = arith.mulf %212, %208 : vector<8x128xf32>
    %214 = arith.mulf %213, %208 : vector<8x128xf32>
    %215 = arith.addf %208, %214 : vector<8x128xf32>
    %cst_69 = arith.constant 0.797884583 : f32
    %216 = vector.broadcast %cst_69 : f32 to vector<8x128xf32>
    %217 = arith.mulf %216, %215 : vector<8x128xf32>
    %218 = math.tanh %217 : vector<8x128xf32>
    %cst_70 = arith.constant 1.000000e+00 : f32
    %219 = vector.broadcast %cst_70 : f32 to vector<8x128xf32>
    %220 = arith.addf %219, %218 : vector<8x128xf32>
    %221 = arith.mulf %210, %220 : vector<8x128xf32>
    %222 = arith.addf %181, %221 : vector<8x128xf32>
    %c1_71 = arith.constant 1 : index
    %c0_72 = arith.constant 0 : index
    %c0_73 = arith.constant 0 : index
    %223 = vector.load %arg4[%c1_71, %c0_72, %c0_73] : memref<4x16x128xf32, #tpu.memory_space<vmem>>, vector<1x16x128xf32>
    %224 = vector.shape_cast %223 : vector<1x16x128xf32> to vector<16x128xf32>
    %225 = vector.extract_strided_slice %224 {offsets = [0, 0], sizes = [1, 128], strides = [1, 1]} : vector<16x128xf32> to vector<1x128xf32>
    %226 = vector.extract_strided_slice %224 {offsets = [1, 0], sizes = [1, 128], strides = [1, 1]} : vector<16x128xf32> to vector<1x128xf32>
    %cst_74 = arith.constant dense<0.000000e+00> : vector<8xf32>
    %227 = vector.multi_reduction <add>, %222, %cst_74 [1] : vector<8x128xf32> to vector<8xf32>
    %228 = vector.shape_cast %227 : vector<8xf32> to vector<8x1xf32>
    %cst_75 = arith.constant 3.125000e-02 : f32
    %229 = vector.broadcast %cst_75 : f32 to vector<8x1xf32>
    %230 = arith.mulf %228, %229 : vector<8x1xf32>
    %231 = arith.mulf %222, %222 : vector<8x128xf32>
    %cst_76 = arith.constant dense<0.000000e+00> : vector<8xf32>
    %232 = vector.multi_reduction <add>, %231, %cst_76 [1] : vector<8x128xf32> to vector<8xf32>
    %233 = vector.shape_cast %232 : vector<8xf32> to vector<8x1xf32>
    %cst_77 = arith.constant 3.125000e-02 : f32
    %234 = vector.broadcast %cst_77 : f32 to vector<8x1xf32>
    %235 = arith.mulf %233, %234 : vector<8x1xf32>
    %236 = arith.mulf %230, %230 : vector<8x1xf32>
    %237 = arith.subf %235, %236 : vector<8x1xf32>
    %238 = vector.broadcast %230 : vector<8x1xf32> to vector<8x128xf32>
    %239 = arith.subf %222, %238 : vector<8x128xf32>
    %cst_78 = arith.constant 9.99999974E-6 : f32
    %240 = vector.broadcast %cst_78 : f32 to vector<8x1xf32>
    %241 = arith.addf %237, %240 : vector<8x1xf32>
    %242 = math.rsqrt %241 : vector<8x1xf32>
    %243 = vector.broadcast %242 : vector<8x1xf32> to vector<8x128xf32>
    %244 = arith.mulf %239, %243 : vector<8x128xf32>
    %245 = vector.broadcast %225 : vector<1x128xf32> to vector<8x128xf32>
    %246 = arith.mulf %244, %245 : vector<8x128xf32>
    %247 = vector.broadcast %226 : vector<1x128xf32> to vector<8x128xf32>
    %248 = arith.addf %246, %247 : vector<8x128xf32>
    %c6 = arith.constant 6 : index
    %c0_79 = arith.constant 0 : index
    %c0_80 = arith.constant 0 : index
    %249 = vector.load %arg3[%c6, %c0_79, %c0_80] : memref<24x128x128xbf16, #tpu.memory_space<vmem>>, vector<1x128x128xbf16>
    %250 = vector.shape_cast %249 : vector<1x128x128xbf16> to vector<128x128xbf16>
    %251 = arith.truncf %248 : vector<8x128xf32> to vector<8x128xbf16>
    %cst_81 = arith.constant dense<0.000000e+00> : vector<8x128xf32>
    %252 = tpu.matmul %251, %250, %cst_81 {dimension_numbers = #tpu.dot_dimension_numbers<[1], [0], [0], [1], [0, 0, 1, 1], [], []>} : vector<8x128xbf16>, vector<128x128xbf16>, vector<8x128xf32> -> vector<8x128xf32>
    %253 = vector.extract_strided_slice %224 {offsets = [6, 0], sizes = [1, 128], strides = [1, 1]} : vector<16x128xf32> to vector<1x128xf32>
    %254 = vector.broadcast %253 : vector<1x128xf32> to vector<8x128xf32>
    %255 = arith.addf %252, %254 : vector<8x128xf32>
    %c7 = arith.constant 7 : index
    %c0_82 = arith.constant 0 : index
    %c0_83 = arith.constant 0 : index
    %256 = vector.load %arg3[%c7, %c0_82, %c0_83] : memref<24x128x128xbf16, #tpu.memory_space<vmem>>, vector<1x128x128xbf16>
    %257 = vector.shape_cast %256 : vector<1x128x128xbf16> to vector<128x128xbf16>
    %258 = arith.truncf %248 : vector<8x128xf32> to vector<8x128xbf16>
    %cst_84 = arith.constant dense<0.000000e+00> : vector<8x128xf32>
    %259 = tpu.matmul %258, %257, %cst_84 {dimension_numbers = #tpu.dot_dimension_numbers<[1], [0], [0], [1], [0, 0, 1, 1], [], []>} : vector<8x128xbf16>, vector<128x128xbf16>, vector<8x128xf32> -> vector<8x128xf32>
    %260 = vector.extract_strided_slice %224 {offsets = [7, 0], sizes = [1, 128], strides = [1, 1]} : vector<16x128xf32> to vector<1x128xf32>
    %261 = vector.broadcast %260 : vector<1x128xf32> to vector<8x128xf32>
    %262 = arith.addf %259, %261 : vector<8x128xf32>
    %c8 = arith.constant 8 : index
    %c0_85 = arith.constant 0 : index
    %c0_86 = arith.constant 0 : index
    %263 = vector.load %arg3[%c8, %c0_85, %c0_86] : memref<24x128x128xbf16, #tpu.memory_space<vmem>>, vector<1x128x128xbf16>
    %264 = vector.shape_cast %263 : vector<1x128x128xbf16> to vector<128x128xbf16>
    %265 = arith.truncf %248 : vector<8x128xf32> to vector<8x128xbf16>
    %cst_87 = arith.constant dense<0.000000e+00> : vector<8x128xf32>
    %266 = tpu.matmul %265, %264, %cst_87 {dimension_numbers = #tpu.dot_dimension_numbers<[1], [0], [0], [1], [0, 0, 1, 1], [], []>} : vector<8x128xbf16>, vector<128x128xbf16>, vector<8x128xf32> -> vector<8x128xf32>
    %267 = vector.extract_strided_slice %224 {offsets = [8, 0], sizes = [1, 128], strides = [1, 1]} : vector<16x128xf32> to vector<1x128xf32>
    %268 = vector.broadcast %267 : vector<1x128xf32> to vector<8x128xf32>
    %269 = arith.addf %266, %268 : vector<8x128xf32>
    %cst_88 = arith.constant 0.000000e+00 : f32
    %270 = vector.broadcast %cst_88 : f32 to vector<8x128xf32>
    %271 = vector.broadcast %83 : vector<1x128xf32> to vector<8x128xf32>
    %272 = arith.mulf %255, %271 : vector<8x128xf32>
    %273 = arith.truncf %272 : vector<8x128xf32> to vector<8x128xbf16>
    %274 = arith.truncf %262 : vector<8x128xf32> to vector<8x128xbf16>
    %cst_89 = arith.constant dense<0.000000e+00> : vector<8x8xf32>
    %275 = tpu.matmul %273, %274, %cst_89 {dimension_numbers = #tpu.dot_dimension_numbers<[1], [1], [0], [0], [0, 0, 1, 0], [], []>} : vector<8x128xbf16>, vector<8x128xbf16>, vector<8x8xf32> -> vector<8x8xf32>
    %cst_90 = arith.constant dense<0xFF800000> : vector<8xf32>
    %276 = vector.multi_reduction <maximumf>, %275, %cst_90 [1] : vector<8x8xf32> to vector<8xf32>
    %277 = vector.shape_cast %276 : vector<8xf32> to vector<8x1xf32>
    %278 = vector.broadcast %277 : vector<8x1xf32> to vector<8x8xf32>
    %279 = arith.subf %275, %278 : vector<8x8xf32>
    %280 = math.exp %279 : vector<8x8xf32>
    %cst_91 = arith.constant dense<0.000000e+00> : vector<8xf32>
    %281 = vector.multi_reduction <add>, %280, %cst_91 [1] : vector<8x8xf32> to vector<8xf32>
    %282 = vector.shape_cast %281 : vector<8xf32> to vector<8x1xf32>
    %283 = tpu.reciprocal %282 {approx = true} : vector<8x1xf32> -> vector<8x1xf32>
    %284 = vector.broadcast %283 : vector<8x1xf32> to vector<8x8xf32>
    %285 = arith.mulf %280, %284 : vector<8x8xf32>
    %286 = arith.truncf %285 : vector<8x8xf32> to vector<8x8xbf16>
    %287 = arith.truncf %269 : vector<8x128xf32> to vector<8x128xbf16>
    %cst_92 = arith.constant dense<0.000000e+00> : vector<8x128xf32>
    %288 = tpu.matmul %286, %287, %cst_92 {dimension_numbers = #tpu.dot_dimension_numbers<[1], [0], [0], [1], [0, 0, 1, 1], [], []>} : vector<8x8xbf16>, vector<8x128xbf16>, vector<8x128xf32> -> vector<8x128xf32>
    %289 = vector.broadcast %109 : vector<1x128xf32> to vector<8x128xf32>
    %290 = arith.mulf %288, %289 : vector<8x128xf32>
    %291 = arith.addf %270, %290 : vector<8x128xf32>
    %292 = vector.broadcast %120 : vector<1x128xf32> to vector<8x128xf32>
    %293 = arith.mulf %255, %292 : vector<8x128xf32>
    %294 = arith.truncf %293 : vector<8x128xf32> to vector<8x128xbf16>
    %295 = arith.truncf %262 : vector<8x128xf32> to vector<8x128xbf16>
    %cst_93 = arith.constant dense<0.000000e+00> : vector<8x8xf32>
    %296 = tpu.matmul %294, %295, %cst_93 {dimension_numbers = #tpu.dot_dimension_numbers<[1], [1], [0], [0], [0, 0, 1, 0], [], []>} : vector<8x128xbf16>, vector<8x128xbf16>, vector<8x8xf32> -> vector<8x8xf32>
    %cst_94 = arith.constant dense<0xFF800000> : vector<8xf32>
    %297 = vector.multi_reduction <maximumf>, %296, %cst_94 [1] : vector<8x8xf32> to vector<8xf32>
    %298 = vector.shape_cast %297 : vector<8xf32> to vector<8x1xf32>
    %299 = vector.broadcast %298 : vector<8x1xf32> to vector<8x8xf32>
    %300 = arith.subf %296, %299 : vector<8x8xf32>
    %301 = math.exp %300 : vector<8x8xf32>
    %cst_95 = arith.constant dense<0.000000e+00> : vector<8xf32>
    %302 = vector.multi_reduction <add>, %301, %cst_95 [1] : vector<8x8xf32> to vector<8xf32>
    %303 = vector.shape_cast %302 : vector<8xf32> to vector<8x1xf32>
    %304 = tpu.reciprocal %303 {approx = true} : vector<8x1xf32> -> vector<8x1xf32>
    %305 = vector.broadcast %304 : vector<8x1xf32> to vector<8x8xf32>
    %306 = arith.mulf %301, %305 : vector<8x8xf32>
    %307 = arith.truncf %306 : vector<8x8xf32> to vector<8x8xbf16>
    %308 = arith.truncf %269 : vector<8x128xf32> to vector<8x128xbf16>
    %cst_96 = arith.constant dense<0.000000e+00> : vector<8x128xf32>
    %309 = tpu.matmul %307, %308, %cst_96 {dimension_numbers = #tpu.dot_dimension_numbers<[1], [0], [0], [1], [0, 0, 1, 1], [], []>} : vector<8x8xbf16>, vector<8x128xbf16>, vector<8x128xf32> -> vector<8x128xf32>
    %310 = vector.broadcast %146 : vector<1x128xf32> to vector<8x128xf32>
    %311 = arith.mulf %309, %310 : vector<8x128xf32>
    %312 = arith.addf %291, %311 : vector<8x128xf32>
    %c9 = arith.constant 9 : index
    %c0_97 = arith.constant 0 : index
    %c0_98 = arith.constant 0 : index
    %313 = vector.load %arg3[%c9, %c0_97, %c0_98] : memref<24x128x128xbf16, #tpu.memory_space<vmem>>, vector<1x128x128xbf16>
    %314 = vector.shape_cast %313 : vector<1x128x128xbf16> to vector<128x128xbf16>
    %315 = arith.truncf %312 : vector<8x128xf32> to vector<8x128xbf16>
    %cst_99 = arith.constant dense<0.000000e+00> : vector<8x128xf32>
    %316 = tpu.matmul %315, %314, %cst_99 {dimension_numbers = #tpu.dot_dimension_numbers<[1], [0], [0], [1], [0, 0, 1, 1], [], []>} : vector<8x128xbf16>, vector<128x128xbf16>, vector<8x128xf32> -> vector<8x128xf32>
    %317 = vector.extract_strided_slice %224 {offsets = [9, 0], sizes = [1, 128], strides = [1, 1]} : vector<16x128xf32> to vector<1x128xf32>
    %318 = vector.broadcast %317 : vector<1x128xf32> to vector<8x128xf32>
    %319 = arith.addf %316, %318 : vector<8x128xf32>
    %320 = arith.addf %248, %319 : vector<8x128xf32>
    %321 = vector.extract_strided_slice %224 {offsets = [4, 0], sizes = [1, 128], strides = [1, 1]} : vector<16x128xf32> to vector<1x128xf32>
    %322 = vector.extract_strided_slice %224 {offsets = [5, 0], sizes = [1, 128], strides = [1, 1]} : vector<16x128xf32> to vector<1x128xf32>
    %cst_100 = arith.constant dense<0.000000e+00> : vector<8xf32>
    %323 = vector.multi_reduction <add>, %320, %cst_100 [1] : vector<8x128xf32> to vector<8xf32>
    %324 = vector.shape_cast %323 : vector<8xf32> to vector<8x1xf32>
    %cst_101 = arith.constant 3.125000e-02 : f32
    %325 = vector.broadcast %cst_101 : f32 to vector<8x1xf32>
    %326 = arith.mulf %324, %325 : vector<8x1xf32>
    %327 = arith.mulf %320, %320 : vector<8x128xf32>
    %cst_102 = arith.constant dense<0.000000e+00> : vector<8xf32>
    %328 = vector.multi_reduction <add>, %327, %cst_102 [1] : vector<8x128xf32> to vector<8xf32>
    %329 = vector.shape_cast %328 : vector<8xf32> to vector<8x1xf32>
    %cst_103 = arith.constant 3.125000e-02 : f32
    %330 = vector.broadcast %cst_103 : f32 to vector<8x1xf32>
    %331 = arith.mulf %329, %330 : vector<8x1xf32>
    %332 = arith.mulf %326, %326 : vector<8x1xf32>
    %333 = arith.subf %331, %332 : vector<8x1xf32>
    %334 = vector.broadcast %326 : vector<8x1xf32> to vector<8x128xf32>
    %335 = arith.subf %320, %334 : vector<8x128xf32>
    %cst_104 = arith.constant 9.99999974E-6 : f32
    %336 = vector.broadcast %cst_104 : f32 to vector<8x1xf32>
    %337 = arith.addf %333, %336 : vector<8x1xf32>
    %338 = math.rsqrt %337 : vector<8x1xf32>
    %339 = vector.broadcast %338 : vector<8x1xf32> to vector<8x128xf32>
    %340 = arith.mulf %335, %339 : vector<8x128xf32>
    %341 = vector.broadcast %321 : vector<1x128xf32> to vector<8x128xf32>
    %342 = arith.mulf %340, %341 : vector<8x128xf32>
    %343 = vector.broadcast %322 : vector<1x128xf32> to vector<8x128xf32>
    %344 = arith.addf %342, %343 : vector<8x128xf32>
    %c10 = arith.constant 10 : index
    %c0_105 = arith.constant 0 : index
    %c0_106 = arith.constant 0 : index
    %345 = vector.load %arg3[%c10, %c0_105, %c0_106] : memref<24x128x128xbf16, #tpu.memory_space<vmem>>, vector<1x128x128xbf16>
    %346 = vector.shape_cast %345 : vector<1x128x128xbf16> to vector<128x128xbf16>
    %347 = arith.truncf %344 : vector<8x128xf32> to vector<8x128xbf16>
    %cst_107 = arith.constant dense<0.000000e+00> : vector<8x128xf32>
    %348 = tpu.matmul %347, %346, %cst_107 {dimension_numbers = #tpu.dot_dimension_numbers<[1], [0], [0], [1], [0, 0, 1, 1], [], []>} : vector<8x128xbf16>, vector<128x128xbf16>, vector<8x128xf32> -> vector<8x128xf32>
    %349 = vector.extract_strided_slice %224 {offsets = [10, 0], sizes = [1, 128], strides = [1, 1]} : vector<16x128xf32> to vector<1x128xf32>
    %350 = vector.broadcast %349 : vector<1x128xf32> to vector<8x128xf32>
    %351 = arith.addf %348, %350 : vector<8x128xf32>
    %cst_108 = arith.constant 5.000000e-01 : f32
    %352 = vector.broadcast %cst_108 : f32 to vector<8x128xf32>
    %353 = arith.mulf %352, %351 : vector<8x128xf32>
    %cst_109 = arith.constant 4.471500e-02 : f32
    %354 = vector.broadcast %cst_109 : f32 to vector<8x128xf32>
    %355 = arith.mulf %354, %351 : vector<8x128xf32>
    %356 = arith.mulf %355, %351 : vector<8x128xf32>
    %357 = arith.mulf %356, %351 : vector<8x128xf32>
    %358 = arith.addf %351, %357 : vector<8x128xf32>
    %cst_110 = arith.constant 0.797884583 : f32
    %359 = vector.broadcast %cst_110 : f32 to vector<8x128xf32>
    %360 = arith.mulf %359, %358 : vector<8x128xf32>
    %361 = math.tanh %360 : vector<8x128xf32>
    %cst_111 = arith.constant 1.000000e+00 : f32
    %362 = vector.broadcast %cst_111 : f32 to vector<8x128xf32>
    %363 = arith.addf %362, %361 : vector<8x128xf32>
    %364 = arith.mulf %353, %363 : vector<8x128xf32>
    %c11 = arith.constant 11 : index
    %c0_112 = arith.constant 0 : index
    %c0_113 = arith.constant 0 : index
    %365 = vector.load %arg3[%c11, %c0_112, %c0_113] : memref<24x128x128xbf16, #tpu.memory_space<vmem>>, vector<1x128x128xbf16>
    %366 = vector.shape_cast %365 : vector<1x128x128xbf16> to vector<128x128xbf16>
    %367 = arith.truncf %364 : vector<8x128xf32> to vector<8x128xbf16>
    %cst_114 = arith.constant dense<0.000000e+00> : vector<8x128xf32>
    %368 = tpu.matmul %367, %366, %cst_114 {dimension_numbers = #tpu.dot_dimension_numbers<[1], [0], [0], [1], [0, 0, 1, 1], [], []>} : vector<8x128xbf16>, vector<128x128xbf16>, vector<8x128xf32> -> vector<8x128xf32>
    %369 = vector.extract_strided_slice %224 {offsets = [11, 0], sizes = [1, 128], strides = [1, 1]} : vector<16x128xf32> to vector<1x128xf32>
    %370 = vector.broadcast %369 : vector<1x128xf32> to vector<8x128xf32>
    %371 = arith.addf %368, %370 : vector<8x128xf32>
    %cst_115 = arith.constant 5.000000e-01 : f32
    %372 = vector.broadcast %cst_115 : f32 to vector<8x128xf32>
    %373 = arith.mulf %372, %371 : vector<8x128xf32>
    %cst_116 = arith.constant 4.471500e-02 : f32
    %374 = vector.broadcast %cst_116 : f32 to vector<8x128xf32>
    %375 = arith.mulf %374, %371 : vector<8x128xf32>
    %376 = arith.mulf %375, %371 : vector<8x128xf32>
    %377 = arith.mulf %376, %371 : vector<8x128xf32>
    %378 = arith.addf %371, %377 : vector<8x128xf32>
    %cst_117 = arith.constant 0.797884583 : f32
    %379 = vector.broadcast %cst_117 : f32 to vector<8x128xf32>
    %380 = arith.mulf %379, %378 : vector<8x128xf32>
    %381 = math.tanh %380 : vector<8x128xf32>
    %cst_118 = arith.constant 1.000000e+00 : f32
    %382 = vector.broadcast %cst_118 : f32 to vector<8x128xf32>
    %383 = arith.addf %382, %381 : vector<8x128xf32>
    %384 = arith.mulf %373, %383 : vector<8x128xf32>
    %385 = arith.addf %344, %384 : vector<8x128xf32>
    %c2_119 = arith.constant 2 : index
    %c0_120 = arith.constant 0 : index
    %c0_121 = arith.constant 0 : index
    %386 = vector.load %arg4[%c2_119, %c0_120, %c0_121] : memref<4x16x128xf32, #tpu.memory_space<vmem>>, vector<1x16x128xf32>
    %387 = vector.shape_cast %386 : vector<1x16x128xf32> to vector<16x128xf32>
    %388 = vector.extract_strided_slice %387 {offsets = [0, 0], sizes = [1, 128], strides = [1, 1]} : vector<16x128xf32> to vector<1x128xf32>
    %389 = vector.extract_strided_slice %387 {offsets = [1, 0], sizes = [1, 128], strides = [1, 1]} : vector<16x128xf32> to vector<1x128xf32>
    %cst_122 = arith.constant dense<0.000000e+00> : vector<8xf32>
    %390 = vector.multi_reduction <add>, %385, %cst_122 [1] : vector<8x128xf32> to vector<8xf32>
    %391 = vector.shape_cast %390 : vector<8xf32> to vector<8x1xf32>
    %cst_123 = arith.constant 3.125000e-02 : f32
    %392 = vector.broadcast %cst_123 : f32 to vector<8x1xf32>
    %393 = arith.mulf %391, %392 : vector<8x1xf32>
    %394 = arith.mulf %385, %385 : vector<8x128xf32>
    %cst_124 = arith.constant dense<0.000000e+00> : vector<8xf32>
    %395 = vector.multi_reduction <add>, %394, %cst_124 [1] : vector<8x128xf32> to vector<8xf32>
    %396 = vector.shape_cast %395 : vector<8xf32> to vector<8x1xf32>
    %cst_125 = arith.constant 3.125000e-02 : f32
    %397 = vector.broadcast %cst_125 : f32 to vector<8x1xf32>
    %398 = arith.mulf %396, %397 : vector<8x1xf32>
    %399 = arith.mulf %393, %393 : vector<8x1xf32>
    %400 = arith.subf %398, %399 : vector<8x1xf32>
    %401 = vector.broadcast %393 : vector<8x1xf32> to vector<8x128xf32>
    %402 = arith.subf %385, %401 : vector<8x128xf32>
    %cst_126 = arith.constant 9.99999974E-6 : f32
    %403 = vector.broadcast %cst_126 : f32 to vector<8x1xf32>
    %404 = arith.addf %400, %403 : vector<8x1xf32>
    %405 = math.rsqrt %404 : vector<8x1xf32>
    %406 = vector.broadcast %405 : vector<8x1xf32> to vector<8x128xf32>
    %407 = arith.mulf %402, %406 : vector<8x128xf32>
    %408 = vector.broadcast %388 : vector<1x128xf32> to vector<8x128xf32>
    %409 = arith.mulf %407, %408 : vector<8x128xf32>
    %410 = vector.broadcast %389 : vector<1x128xf32> to vector<8x128xf32>
    %411 = arith.addf %409, %410 : vector<8x128xf32>
    %c12 = arith.constant 12 : index
    %c0_127 = arith.constant 0 : index
    %c0_128 = arith.constant 0 : index
    %412 = vector.load %arg3[%c12, %c0_127, %c0_128] : memref<24x128x128xbf16, #tpu.memory_space<vmem>>, vector<1x128x128xbf16>
    %413 = vector.shape_cast %412 : vector<1x128x128xbf16> to vector<128x128xbf16>
    %414 = arith.truncf %411 : vector<8x128xf32> to vector<8x128xbf16>
    %cst_129 = arith.constant dense<0.000000e+00> : vector<8x128xf32>
    %415 = tpu.matmul %414, %413, %cst_129 {dimension_numbers = #tpu.dot_dimension_numbers<[1], [0], [0], [1], [0, 0, 1, 1], [], []>} : vector<8x128xbf16>, vector<128x128xbf16>, vector<8x128xf32> -> vector<8x128xf32>
    %416 = vector.extract_strided_slice %387 {offsets = [6, 0], sizes = [1, 128], strides = [1, 1]} : vector<16x128xf32> to vector<1x128xf32>
    %417 = vector.broadcast %416 : vector<1x128xf32> to vector<8x128xf32>
    %418 = arith.addf %415, %417 : vector<8x128xf32>
    %c13 = arith.constant 13 : index
    %c0_130 = arith.constant 0 : index
    %c0_131 = arith.constant 0 : index
    %419 = vector.load %arg3[%c13, %c0_130, %c0_131] : memref<24x128x128xbf16, #tpu.memory_space<vmem>>, vector<1x128x128xbf16>
    %420 = vector.shape_cast %419 : vector<1x128x128xbf16> to vector<128x128xbf16>
    %421 = arith.truncf %411 : vector<8x128xf32> to vector<8x128xbf16>
    %cst_132 = arith.constant dense<0.000000e+00> : vector<8x128xf32>
    %422 = tpu.matmul %421, %420, %cst_132 {dimension_numbers = #tpu.dot_dimension_numbers<[1], [0], [0], [1], [0, 0, 1, 1], [], []>} : vector<8x128xbf16>, vector<128x128xbf16>, vector<8x128xf32> -> vector<8x128xf32>
    %423 = vector.extract_strided_slice %387 {offsets = [7, 0], sizes = [1, 128], strides = [1, 1]} : vector<16x128xf32> to vector<1x128xf32>
    %424 = vector.broadcast %423 : vector<1x128xf32> to vector<8x128xf32>
    %425 = arith.addf %422, %424 : vector<8x128xf32>
    %c14 = arith.constant 14 : index
    %c0_133 = arith.constant 0 : index
    %c0_134 = arith.constant 0 : index
    %426 = vector.load %arg3[%c14, %c0_133, %c0_134] : memref<24x128x128xbf16, #tpu.memory_space<vmem>>, vector<1x128x128xbf16>
    %427 = vector.shape_cast %426 : vector<1x128x128xbf16> to vector<128x128xbf16>
    %428 = arith.truncf %411 : vector<8x128xf32> to vector<8x128xbf16>
    %cst_135 = arith.constant dense<0.000000e+00> : vector<8x128xf32>
    %429 = tpu.matmul %428, %427, %cst_135 {dimension_numbers = #tpu.dot_dimension_numbers<[1], [0], [0], [1], [0, 0, 1, 1], [], []>} : vector<8x128xbf16>, vector<128x128xbf16>, vector<8x128xf32> -> vector<8x128xf32>
    %430 = vector.extract_strided_slice %387 {offsets = [8, 0], sizes = [1, 128], strides = [1, 1]} : vector<16x128xf32> to vector<1x128xf32>
    %431 = vector.broadcast %430 : vector<1x128xf32> to vector<8x128xf32>
    %432 = arith.addf %429, %431 : vector<8x128xf32>
    %cst_136 = arith.constant 0.000000e+00 : f32
    %433 = vector.broadcast %cst_136 : f32 to vector<8x128xf32>
    %434 = vector.broadcast %83 : vector<1x128xf32> to vector<8x128xf32>
    %435 = arith.mulf %418, %434 : vector<8x128xf32>
    %436 = arith.truncf %435 : vector<8x128xf32> to vector<8x128xbf16>
    %437 = arith.truncf %425 : vector<8x128xf32> to vector<8x128xbf16>
    %cst_137 = arith.constant dense<0.000000e+00> : vector<8x8xf32>
    %438 = tpu.matmul %436, %437, %cst_137 {dimension_numbers = #tpu.dot_dimension_numbers<[1], [1], [0], [0], [0, 0, 1, 0], [], []>} : vector<8x128xbf16>, vector<8x128xbf16>, vector<8x8xf32> -> vector<8x8xf32>
    %cst_138 = arith.constant dense<0xFF800000> : vector<8xf32>
    %439 = vector.multi_reduction <maximumf>, %438, %cst_138 [1] : vector<8x8xf32> to vector<8xf32>
    %440 = vector.shape_cast %439 : vector<8xf32> to vector<8x1xf32>
    %441 = vector.broadcast %440 : vector<8x1xf32> to vector<8x8xf32>
    %442 = arith.subf %438, %441 : vector<8x8xf32>
    %443 = math.exp %442 : vector<8x8xf32>
    %cst_139 = arith.constant dense<0.000000e+00> : vector<8xf32>
    %444 = vector.multi_reduction <add>, %443, %cst_139 [1] : vector<8x8xf32> to vector<8xf32>
    %445 = vector.shape_cast %444 : vector<8xf32> to vector<8x1xf32>
    %446 = tpu.reciprocal %445 {approx = true} : vector<8x1xf32> -> vector<8x1xf32>
    %447 = vector.broadcast %446 : vector<8x1xf32> to vector<8x8xf32>
    %448 = arith.mulf %443, %447 : vector<8x8xf32>
    %449 = arith.truncf %448 : vector<8x8xf32> to vector<8x8xbf16>
    %450 = arith.truncf %432 : vector<8x128xf32> to vector<8x128xbf16>
    %cst_140 = arith.constant dense<0.000000e+00> : vector<8x128xf32>
    %451 = tpu.matmul %449, %450, %cst_140 {dimension_numbers = #tpu.dot_dimension_numbers<[1], [0], [0], [1], [0, 0, 1, 1], [], []>} : vector<8x8xbf16>, vector<8x128xbf16>, vector<8x128xf32> -> vector<8x128xf32>
    %452 = vector.broadcast %109 : vector<1x128xf32> to vector<8x128xf32>
    %453 = arith.mulf %451, %452 : vector<8x128xf32>
    %454 = arith.addf %433, %453 : vector<8x128xf32>
    %455 = vector.broadcast %120 : vector<1x128xf32> to vector<8x128xf32>
    %456 = arith.mulf %418, %455 : vector<8x128xf32>
    %457 = arith.truncf %456 : vector<8x128xf32> to vector<8x128xbf16>
    %458 = arith.truncf %425 : vector<8x128xf32> to vector<8x128xbf16>
    %cst_141 = arith.constant dense<0.000000e+00> : vector<8x8xf32>
    %459 = tpu.matmul %457, %458, %cst_141 {dimension_numbers = #tpu.dot_dimension_numbers<[1], [1], [0], [0], [0, 0, 1, 0], [], []>} : vector<8x128xbf16>, vector<8x128xbf16>, vector<8x8xf32> -> vector<8x8xf32>
    %cst_142 = arith.constant dense<0xFF800000> : vector<8xf32>
    %460 = vector.multi_reduction <maximumf>, %459, %cst_142 [1] : vector<8x8xf32> to vector<8xf32>
    %461 = vector.shape_cast %460 : vector<8xf32> to vector<8x1xf32>
    %462 = vector.broadcast %461 : vector<8x1xf32> to vector<8x8xf32>
    %463 = arith.subf %459, %462 : vector<8x8xf32>
    %464 = math.exp %463 : vector<8x8xf32>
    %cst_143 = arith.constant dense<0.000000e+00> : vector<8xf32>
    %465 = vector.multi_reduction <add>, %464, %cst_143 [1] : vector<8x8xf32> to vector<8xf32>
    %466 = vector.shape_cast %465 : vector<8xf32> to vector<8x1xf32>
    %467 = tpu.reciprocal %466 {approx = true} : vector<8x1xf32> -> vector<8x1xf32>
    %468 = vector.broadcast %467 : vector<8x1xf32> to vector<8x8xf32>
    %469 = arith.mulf %464, %468 : vector<8x8xf32>
    %470 = arith.truncf %469 : vector<8x8xf32> to vector<8x8xbf16>
    %471 = arith.truncf %432 : vector<8x128xf32> to vector<8x128xbf16>
    %cst_144 = arith.constant dense<0.000000e+00> : vector<8x128xf32>
    %472 = tpu.matmul %470, %471, %cst_144 {dimension_numbers = #tpu.dot_dimension_numbers<[1], [0], [0], [1], [0, 0, 1, 1], [], []>} : vector<8x8xbf16>, vector<8x128xbf16>, vector<8x128xf32> -> vector<8x128xf32>
    %473 = vector.broadcast %146 : vector<1x128xf32> to vector<8x128xf32>
    %474 = arith.mulf %472, %473 : vector<8x128xf32>
    %475 = arith.addf %454, %474 : vector<8x128xf32>
    %c15 = arith.constant 15 : index
    %c0_145 = arith.constant 0 : index
    %c0_146 = arith.constant 0 : index
    %476 = vector.load %arg3[%c15, %c0_145, %c0_146] : memref<24x128x128xbf16, #tpu.memory_space<vmem>>, vector<1x128x128xbf16>
    %477 = vector.shape_cast %476 : vector<1x128x128xbf16> to vector<128x128xbf16>
    %478 = arith.truncf %475 : vector<8x128xf32> to vector<8x128xbf16>
    %cst_147 = arith.constant dense<0.000000e+00> : vector<8x128xf32>
    %479 = tpu.matmul %478, %477, %cst_147 {dimension_numbers = #tpu.dot_dimension_numbers<[1], [0], [0], [1], [0, 0, 1, 1], [], []>} : vector<8x128xbf16>, vector<128x128xbf16>, vector<8x128xf32> -> vector<8x128xf32>
    %480 = vector.extract_strided_slice %387 {offsets = [9, 0], sizes = [1, 128], strides = [1, 1]} : vector<16x128xf32> to vector<1x128xf32>
    %481 = vector.broadcast %480 : vector<1x128xf32> to vector<8x128xf32>
    %482 = arith.addf %479, %481 : vector<8x128xf32>
    %483 = arith.addf %411, %482 : vector<8x128xf32>
    %484 = vector.extract_strided_slice %387 {offsets = [4, 0], sizes = [1, 128], strides = [1, 1]} : vector<16x128xf32> to vector<1x128xf32>
    %485 = vector.extract_strided_slice %387 {offsets = [5, 0], sizes = [1, 128], strides = [1, 1]} : vector<16x128xf32> to vector<1x128xf32>
    %cst_148 = arith.constant dense<0.000000e+00> : vector<8xf32>
    %486 = vector.multi_reduction <add>, %483, %cst_148 [1] : vector<8x128xf32> to vector<8xf32>
    %487 = vector.shape_cast %486 : vector<8xf32> to vector<8x1xf32>
    %cst_149 = arith.constant 3.125000e-02 : f32
    %488 = vector.broadcast %cst_149 : f32 to vector<8x1xf32>
    %489 = arith.mulf %487, %488 : vector<8x1xf32>
    %490 = arith.mulf %483, %483 : vector<8x128xf32>
    %cst_150 = arith.constant dense<0.000000e+00> : vector<8xf32>
    %491 = vector.multi_reduction <add>, %490, %cst_150 [1] : vector<8x128xf32> to vector<8xf32>
    %492 = vector.shape_cast %491 : vector<8xf32> to vector<8x1xf32>
    %cst_151 = arith.constant 3.125000e-02 : f32
    %493 = vector.broadcast %cst_151 : f32 to vector<8x1xf32>
    %494 = arith.mulf %492, %493 : vector<8x1xf32>
    %495 = arith.mulf %489, %489 : vector<8x1xf32>
    %496 = arith.subf %494, %495 : vector<8x1xf32>
    %497 = vector.broadcast %489 : vector<8x1xf32> to vector<8x128xf32>
    %498 = arith.subf %483, %497 : vector<8x128xf32>
    %cst_152 = arith.constant 9.99999974E-6 : f32
    %499 = vector.broadcast %cst_152 : f32 to vector<8x1xf32>
    %500 = arith.addf %496, %499 : vector<8x1xf32>
    %501 = math.rsqrt %500 : vector<8x1xf32>
    %502 = vector.broadcast %501 : vector<8x1xf32> to vector<8x128xf32>
    %503 = arith.mulf %498, %502 : vector<8x128xf32>
    %504 = vector.broadcast %484 : vector<1x128xf32> to vector<8x128xf32>
    %505 = arith.mulf %503, %504 : vector<8x128xf32>
    %506 = vector.broadcast %485 : vector<1x128xf32> to vector<8x128xf32>
    %507 = arith.addf %505, %506 : vector<8x128xf32>
    %c16 = arith.constant 16 : index
    %c0_153 = arith.constant 0 : index
    %c0_154 = arith.constant 0 : index
    %508 = vector.load %arg3[%c16, %c0_153, %c0_154] : memref<24x128x128xbf16, #tpu.memory_space<vmem>>, vector<1x128x128xbf16>
    %509 = vector.shape_cast %508 : vector<1x128x128xbf16> to vector<128x128xbf16>
    %510 = arith.truncf %507 : vector<8x128xf32> to vector<8x128xbf16>
    %cst_155 = arith.constant dense<0.000000e+00> : vector<8x128xf32>
    %511 = tpu.matmul %510, %509, %cst_155 {dimension_numbers = #tpu.dot_dimension_numbers<[1], [0], [0], [1], [0, 0, 1, 1], [], []>} : vector<8x128xbf16>, vector<128x128xbf16>, vector<8x128xf32> -> vector<8x128xf32>
    %512 = vector.extract_strided_slice %387 {offsets = [10, 0], sizes = [1, 128], strides = [1, 1]} : vector<16x128xf32> to vector<1x128xf32>
    %513 = vector.broadcast %512 : vector<1x128xf32> to vector<8x128xf32>
    %514 = arith.addf %511, %513 : vector<8x128xf32>
    %cst_156 = arith.constant 5.000000e-01 : f32
    %515 = vector.broadcast %cst_156 : f32 to vector<8x128xf32>
    %516 = arith.mulf %515, %514 : vector<8x128xf32>
    %cst_157 = arith.constant 4.471500e-02 : f32
    %517 = vector.broadcast %cst_157 : f32 to vector<8x128xf32>
    %518 = arith.mulf %517, %514 : vector<8x128xf32>
    %519 = arith.mulf %518, %514 : vector<8x128xf32>
    %520 = arith.mulf %519, %514 : vector<8x128xf32>
    %521 = arith.addf %514, %520 : vector<8x128xf32>
    %cst_158 = arith.constant 0.797884583 : f32
    %522 = vector.broadcast %cst_158 : f32 to vector<8x128xf32>
    %523 = arith.mulf %522, %521 : vector<8x128xf32>
    %524 = math.tanh %523 : vector<8x128xf32>
    %cst_159 = arith.constant 1.000000e+00 : f32
    %525 = vector.broadcast %cst_159 : f32 to vector<8x128xf32>
    %526 = arith.addf %525, %524 : vector<8x128xf32>
    %527 = arith.mulf %516, %526 : vector<8x128xf32>
    %c17 = arith.constant 17 : index
    %c0_160 = arith.constant 0 : index
    %c0_161 = arith.constant 0 : index
    %528 = vector.load %arg3[%c17, %c0_160, %c0_161] : memref<24x128x128xbf16, #tpu.memory_space<vmem>>, vector<1x128x128xbf16>
    %529 = vector.shape_cast %528 : vector<1x128x128xbf16> to vector<128x128xbf16>
    %530 = arith.truncf %527 : vector<8x128xf32> to vector<8x128xbf16>
    %cst_162 = arith.constant dense<0.000000e+00> : vector<8x128xf32>
    %531 = tpu.matmul %530, %529, %cst_162 {dimension_numbers = #tpu.dot_dimension_numbers<[1], [0], [0], [1], [0, 0, 1, 1], [], []>} : vector<8x128xbf16>, vector<128x128xbf16>, vector<8x128xf32> -> vector<8x128xf32>
    %532 = vector.extract_strided_slice %387 {offsets = [11, 0], sizes = [1, 128], strides = [1, 1]} : vector<16x128xf32> to vector<1x128xf32>
    %533 = vector.broadcast %532 : vector<1x128xf32> to vector<8x128xf32>
    %534 = arith.addf %531, %533 : vector<8x128xf32>
    %cst_163 = arith.constant 5.000000e-01 : f32
    %535 = vector.broadcast %cst_163 : f32 to vector<8x128xf32>
    %536 = arith.mulf %535, %534 : vector<8x128xf32>
    %cst_164 = arith.constant 4.471500e-02 : f32
    %537 = vector.broadcast %cst_164 : f32 to vector<8x128xf32>
    %538 = arith.mulf %537, %534 : vector<8x128xf32>
    %539 = arith.mulf %538, %534 : vector<8x128xf32>
    %540 = arith.mulf %539, %534 : vector<8x128xf32>
    %541 = arith.addf %534, %540 : vector<8x128xf32>
    %cst_165 = arith.constant 0.797884583 : f32
    %542 = vector.broadcast %cst_165 : f32 to vector<8x128xf32>
    %543 = arith.mulf %542, %541 : vector<8x128xf32>
    %544 = math.tanh %543 : vector<8x128xf32>
    %cst_166 = arith.constant 1.000000e+00 : f32
    %545 = vector.broadcast %cst_166 : f32 to vector<8x128xf32>
    %546 = arith.addf %545, %544 : vector<8x128xf32>
    %547 = arith.mulf %536, %546 : vector<8x128xf32>
    %548 = arith.addf %507, %547 : vector<8x128xf32>
    %c0_167 = arith.constant 0 : index
    %c0_168 = arith.constant 0 : index
    %c0_169 = arith.constant 0 : index
    %549 = vector.load %arg4[%c0_167, %c0_168, %c0_169] : memref<4x16x128xf32, #tpu.memory_space<vmem>>, vector<1x16x128xf32>
    %550 = vector.shape_cast %549 : vector<1x16x128xf32> to vector<16x128xf32>
    %551 = vector.extract_strided_slice %550 {offsets = [0, 0], sizes = [1, 128], strides = [1, 1]} : vector<16x128xf32> to vector<1x128xf32>
    %552 = vector.extract_strided_slice %550 {offsets = [1, 0], sizes = [1, 128], strides = [1, 1]} : vector<16x128xf32> to vector<1x128xf32>
    %cst_170 = arith.constant dense<0.000000e+00> : vector<8xf32>
    %553 = vector.multi_reduction <add>, %548, %cst_170 [1] : vector<8x128xf32> to vector<8xf32>
    %554 = vector.shape_cast %553 : vector<8xf32> to vector<8x1xf32>
    %cst_171 = arith.constant 3.125000e-02 : f32
    %555 = vector.broadcast %cst_171 : f32 to vector<8x1xf32>
    %556 = arith.mulf %554, %555 : vector<8x1xf32>
    %557 = arith.mulf %548, %548 : vector<8x128xf32>
    %cst_172 = arith.constant dense<0.000000e+00> : vector<8xf32>
    %558 = vector.multi_reduction <add>, %557, %cst_172 [1] : vector<8x128xf32> to vector<8xf32>
    %559 = vector.shape_cast %558 : vector<8xf32> to vector<8x1xf32>
    %cst_173 = arith.constant 3.125000e-02 : f32
    %560 = vector.broadcast %cst_173 : f32 to vector<8x1xf32>
    %561 = arith.mulf %559, %560 : vector<8x1xf32>
    %562 = arith.mulf %556, %556 : vector<8x1xf32>
    %563 = arith.subf %561, %562 : vector<8x1xf32>
    %564 = vector.broadcast %556 : vector<8x1xf32> to vector<8x128xf32>
    %565 = arith.subf %548, %564 : vector<8x128xf32>
    %cst_174 = arith.constant 9.99999974E-6 : f32
    %566 = vector.broadcast %cst_174 : f32 to vector<8x1xf32>
    %567 = arith.addf %563, %566 : vector<8x1xf32>
    %568 = math.rsqrt %567 : vector<8x1xf32>
    %569 = vector.broadcast %568 : vector<8x1xf32> to vector<8x128xf32>
    %570 = arith.mulf %565, %569 : vector<8x128xf32>
    %571 = vector.broadcast %551 : vector<1x128xf32> to vector<8x128xf32>
    %572 = arith.mulf %570, %571 : vector<8x128xf32>
    %573 = vector.broadcast %552 : vector<1x128xf32> to vector<8x128xf32>
    %574 = arith.addf %572, %573 : vector<8x128xf32>
    %575 = vector.extract_strided_slice %550 {offsets = [2, 0], sizes = [1, 128], strides = [1, 1]} : vector<16x128xf32> to vector<1x128xf32>
    %576 = vector.extract_strided_slice %550 {offsets = [3, 0], sizes = [1, 128], strides = [1, 1]} : vector<16x128xf32> to vector<1x128xf32>
    %cst_175 = arith.constant dense<0.000000e+00> : vector<16xf32>
    %577 = vector.multi_reduction <add>, %0, %cst_175 [1] : vector<16x128xf32> to vector<16xf32>
    %578 = vector.shape_cast %577 : vector<16xf32> to vector<16x1xf32>
    %cst_176 = arith.constant 6.250000e-02 : f32
    %579 = vector.broadcast %cst_176 : f32 to vector<16x1xf32>
    %580 = arith.mulf %578, %579 : vector<16x1xf32>
    %581 = arith.mulf %0, %0 : vector<16x128xf32>
    %cst_177 = arith.constant dense<0.000000e+00> : vector<16xf32>
    %582 = vector.multi_reduction <add>, %581, %cst_177 [1] : vector<16x128xf32> to vector<16xf32>
    %583 = vector.shape_cast %582 : vector<16xf32> to vector<16x1xf32>
    %cst_178 = arith.constant 6.250000e-02 : f32
    %584 = vector.broadcast %cst_178 : f32 to vector<16x1xf32>
    %585 = arith.mulf %583, %584 : vector<16x1xf32>
    %586 = arith.mulf %580, %580 : vector<16x1xf32>
    %587 = arith.subf %585, %586 : vector<16x1xf32>
    %588 = vector.broadcast %580 : vector<16x1xf32> to vector<16x128xf32>
    %589 = arith.subf %0, %588 : vector<16x128xf32>
    %cst_179 = arith.constant 9.99999974E-6 : f32
    %590 = vector.broadcast %cst_179 : f32 to vector<16x1xf32>
    %591 = arith.addf %587, %590 : vector<16x1xf32>
    %592 = math.rsqrt %591 : vector<16x1xf32>
    %593 = vector.broadcast %592 : vector<16x1xf32> to vector<16x128xf32>
    %594 = arith.mulf %589, %593 : vector<16x128xf32>
    %595 = vector.broadcast %575 : vector<1x128xf32> to vector<16x128xf32>
    %596 = arith.mulf %594, %595 : vector<16x128xf32>
    %597 = vector.broadcast %576 : vector<1x128xf32> to vector<16x128xf32>
    %598 = arith.addf %596, %597 : vector<16x128xf32>
    %c0_180 = arith.constant 0 : index
    %c0_181 = arith.constant 0 : index
    %c0_182 = arith.constant 0 : index
    %599 = vector.load %arg3[%c0_180, %c0_181, %c0_182] : memref<24x128x128xbf16, #tpu.memory_space<vmem>>, vector<1x128x128xbf16>
    %600 = vector.shape_cast %599 : vector<1x128x128xbf16> to vector<128x128xbf16>
    %601 = arith.truncf %574 : vector<8x128xf32> to vector<8x128xbf16>
    %cst_183 = arith.constant dense<0.000000e+00> : vector<8x128xf32>
    %602 = tpu.matmul %601, %600, %cst_183 {dimension_numbers = #tpu.dot_dimension_numbers<[1], [0], [0], [1], [0, 0, 1, 1], [], []>} : vector<8x128xbf16>, vector<128x128xbf16>, vector<8x128xf32> -> vector<8x128xf32>
    %603 = vector.extract_strided_slice %550 {offsets = [6, 0], sizes = [1, 128], strides = [1, 1]} : vector<16x128xf32> to vector<1x128xf32>
    %604 = vector.broadcast %603 : vector<1x128xf32> to vector<8x128xf32>
    %605 = arith.addf %602, %604 : vector<8x128xf32>
    %c1_184 = arith.constant 1 : index
    %c0_185 = arith.constant 0 : index
    %c0_186 = arith.constant 0 : index
    %606 = vector.load %arg3[%c1_184, %c0_185, %c0_186] : memref<24x128x128xbf16, #tpu.memory_space<vmem>>, vector<1x128x128xbf16>
    %607 = vector.shape_cast %606 : vector<1x128x128xbf16> to vector<128x128xbf16>
    %608 = arith.truncf %598 : vector<16x128xf32> to vector<16x128xbf16>
    %cst_187 = arith.constant dense<0.000000e+00> : vector<16x128xf32>
    %609 = tpu.matmul %608, %607, %cst_187 {dimension_numbers = #tpu.dot_dimension_numbers<[1], [0], [0], [1], [0, 0, 1, 1], [], []>} : vector<16x128xbf16>, vector<128x128xbf16>, vector<16x128xf32> -> vector<16x128xf32>
    %610 = vector.extract_strided_slice %550 {offsets = [7, 0], sizes = [1, 128], strides = [1, 1]} : vector<16x128xf32> to vector<1x128xf32>
    %611 = vector.broadcast %610 : vector<1x128xf32> to vector<16x128xf32>
    %612 = arith.addf %609, %611 : vector<16x128xf32>
    %c2_188 = arith.constant 2 : index
    %c0_189 = arith.constant 0 : index
    %c0_190 = arith.constant 0 : index
    %613 = vector.load %arg3[%c2_188, %c0_189, %c0_190] : memref<24x128x128xbf16, #tpu.memory_space<vmem>>, vector<1x128x128xbf16>
    %614 = vector.shape_cast %613 : vector<1x128x128xbf16> to vector<128x128xbf16>
    %615 = arith.truncf %598 : vector<16x128xf32> to vector<16x128xbf16>
    %cst_191 = arith.constant dense<0.000000e+00> : vector<16x128xf32>
    %616 = tpu.matmul %615, %614, %cst_191 {dimension_numbers = #tpu.dot_dimension_numbers<[1], [0], [0], [1], [0, 0, 1, 1], [], []>} : vector<16x128xbf16>, vector<128x128xbf16>, vector<16x128xf32> -> vector<16x128xf32>
    %617 = vector.extract_strided_slice %550 {offsets = [8, 0], sizes = [1, 128], strides = [1, 1]} : vector<16x128xf32> to vector<1x128xf32>
    %618 = vector.broadcast %617 : vector<1x128xf32> to vector<16x128xf32>
    %619 = arith.addf %616, %618 : vector<16x128xf32>
    %cst_192 = arith.constant 0.000000e+00 : f32
    %620 = vector.broadcast %cst_192 : f32 to vector<8x128xf32>
    %621 = vector.broadcast %83 : vector<1x128xf32> to vector<8x128xf32>
    %622 = arith.mulf %605, %621 : vector<8x128xf32>
    %623 = arith.truncf %622 : vector<8x128xf32> to vector<8x128xbf16>
    %624 = arith.truncf %612 : vector<16x128xf32> to vector<16x128xbf16>
    %cst_193 = arith.constant dense<0.000000e+00> : vector<8x16xf32>
    %625 = tpu.matmul %623, %624, %cst_193 {dimension_numbers = #tpu.dot_dimension_numbers<[1], [1], [0], [0], [0, 0, 1, 0], [], []>} : vector<8x128xbf16>, vector<16x128xbf16>, vector<8x16xf32> -> vector<8x16xf32>
    %cst_194 = arith.constant dense<0xFF800000> : vector<8xf32>
    %626 = vector.multi_reduction <maximumf>, %625, %cst_194 [1] : vector<8x16xf32> to vector<8xf32>
    %627 = vector.shape_cast %626 : vector<8xf32> to vector<8x1xf32>
    %628 = vector.broadcast %627 : vector<8x1xf32> to vector<8x16xf32>
    %629 = arith.subf %625, %628 : vector<8x16xf32>
    %630 = math.exp %629 : vector<8x16xf32>
    %cst_195 = arith.constant dense<0.000000e+00> : vector<8xf32>
    %631 = vector.multi_reduction <add>, %630, %cst_195 [1] : vector<8x16xf32> to vector<8xf32>
    %632 = vector.shape_cast %631 : vector<8xf32> to vector<8x1xf32>
    %633 = tpu.reciprocal %632 {approx = true} : vector<8x1xf32> -> vector<8x1xf32>
    %634 = vector.broadcast %633 : vector<8x1xf32> to vector<8x16xf32>
    %635 = arith.mulf %630, %634 : vector<8x16xf32>
    %636 = arith.truncf %635 : vector<8x16xf32> to vector<8x16xbf16>
    %637 = arith.truncf %619 : vector<16x128xf32> to vector<16x128xbf16>
    %cst_196 = arith.constant dense<0.000000e+00> : vector<8x128xf32>
    %638 = tpu.matmul %636, %637, %cst_196 {dimension_numbers = #tpu.dot_dimension_numbers<[1], [0], [0], [1], [0, 0, 1, 1], [], []>} : vector<8x16xbf16>, vector<16x128xbf16>, vector<8x128xf32> -> vector<8x128xf32>
    %639 = vector.broadcast %109 : vector<1x128xf32> to vector<8x128xf32>
    %640 = arith.mulf %638, %639 : vector<8x128xf32>
    %641 = arith.addf %620, %640 : vector<8x128xf32>
    %642 = vector.broadcast %120 : vector<1x128xf32> to vector<8x128xf32>
    %643 = arith.mulf %605, %642 : vector<8x128xf32>
    %644 = arith.truncf %643 : vector<8x128xf32> to vector<8x128xbf16>
    %645 = arith.truncf %612 : vector<16x128xf32> to vector<16x128xbf16>
    %cst_197 = arith.constant dense<0.000000e+00> : vector<8x16xf32>
    %646 = tpu.matmul %644, %645, %cst_197 {dimension_numbers = #tpu.dot_dimension_numbers<[1], [1], [0], [0], [0, 0, 1, 0], [], []>} : vector<8x128xbf16>, vector<16x128xbf16>, vector<8x16xf32> -> vector<8x16xf32>
    %cst_198 = arith.constant dense<0xFF800000> : vector<8xf32>
    %647 = vector.multi_reduction <maximumf>, %646, %cst_198 [1] : vector<8x16xf32> to vector<8xf32>
    %648 = vector.shape_cast %647 : vector<8xf32> to vector<8x1xf32>
    %649 = vector.broadcast %648 : vector<8x1xf32> to vector<8x16xf32>
    %650 = arith.subf %646, %649 : vector<8x16xf32>
    %651 = math.exp %650 : vector<8x16xf32>
    %cst_199 = arith.constant dense<0.000000e+00> : vector<8xf32>
    %652 = vector.multi_reduction <add>, %651, %cst_199 [1] : vector<8x16xf32> to vector<8xf32>
    %653 = vector.shape_cast %652 : vector<8xf32> to vector<8x1xf32>
    %654 = tpu.reciprocal %653 {approx = true} : vector<8x1xf32> -> vector<8x1xf32>
    %655 = vector.broadcast %654 : vector<8x1xf32> to vector<8x16xf32>
    %656 = arith.mulf %651, %655 : vector<8x16xf32>
    %657 = arith.truncf %656 : vector<8x16xf32> to vector<8x16xbf16>
    %658 = arith.truncf %619 : vector<16x128xf32> to vector<16x128xbf16>
    %cst_200 = arith.constant dense<0.000000e+00> : vector<8x128xf32>
    %659 = tpu.matmul %657, %658, %cst_200 {dimension_numbers = #tpu.dot_dimension_numbers<[1], [0], [0], [1], [0, 0, 1, 1], [], []>} : vector<8x16xbf16>, vector<16x128xbf16>, vector<8x128xf32> -> vector<8x128xf32>
    %660 = vector.broadcast %146 : vector<1x128xf32> to vector<8x128xf32>
    %661 = arith.mulf %659, %660 : vector<8x128xf32>
    %662 = arith.addf %641, %661 : vector<8x128xf32>
    %c3_201 = arith.constant 3 : index
    %c0_202 = arith.constant 0 : index
    %c0_203 = arith.constant 0 : index
    %663 = vector.load %arg3[%c3_201, %c0_202, %c0_203] : memref<24x128x128xbf16, #tpu.memory_space<vmem>>, vector<1x128x128xbf16>
    %664 = vector.shape_cast %663 : vector<1x128x128xbf16> to vector<128x128xbf16>
    %665 = arith.truncf %662 : vector<8x128xf32> to vector<8x128xbf16>
    %cst_204 = arith.constant dense<0.000000e+00> : vector<8x128xf32>
    %666 = tpu.matmul %665, %664, %cst_204 {dimension_numbers = #tpu.dot_dimension_numbers<[1], [0], [0], [1], [0, 0, 1, 1], [], []>} : vector<8x128xbf16>, vector<128x128xbf16>, vector<8x128xf32> -> vector<8x128xf32>
    %667 = vector.extract_strided_slice %550 {offsets = [9, 0], sizes = [1, 128], strides = [1, 1]} : vector<16x128xf32> to vector<1x128xf32>
    %668 = vector.broadcast %667 : vector<1x128xf32> to vector<8x128xf32>
    %669 = arith.addf %666, %668 : vector<8x128xf32>
    %670 = arith.addf %574, %669 : vector<8x128xf32>
    %671 = vector.extract_strided_slice %550 {offsets = [4, 0], sizes = [1, 128], strides = [1, 1]} : vector<16x128xf32> to vector<1x128xf32>
    %672 = vector.extract_strided_slice %550 {offsets = [5, 0], sizes = [1, 128], strides = [1, 1]} : vector<16x128xf32> to vector<1x128xf32>
    %cst_205 = arith.constant dense<0.000000e+00> : vector<8xf32>
    %673 = vector.multi_reduction <add>, %670, %cst_205 [1] : vector<8x128xf32> to vector<8xf32>
    %674 = vector.shape_cast %673 : vector<8xf32> to vector<8x1xf32>
    %cst_206 = arith.constant 3.125000e-02 : f32
    %675 = vector.broadcast %cst_206 : f32 to vector<8x1xf32>
    %676 = arith.mulf %674, %675 : vector<8x1xf32>
    %677 = arith.mulf %670, %670 : vector<8x128xf32>
    %cst_207 = arith.constant dense<0.000000e+00> : vector<8xf32>
    %678 = vector.multi_reduction <add>, %677, %cst_207 [1] : vector<8x128xf32> to vector<8xf32>
    %679 = vector.shape_cast %678 : vector<8xf32> to vector<8x1xf32>
    %cst_208 = arith.constant 3.125000e-02 : f32
    %680 = vector.broadcast %cst_208 : f32 to vector<8x1xf32>
    %681 = arith.mulf %679, %680 : vector<8x1xf32>
    %682 = arith.mulf %676, %676 : vector<8x1xf32>
    %683 = arith.subf %681, %682 : vector<8x1xf32>
    %684 = vector.broadcast %676 : vector<8x1xf32> to vector<8x128xf32>
    %685 = arith.subf %670, %684 : vector<8x128xf32>
    %cst_209 = arith.constant 9.99999974E-6 : f32
    %686 = vector.broadcast %cst_209 : f32 to vector<8x1xf32>
    %687 = arith.addf %683, %686 : vector<8x1xf32>
    %688 = math.rsqrt %687 : vector<8x1xf32>
    %689 = vector.broadcast %688 : vector<8x1xf32> to vector<8x128xf32>
    %690 = arith.mulf %685, %689 : vector<8x128xf32>
    %691 = vector.broadcast %671 : vector<1x128xf32> to vector<8x128xf32>
    %692 = arith.mulf %690, %691 : vector<8x128xf32>
    %693 = vector.broadcast %672 : vector<1x128xf32> to vector<8x128xf32>
    %694 = arith.addf %692, %693 : vector<8x128xf32>
    %c4_210 = arith.constant 4 : index
    %c0_211 = arith.constant 0 : index
    %c0_212 = arith.constant 0 : index
    %695 = vector.load %arg3[%c4_210, %c0_211, %c0_212] : memref<24x128x128xbf16, #tpu.memory_space<vmem>>, vector<1x128x128xbf16>
    %696 = vector.shape_cast %695 : vector<1x128x128xbf16> to vector<128x128xbf16>
    %697 = arith.truncf %694 : vector<8x128xf32> to vector<8x128xbf16>
    %cst_213 = arith.constant dense<0.000000e+00> : vector<8x128xf32>
    %698 = tpu.matmul %697, %696, %cst_213 {dimension_numbers = #tpu.dot_dimension_numbers<[1], [0], [0], [1], [0, 0, 1, 1], [], []>} : vector<8x128xbf16>, vector<128x128xbf16>, vector<8x128xf32> -> vector<8x128xf32>
    %699 = vector.extract_strided_slice %550 {offsets = [10, 0], sizes = [1, 128], strides = [1, 1]} : vector<16x128xf32> to vector<1x128xf32>
    %700 = vector.broadcast %699 : vector<1x128xf32> to vector<8x128xf32>
    %701 = arith.addf %698, %700 : vector<8x128xf32>
    %cst_214 = arith.constant 5.000000e-01 : f32
    %702 = vector.broadcast %cst_214 : f32 to vector<8x128xf32>
    %703 = arith.mulf %702, %701 : vector<8x128xf32>
    %cst_215 = arith.constant 4.471500e-02 : f32
    %704 = vector.broadcast %cst_215 : f32 to vector<8x128xf32>
    %705 = arith.mulf %704, %701 : vector<8x128xf32>
    %706 = arith.mulf %705, %701 : vector<8x128xf32>
    %707 = arith.mulf %706, %701 : vector<8x128xf32>
    %708 = arith.addf %701, %707 : vector<8x128xf32>
    %cst_216 = arith.constant 0.797884583 : f32
    %709 = vector.broadcast %cst_216 : f32 to vector<8x128xf32>
    %710 = arith.mulf %709, %708 : vector<8x128xf32>
    %711 = math.tanh %710 : vector<8x128xf32>
    %cst_217 = arith.constant 1.000000e+00 : f32
    %712 = vector.broadcast %cst_217 : f32 to vector<8x128xf32>
    %713 = arith.addf %712, %711 : vector<8x128xf32>
    %714 = arith.mulf %703, %713 : vector<8x128xf32>
    %c5_218 = arith.constant 5 : index
    %c0_219 = arith.constant 0 : index
    %c0_220 = arith.constant 0 : index
    %715 = vector.load %arg3[%c5_218, %c0_219, %c0_220] : memref<24x128x128xbf16, #tpu.memory_space<vmem>>, vector<1x128x128xbf16>
    %716 = vector.shape_cast %715 : vector<1x128x128xbf16> to vector<128x128xbf16>
    %717 = arith.truncf %714 : vector<8x128xf32> to vector<8x128xbf16>
    %cst_221 = arith.constant dense<0.000000e+00> : vector<8x128xf32>
    %718 = tpu.matmul %717, %716, %cst_221 {dimension_numbers = #tpu.dot_dimension_numbers<[1], [0], [0], [1], [0, 0, 1, 1], [], []>} : vector<8x128xbf16>, vector<128x128xbf16>, vector<8x128xf32> -> vector<8x128xf32>
    %719 = vector.extract_strided_slice %550 {offsets = [11, 0], sizes = [1, 128], strides = [1, 1]} : vector<16x128xf32> to vector<1x128xf32>
    %720 = vector.broadcast %719 : vector<1x128xf32> to vector<8x128xf32>
    %721 = arith.addf %718, %720 : vector<8x128xf32>
    %cst_222 = arith.constant 5.000000e-01 : f32
    %722 = vector.broadcast %cst_222 : f32 to vector<8x128xf32>
    %723 = arith.mulf %722, %721 : vector<8x128xf32>
    %cst_223 = arith.constant 4.471500e-02 : f32
    %724 = vector.broadcast %cst_223 : f32 to vector<8x128xf32>
    %725 = arith.mulf %724, %721 : vector<8x128xf32>
    %726 = arith.mulf %725, %721 : vector<8x128xf32>
    %727 = arith.mulf %726, %721 : vector<8x128xf32>
    %728 = arith.addf %721, %727 : vector<8x128xf32>
    %cst_224 = arith.constant 0.797884583 : f32
    %729 = vector.broadcast %cst_224 : f32 to vector<8x128xf32>
    %730 = arith.mulf %729, %728 : vector<8x128xf32>
    %731 = math.tanh %730 : vector<8x128xf32>
    %cst_225 = arith.constant 1.000000e+00 : f32
    %732 = vector.broadcast %cst_225 : f32 to vector<8x128xf32>
    %733 = arith.addf %732, %731 : vector<8x128xf32>
    %734 = arith.mulf %723, %733 : vector<8x128xf32>
    %735 = arith.addf %694, %734 : vector<8x128xf32>
    %c1_226 = arith.constant 1 : index
    %c0_227 = arith.constant 0 : index
    %c0_228 = arith.constant 0 : index
    %736 = vector.load %arg4[%c1_226, %c0_227, %c0_228] : memref<4x16x128xf32, #tpu.memory_space<vmem>>, vector<1x16x128xf32>
    %737 = vector.shape_cast %736 : vector<1x16x128xf32> to vector<16x128xf32>
    %738 = vector.extract_strided_slice %737 {offsets = [0, 0], sizes = [1, 128], strides = [1, 1]} : vector<16x128xf32> to vector<1x128xf32>
    %739 = vector.extract_strided_slice %737 {offsets = [1, 0], sizes = [1, 128], strides = [1, 1]} : vector<16x128xf32> to vector<1x128xf32>
    %cst_229 = arith.constant dense<0.000000e+00> : vector<8xf32>
    %740 = vector.multi_reduction <add>, %735, %cst_229 [1] : vector<8x128xf32> to vector<8xf32>
    %741 = vector.shape_cast %740 : vector<8xf32> to vector<8x1xf32>
    %cst_230 = arith.constant 3.125000e-02 : f32
    %742 = vector.broadcast %cst_230 : f32 to vector<8x1xf32>
    %743 = arith.mulf %741, %742 : vector<8x1xf32>
    %744 = arith.mulf %735, %735 : vector<8x128xf32>
    %cst_231 = arith.constant dense<0.000000e+00> : vector<8xf32>
    %745 = vector.multi_reduction <add>, %744, %cst_231 [1] : vector<8x128xf32> to vector<8xf32>
    %746 = vector.shape_cast %745 : vector<8xf32> to vector<8x1xf32>
    %cst_232 = arith.constant 3.125000e-02 : f32
    %747 = vector.broadcast %cst_232 : f32 to vector<8x1xf32>
    %748 = arith.mulf %746, %747 : vector<8x1xf32>
    %749 = arith.mulf %743, %743 : vector<8x1xf32>
    %750 = arith.subf %748, %749 : vector<8x1xf32>
    %751 = vector.broadcast %743 : vector<8x1xf32> to vector<8x128xf32>
    %752 = arith.subf %735, %751 : vector<8x128xf32>
    %cst_233 = arith.constant 9.99999974E-6 : f32
    %753 = vector.broadcast %cst_233 : f32 to vector<8x1xf32>
    %754 = arith.addf %750, %753 : vector<8x1xf32>
    %755 = math.rsqrt %754 : vector<8x1xf32>
    %756 = vector.broadcast %755 : vector<8x1xf32> to vector<8x128xf32>
    %757 = arith.mulf %752, %756 : vector<8x128xf32>
    %758 = vector.broadcast %738 : vector<1x128xf32> to vector<8x128xf32>
    %759 = arith.mulf %757, %758 : vector<8x128xf32>
    %760 = vector.broadcast %739 : vector<1x128xf32> to vector<8x128xf32>
    %761 = arith.addf %759, %760 : vector<8x128xf32>
    %c6_234 = arith.constant 6 : index
    %c0_235 = arith.constant 0 : index
    %c0_236 = arith.constant 0 : index
    %762 = vector.load %arg3[%c6_234, %c0_235, %c0_236] : memref<24x128x128xbf16, #tpu.memory_space<vmem>>, vector<1x128x128xbf16>
    %763 = vector.shape_cast %762 : vector<1x128x128xbf16> to vector<128x128xbf16>
    %764 = arith.truncf %761 : vector<8x128xf32> to vector<8x128xbf16>
    %cst_237 = arith.constant dense<0.000000e+00> : vector<8x128xf32>
    %765 = tpu.matmul %764, %763, %cst_237 {dimension_numbers = #tpu.dot_dimension_numbers<[1], [0], [0], [1], [0, 0, 1, 1], [], []>} : vector<8x128xbf16>, vector<128x128xbf16>, vector<8x128xf32> -> vector<8x128xf32>
    %766 = vector.extract_strided_slice %737 {offsets = [6, 0], sizes = [1, 128], strides = [1, 1]} : vector<16x128xf32> to vector<1x128xf32>
    %767 = vector.broadcast %766 : vector<1x128xf32> to vector<8x128xf32>
    %768 = arith.addf %765, %767 : vector<8x128xf32>
    %c7_238 = arith.constant 7 : index
    %c0_239 = arith.constant 0 : index
    %c0_240 = arith.constant 0 : index
    %769 = vector.load %arg3[%c7_238, %c0_239, %c0_240] : memref<24x128x128xbf16, #tpu.memory_space<vmem>>, vector<1x128x128xbf16>
    %770 = vector.shape_cast %769 : vector<1x128x128xbf16> to vector<128x128xbf16>
    %771 = arith.truncf %761 : vector<8x128xf32> to vector<8x128xbf16>
    %cst_241 = arith.constant dense<0.000000e+00> : vector<8x128xf32>
    %772 = tpu.matmul %771, %770, %cst_241 {dimension_numbers = #tpu.dot_dimension_numbers<[1], [0], [0], [1], [0, 0, 1, 1], [], []>} : vector<8x128xbf16>, vector<128x128xbf16>, vector<8x128xf32> -> vector<8x128xf32>
    %773 = vector.extract_strided_slice %737 {offsets = [7, 0], sizes = [1, 128], strides = [1, 1]} : vector<16x128xf32> to vector<1x128xf32>
    %774 = vector.broadcast %773 : vector<1x128xf32> to vector<8x128xf32>
    %775 = arith.addf %772, %774 : vector<8x128xf32>
    %c8_242 = arith.constant 8 : index
    %c0_243 = arith.constant 0 : index
    %c0_244 = arith.constant 0 : index
    %776 = vector.load %arg3[%c8_242, %c0_243, %c0_244] : memref<24x128x128xbf16, #tpu.memory_space<vmem>>, vector<1x128x128xbf16>
    %777 = vector.shape_cast %776 : vector<1x128x128xbf16> to vector<128x128xbf16>
    %778 = arith.truncf %761 : vector<8x128xf32> to vector<8x128xbf16>
    %cst_245 = arith.constant dense<0.000000e+00> : vector<8x128xf32>
    %779 = tpu.matmul %778, %777, %cst_245 {dimension_numbers = #tpu.dot_dimension_numbers<[1], [0], [0], [1], [0, 0, 1, 1], [], []>} : vector<8x128xbf16>, vector<128x128xbf16>, vector<8x128xf32> -> vector<8x128xf32>
    %780 = vector.extract_strided_slice %737 {offsets = [8, 0], sizes = [1, 128], strides = [1, 1]} : vector<16x128xf32> to vector<1x128xf32>
    %781 = vector.broadcast %780 : vector<1x128xf32> to vector<8x128xf32>
    %782 = arith.addf %779, %781 : vector<8x128xf32>
    %cst_246 = arith.constant 0.000000e+00 : f32
    %783 = vector.broadcast %cst_246 : f32 to vector<8x128xf32>
    %784 = vector.broadcast %83 : vector<1x128xf32> to vector<8x128xf32>
    %785 = arith.mulf %768, %784 : vector<8x128xf32>
    %786 = arith.truncf %785 : vector<8x128xf32> to vector<8x128xbf16>
    %787 = arith.truncf %775 : vector<8x128xf32> to vector<8x128xbf16>
    %cst_247 = arith.constant dense<0.000000e+00> : vector<8x8xf32>
    %788 = tpu.matmul %786, %787, %cst_247 {dimension_numbers = #tpu.dot_dimension_numbers<[1], [1], [0], [0], [0, 0, 1, 0], [], []>} : vector<8x128xbf16>, vector<8x128xbf16>, vector<8x8xf32> -> vector<8x8xf32>
    %cst_248 = arith.constant dense<0xFF800000> : vector<8xf32>
    %789 = vector.multi_reduction <maximumf>, %788, %cst_248 [1] : vector<8x8xf32> to vector<8xf32>
    %790 = vector.shape_cast %789 : vector<8xf32> to vector<8x1xf32>
    %791 = vector.broadcast %790 : vector<8x1xf32> to vector<8x8xf32>
    %792 = arith.subf %788, %791 : vector<8x8xf32>
    %793 = math.exp %792 : vector<8x8xf32>
    %cst_249 = arith.constant dense<0.000000e+00> : vector<8xf32>
    %794 = vector.multi_reduction <add>, %793, %cst_249 [1] : vector<8x8xf32> to vector<8xf32>
    %795 = vector.shape_cast %794 : vector<8xf32> to vector<8x1xf32>
    %796 = tpu.reciprocal %795 {approx = true} : vector<8x1xf32> -> vector<8x1xf32>
    %797 = vector.broadcast %796 : vector<8x1xf32> to vector<8x8xf32>
    %798 = arith.mulf %793, %797 : vector<8x8xf32>
    %799 = arith.truncf %798 : vector<8x8xf32> to vector<8x8xbf16>
    %800 = arith.truncf %782 : vector<8x128xf32> to vector<8x128xbf16>
    %cst_250 = arith.constant dense<0.000000e+00> : vector<8x128xf32>
    %801 = tpu.matmul %799, %800, %cst_250 {dimension_numbers = #tpu.dot_dimension_numbers<[1], [0], [0], [1], [0, 0, 1, 1], [], []>} : vector<8x8xbf16>, vector<8x128xbf16>, vector<8x128xf32> -> vector<8x128xf32>
    %802 = vector.broadcast %109 : vector<1x128xf32> to vector<8x128xf32>
    %803 = arith.mulf %801, %802 : vector<8x128xf32>
    %804 = arith.addf %783, %803 : vector<8x128xf32>
    %805 = vector.broadcast %120 : vector<1x128xf32> to vector<8x128xf32>
    %806 = arith.mulf %768, %805 : vector<8x128xf32>
    %807 = arith.truncf %806 : vector<8x128xf32> to vector<8x128xbf16>
    %808 = arith.truncf %775 : vector<8x128xf32> to vector<8x128xbf16>
    %cst_251 = arith.constant dense<0.000000e+00> : vector<8x8xf32>
    %809 = tpu.matmul %807, %808, %cst_251 {dimension_numbers = #tpu.dot_dimension_numbers<[1], [1], [0], [0], [0, 0, 1, 0], [], []>} : vector<8x128xbf16>, vector<8x128xbf16>, vector<8x8xf32> -> vector<8x8xf32>
    %cst_252 = arith.constant dense<0xFF800000> : vector<8xf32>
    %810 = vector.multi_reduction <maximumf>, %809, %cst_252 [1] : vector<8x8xf32> to vector<8xf32>
    %811 = vector.shape_cast %810 : vector<8xf32> to vector<8x1xf32>
    %812 = vector.broadcast %811 : vector<8x1xf32> to vector<8x8xf32>
    %813 = arith.subf %809, %812 : vector<8x8xf32>
    %814 = math.exp %813 : vector<8x8xf32>
    %cst_253 = arith.constant dense<0.000000e+00> : vector<8xf32>
    %815 = vector.multi_reduction <add>, %814, %cst_253 [1] : vector<8x8xf32> to vector<8xf32>
    %816 = vector.shape_cast %815 : vector<8xf32> to vector<8x1xf32>
    %817 = tpu.reciprocal %816 {approx = true} : vector<8x1xf32> -> vector<8x1xf32>
    %818 = vector.broadcast %817 : vector<8x1xf32> to vector<8x8xf32>
    %819 = arith.mulf %814, %818 : vector<8x8xf32>
    %820 = arith.truncf %819 : vector<8x8xf32> to vector<8x8xbf16>
    %821 = arith.truncf %782 : vector<8x128xf32> to vector<8x128xbf16>
    %cst_254 = arith.constant dense<0.000000e+00> : vector<8x128xf32>
    %822 = tpu.matmul %820, %821, %cst_254 {dimension_numbers = #tpu.dot_dimension_numbers<[1], [0], [0], [1], [0, 0, 1, 1], [], []>} : vector<8x8xbf16>, vector<8x128xbf16>, vector<8x128xf32> -> vector<8x128xf32>
    %823 = vector.broadcast %146 : vector<1x128xf32> to vector<8x128xf32>
    %824 = arith.mulf %822, %823 : vector<8x128xf32>
    %825 = arith.addf %804, %824 : vector<8x128xf32>
    %c9_255 = arith.constant 9 : index
    %c0_256 = arith.constant 0 : index
    %c0_257 = arith.constant 0 : index
    %826 = vector.load %arg3[%c9_255, %c0_256, %c0_257] : memref<24x128x128xbf16, #tpu.memory_space<vmem>>, vector<1x128x128xbf16>
    %827 = vector.shape_cast %826 : vector<1x128x128xbf16> to vector<128x128xbf16>
    %828 = arith.truncf %825 : vector<8x128xf32> to vector<8x128xbf16>
    %cst_258 = arith.constant dense<0.000000e+00> : vector<8x128xf32>
    %829 = tpu.matmul %828, %827, %cst_258 {dimension_numbers = #tpu.dot_dimension_numbers<[1], [0], [0], [1], [0, 0, 1, 1], [], []>} : vector<8x128xbf16>, vector<128x128xbf16>, vector<8x128xf32> -> vector<8x128xf32>
    %830 = vector.extract_strided_slice %737 {offsets = [9, 0], sizes = [1, 128], strides = [1, 1]} : vector<16x128xf32> to vector<1x128xf32>
    %831 = vector.broadcast %830 : vector<1x128xf32> to vector<8x128xf32>
    %832 = arith.addf %829, %831 : vector<8x128xf32>
    %833 = arith.addf %761, %832 : vector<8x128xf32>
    %834 = vector.extract_strided_slice %737 {offsets = [4, 0], sizes = [1, 128], strides = [1, 1]} : vector<16x128xf32> to vector<1x128xf32>
    %835 = vector.extract_strided_slice %737 {offsets = [5, 0], sizes = [1, 128], strides = [1, 1]} : vector<16x128xf32> to vector<1x128xf32>
    %cst_259 = arith.constant dense<0.000000e+00> : vector<8xf32>
    %836 = vector.multi_reduction <add>, %833, %cst_259 [1] : vector<8x128xf32> to vector<8xf32>
    %837 = vector.shape_cast %836 : vector<8xf32> to vector<8x1xf32>
    %cst_260 = arith.constant 3.125000e-02 : f32
    %838 = vector.broadcast %cst_260 : f32 to vector<8x1xf32>
    %839 = arith.mulf %837, %838 : vector<8x1xf32>
    %840 = arith.mulf %833, %833 : vector<8x128xf32>
    %cst_261 = arith.constant dense<0.000000e+00> : vector<8xf32>
    %841 = vector.multi_reduction <add>, %840, %cst_261 [1] : vector<8x128xf32> to vector<8xf32>
    %842 = vector.shape_cast %841 : vector<8xf32> to vector<8x1xf32>
    %cst_262 = arith.constant 3.125000e-02 : f32
    %843 = vector.broadcast %cst_262 : f32 to vector<8x1xf32>
    %844 = arith.mulf %842, %843 : vector<8x1xf32>
    %845 = arith.mulf %839, %839 : vector<8x1xf32>
    %846 = arith.subf %844, %845 : vector<8x1xf32>
    %847 = vector.broadcast %839 : vector<8x1xf32> to vector<8x128xf32>
    %848 = arith.subf %833, %847 : vector<8x128xf32>
    %cst_263 = arith.constant 9.99999974E-6 : f32
    %849 = vector.broadcast %cst_263 : f32 to vector<8x1xf32>
    %850 = arith.addf %846, %849 : vector<8x1xf32>
    %851 = math.rsqrt %850 : vector<8x1xf32>
    %852 = vector.broadcast %851 : vector<8x1xf32> to vector<8x128xf32>
    %853 = arith.mulf %848, %852 : vector<8x128xf32>
    %854 = vector.broadcast %834 : vector<1x128xf32> to vector<8x128xf32>
    %855 = arith.mulf %853, %854 : vector<8x128xf32>
    %856 = vector.broadcast %835 : vector<1x128xf32> to vector<8x128xf32>
    %857 = arith.addf %855, %856 : vector<8x128xf32>
    %c10_264 = arith.constant 10 : index
    %c0_265 = arith.constant 0 : index
    %c0_266 = arith.constant 0 : index
    %858 = vector.load %arg3[%c10_264, %c0_265, %c0_266] : memref<24x128x128xbf16, #tpu.memory_space<vmem>>, vector<1x128x128xbf16>
    %859 = vector.shape_cast %858 : vector<1x128x128xbf16> to vector<128x128xbf16>
    %860 = arith.truncf %857 : vector<8x128xf32> to vector<8x128xbf16>
    %cst_267 = arith.constant dense<0.000000e+00> : vector<8x128xf32>
    %861 = tpu.matmul %860, %859, %cst_267 {dimension_numbers = #tpu.dot_dimension_numbers<[1], [0], [0], [1], [0, 0, 1, 1], [], []>} : vector<8x128xbf16>, vector<128x128xbf16>, vector<8x128xf32> -> vector<8x128xf32>
    %862 = vector.extract_strided_slice %737 {offsets = [10, 0], sizes = [1, 128], strides = [1, 1]} : vector<16x128xf32> to vector<1x128xf32>
    %863 = vector.broadcast %862 : vector<1x128xf32> to vector<8x128xf32>
    %864 = arith.addf %861, %863 : vector<8x128xf32>
    %cst_268 = arith.constant 5.000000e-01 : f32
    %865 = vector.broadcast %cst_268 : f32 to vector<8x128xf32>
    %866 = arith.mulf %865, %864 : vector<8x128xf32>
    %cst_269 = arith.constant 4.471500e-02 : f32
    %867 = vector.broadcast %cst_269 : f32 to vector<8x128xf32>
    %868 = arith.mulf %867, %864 : vector<8x128xf32>
    %869 = arith.mulf %868, %864 : vector<8x128xf32>
    %870 = arith.mulf %869, %864 : vector<8x128xf32>
    %871 = arith.addf %864, %870 : vector<8x128xf32>
    %cst_270 = arith.constant 0.797884583 : f32
    %872 = vector.broadcast %cst_270 : f32 to vector<8x128xf32>
    %873 = arith.mulf %872, %871 : vector<8x128xf32>
    %874 = math.tanh %873 : vector<8x128xf32>
    %cst_271 = arith.constant 1.000000e+00 : f32
    %875 = vector.broadcast %cst_271 : f32 to vector<8x128xf32>
    %876 = arith.addf %875, %874 : vector<8x128xf32>
    %877 = arith.mulf %866, %876 : vector<8x128xf32>
    %c11_272 = arith.constant 11 : index
    %c0_273 = arith.constant 0 : index
    %c0_274 = arith.constant 0 : index
    %878 = vector.load %arg3[%c11_272, %c0_273, %c0_274] : memref<24x128x128xbf16, #tpu.memory_space<vmem>>, vector<1x128x128xbf16>
    %879 = vector.shape_cast %878 : vector<1x128x128xbf16> to vector<128x128xbf16>
    %880 = arith.truncf %877 : vector<8x128xf32> to vector<8x128xbf16>
    %cst_275 = arith.constant dense<0.000000e+00> : vector<8x128xf32>
    %881 = tpu.matmul %880, %879, %cst_275 {dimension_numbers = #tpu.dot_dimension_numbers<[1], [0], [0], [1], [0, 0, 1, 1], [], []>} : vector<8x128xbf16>, vector<128x128xbf16>, vector<8x128xf32> -> vector<8x128xf32>
    %882 = vector.extract_strided_slice %737 {offsets = [11, 0], sizes = [1, 128], strides = [1, 1]} : vector<16x128xf32> to vector<1x128xf32>
    %883 = vector.broadcast %882 : vector<1x128xf32> to vector<8x128xf32>
    %884 = arith.addf %881, %883 : vector<8x128xf32>
    %cst_276 = arith.constant 5.000000e-01 : f32
    %885 = vector.broadcast %cst_276 : f32 to vector<8x128xf32>
    %886 = arith.mulf %885, %884 : vector<8x128xf32>
    %cst_277 = arith.constant 4.471500e-02 : f32
    %887 = vector.broadcast %cst_277 : f32 to vector<8x128xf32>
    %888 = arith.mulf %887, %884 : vector<8x128xf32>
    %889 = arith.mulf %888, %884 : vector<8x128xf32>
    %890 = arith.mulf %889, %884 : vector<8x128xf32>
    %891 = arith.addf %884, %890 : vector<8x128xf32>
    %cst_278 = arith.constant 0.797884583 : f32
    %892 = vector.broadcast %cst_278 : f32 to vector<8x128xf32>
    %893 = arith.mulf %892, %891 : vector<8x128xf32>
    %894 = math.tanh %893 : vector<8x128xf32>
    %cst_279 = arith.constant 1.000000e+00 : f32
    %895 = vector.broadcast %cst_279 : f32 to vector<8x128xf32>
    %896 = arith.addf %895, %894 : vector<8x128xf32>
    %897 = arith.mulf %886, %896 : vector<8x128xf32>
    %898 = arith.addf %857, %897 : vector<8x128xf32>
    %c2_280 = arith.constant 2 : index
    %c0_281 = arith.constant 0 : index
    %c0_282 = arith.constant 0 : index
    %899 = vector.load %arg4[%c2_280, %c0_281, %c0_282] : memref<4x16x128xf32, #tpu.memory_space<vmem>>, vector<1x16x128xf32>
    %900 = vector.shape_cast %899 : vector<1x16x128xf32> to vector<16x128xf32>
    %901 = vector.extract_strided_slice %900 {offsets = [0, 0], sizes = [1, 128], strides = [1, 1]} : vector<16x128xf32> to vector<1x128xf32>
    %902 = vector.extract_strided_slice %900 {offsets = [1, 0], sizes = [1, 128], strides = [1, 1]} : vector<16x128xf32> to vector<1x128xf32>
    %cst_283 = arith.constant dense<0.000000e+00> : vector<8xf32>
    %903 = vector.multi_reduction <add>, %898, %cst_283 [1] : vector<8x128xf32> to vector<8xf32>
    %904 = vector.shape_cast %903 : vector<8xf32> to vector<8x1xf32>
    %cst_284 = arith.constant 3.125000e-02 : f32
    %905 = vector.broadcast %cst_284 : f32 to vector<8x1xf32>
    %906 = arith.mulf %904, %905 : vector<8x1xf32>
    %907 = arith.mulf %898, %898 : vector<8x128xf32>
    %cst_285 = arith.constant dense<0.000000e+00> : vector<8xf32>
    %908 = vector.multi_reduction <add>, %907, %cst_285 [1] : vector<8x128xf32> to vector<8xf32>
    %909 = vector.shape_cast %908 : vector<8xf32> to vector<8x1xf32>
    %cst_286 = arith.constant 3.125000e-02 : f32
    %910 = vector.broadcast %cst_286 : f32 to vector<8x1xf32>
    %911 = arith.mulf %909, %910 : vector<8x1xf32>
    %912 = arith.mulf %906, %906 : vector<8x1xf32>
    %913 = arith.subf %911, %912 : vector<8x1xf32>
    %914 = vector.broadcast %906 : vector<8x1xf32> to vector<8x128xf32>
    %915 = arith.subf %898, %914 : vector<8x128xf32>
    %cst_287 = arith.constant 9.99999974E-6 : f32
    %916 = vector.broadcast %cst_287 : f32 to vector<8x1xf32>
    %917 = arith.addf %913, %916 : vector<8x1xf32>
    %918 = math.rsqrt %917 : vector<8x1xf32>
    %919 = vector.broadcast %918 : vector<8x1xf32> to vector<8x128xf32>
    %920 = arith.mulf %915, %919 : vector<8x128xf32>
    %921 = vector.broadcast %901 : vector<1x128xf32> to vector<8x128xf32>
    %922 = arith.mulf %920, %921 : vector<8x128xf32>
    %923 = vector.broadcast %902 : vector<1x128xf32> to vector<8x128xf32>
    %924 = arith.addf %922, %923 : vector<8x128xf32>
    %c12_288 = arith.constant 12 : index
    %c0_289 = arith.constant 0 : index
    %c0_290 = arith.constant 0 : index
    %925 = vector.load %arg3[%c12_288, %c0_289, %c0_290] : memref<24x128x128xbf16, #tpu.memory_space<vmem>>, vector<1x128x128xbf16>
    %926 = vector.shape_cast %925 : vector<1x128x128xbf16> to vector<128x128xbf16>
    %927 = arith.truncf %924 : vector<8x128xf32> to vector<8x128xbf16>
    %cst_291 = arith.constant dense<0.000000e+00> : vector<8x128xf32>
    %928 = tpu.matmul %927, %926, %cst_291 {dimension_numbers = #tpu.dot_dimension_numbers<[1], [0], [0], [1], [0, 0, 1, 1], [], []>} : vector<8x128xbf16>, vector<128x128xbf16>, vector<8x128xf32> -> vector<8x128xf32>
    %929 = vector.extract_strided_slice %900 {offsets = [6, 0], sizes = [1, 128], strides = [1, 1]} : vector<16x128xf32> to vector<1x128xf32>
    %930 = vector.broadcast %929 : vector<1x128xf32> to vector<8x128xf32>
    %931 = arith.addf %928, %930 : vector<8x128xf32>
    %c13_292 = arith.constant 13 : index
    %c0_293 = arith.constant 0 : index
    %c0_294 = arith.constant 0 : index
    %932 = vector.load %arg3[%c13_292, %c0_293, %c0_294] : memref<24x128x128xbf16, #tpu.memory_space<vmem>>, vector<1x128x128xbf16>
    %933 = vector.shape_cast %932 : vector<1x128x128xbf16> to vector<128x128xbf16>
    %934 = arith.truncf %924 : vector<8x128xf32> to vector<8x128xbf16>
    %cst_295 = arith.constant dense<0.000000e+00> : vector<8x128xf32>
    %935 = tpu.matmul %934, %933, %cst_295 {dimension_numbers = #tpu.dot_dimension_numbers<[1], [0], [0], [1], [0, 0, 1, 1], [], []>} : vector<8x128xbf16>, vector<128x128xbf16>, vector<8x128xf32> -> vector<8x128xf32>
    %936 = vector.extract_strided_slice %900 {offsets = [7, 0], sizes = [1, 128], strides = [1, 1]} : vector<16x128xf32> to vector<1x128xf32>
    %937 = vector.broadcast %936 : vector<1x128xf32> to vector<8x128xf32>
    %938 = arith.addf %935, %937 : vector<8x128xf32>
    %c14_296 = arith.constant 14 : index
    %c0_297 = arith.constant 0 : index
    %c0_298 = arith.constant 0 : index
    %939 = vector.load %arg3[%c14_296, %c0_297, %c0_298] : memref<24x128x128xbf16, #tpu.memory_space<vmem>>, vector<1x128x128xbf16>
    %940 = vector.shape_cast %939 : vector<1x128x128xbf16> to vector<128x128xbf16>
    %941 = arith.truncf %924 : vector<8x128xf32> to vector<8x128xbf16>
    %cst_299 = arith.constant dense<0.000000e+00> : vector<8x128xf32>
    %942 = tpu.matmul %941, %940, %cst_299 {dimension_numbers = #tpu.dot_dimension_numbers<[1], [0], [0], [1], [0, 0, 1, 1], [], []>} : vector<8x128xbf16>, vector<128x128xbf16>, vector<8x128xf32> -> vector<8x128xf32>
    %943 = vector.extract_strided_slice %900 {offsets = [8, 0], sizes = [1, 128], strides = [1, 1]} : vector<16x128xf32> to vector<1x128xf32>
    %944 = vector.broadcast %943 : vector<1x128xf32> to vector<8x128xf32>
    %945 = arith.addf %942, %944 : vector<8x128xf32>
    %cst_300 = arith.constant 0.000000e+00 : f32
    %946 = vector.broadcast %cst_300 : f32 to vector<8x128xf32>
    %947 = vector.broadcast %83 : vector<1x128xf32> to vector<8x128xf32>
    %948 = arith.mulf %931, %947 : vector<8x128xf32>
    %949 = arith.truncf %948 : vector<8x128xf32> to vector<8x128xbf16>
    %950 = arith.truncf %938 : vector<8x128xf32> to vector<8x128xbf16>
    %cst_301 = arith.constant dense<0.000000e+00> : vector<8x8xf32>
    %951 = tpu.matmul %949, %950, %cst_301 {dimension_numbers = #tpu.dot_dimension_numbers<[1], [1], [0], [0], [0, 0, 1, 0], [], []>} : vector<8x128xbf16>, vector<8x128xbf16>, vector<8x8xf32> -> vector<8x8xf32>
    %cst_302 = arith.constant dense<0xFF800000> : vector<8xf32>
    %952 = vector.multi_reduction <maximumf>, %951, %cst_302 [1] : vector<8x8xf32> to vector<8xf32>
    %953 = vector.shape_cast %952 : vector<8xf32> to vector<8x1xf32>
    %954 = vector.broadcast %953 : vector<8x1xf32> to vector<8x8xf32>
    %955 = arith.subf %951, %954 : vector<8x8xf32>
    %956 = math.exp %955 : vector<8x8xf32>
    %cst_303 = arith.constant dense<0.000000e+00> : vector<8xf32>
    %957 = vector.multi_reduction <add>, %956, %cst_303 [1] : vector<8x8xf32> to vector<8xf32>
    %958 = vector.shape_cast %957 : vector<8xf32> to vector<8x1xf32>
    %959 = tpu.reciprocal %958 {approx = true} : vector<8x1xf32> -> vector<8x1xf32>
    %960 = vector.broadcast %959 : vector<8x1xf32> to vector<8x8xf32>
    %961 = arith.mulf %956, %960 : vector<8x8xf32>
    %962 = arith.truncf %961 : vector<8x8xf32> to vector<8x8xbf16>
    %963 = arith.truncf %945 : vector<8x128xf32> to vector<8x128xbf16>
    %cst_304 = arith.constant dense<0.000000e+00> : vector<8x128xf32>
    %964 = tpu.matmul %962, %963, %cst_304 {dimension_numbers = #tpu.dot_dimension_numbers<[1], [0], [0], [1], [0, 0, 1, 1], [], []>} : vector<8x8xbf16>, vector<8x128xbf16>, vector<8x128xf32> -> vector<8x128xf32>
    %965 = vector.broadcast %109 : vector<1x128xf32> to vector<8x128xf32>
    %966 = arith.mulf %964, %965 : vector<8x128xf32>
    %967 = arith.addf %946, %966 : vector<8x128xf32>
    %968 = vector.broadcast %120 : vector<1x128xf32> to vector<8x128xf32>
    %969 = arith.mulf %931, %968 : vector<8x128xf32>
    %970 = arith.truncf %969 : vector<8x128xf32> to vector<8x128xbf16>
    %971 = arith.truncf %938 : vector<8x128xf32> to vector<8x128xbf16>
    %cst_305 = arith.constant dense<0.000000e+00> : vector<8x8xf32>
    %972 = tpu.matmul %970, %971, %cst_305 {dimension_numbers = #tpu.dot_dimension_numbers<[1], [1], [0], [0], [0, 0, 1, 0], [], []>} : vector<8x128xbf16>, vector<8x128xbf16>, vector<8x8xf32> -> vector<8x8xf32>
    %cst_306 = arith.constant dense<0xFF800000> : vector<8xf32>
    %973 = vector.multi_reduction <maximumf>, %972, %cst_306 [1] : vector<8x8xf32> to vector<8xf32>
    %974 = vector.shape_cast %973 : vector<8xf32> to vector<8x1xf32>
    %975 = vector.broadcast %974 : vector<8x1xf32> to vector<8x8xf32>
    %976 = arith.subf %972, %975 : vector<8x8xf32>
    %977 = math.exp %976 : vector<8x8xf32>
    %cst_307 = arith.constant dense<0.000000e+00> : vector<8xf32>
    %978 = vector.multi_reduction <add>, %977, %cst_307 [1] : vector<8x8xf32> to vector<8xf32>
    %979 = vector.shape_cast %978 : vector<8xf32> to vector<8x1xf32>
    %980 = tpu.reciprocal %979 {approx = true} : vector<8x1xf32> -> vector<8x1xf32>
    %981 = vector.broadcast %980 : vector<8x1xf32> to vector<8x8xf32>
    %982 = arith.mulf %977, %981 : vector<8x8xf32>
    %983 = arith.truncf %982 : vector<8x8xf32> to vector<8x8xbf16>
    %984 = arith.truncf %945 : vector<8x128xf32> to vector<8x128xbf16>
    %cst_308 = arith.constant dense<0.000000e+00> : vector<8x128xf32>
    %985 = tpu.matmul %983, %984, %cst_308 {dimension_numbers = #tpu.dot_dimension_numbers<[1], [0], [0], [1], [0, 0, 1, 1], [], []>} : vector<8x8xbf16>, vector<8x128xbf16>, vector<8x128xf32> -> vector<8x128xf32>
    %986 = vector.broadcast %146 : vector<1x128xf32> to vector<8x128xf32>
    %987 = arith.mulf %985, %986 : vector<8x128xf32>
    %988 = arith.addf %967, %987 : vector<8x128xf32>
    %c15_309 = arith.constant 15 : index
    %c0_310 = arith.constant 0 : index
    %c0_311 = arith.constant 0 : index
    %989 = vector.load %arg3[%c15_309, %c0_310, %c0_311] : memref<24x128x128xbf16, #tpu.memory_space<vmem>>, vector<1x128x128xbf16>
    %990 = vector.shape_cast %989 : vector<1x128x128xbf16> to vector<128x128xbf16>
    %991 = arith.truncf %988 : vector<8x128xf32> to vector<8x128xbf16>
    %cst_312 = arith.constant dense<0.000000e+00> : vector<8x128xf32>
    %992 = tpu.matmul %991, %990, %cst_312 {dimension_numbers = #tpu.dot_dimension_numbers<[1], [0], [0], [1], [0, 0, 1, 1], [], []>} : vector<8x128xbf16>, vector<128x128xbf16>, vector<8x128xf32> -> vector<8x128xf32>
    %993 = vector.extract_strided_slice %900 {offsets = [9, 0], sizes = [1, 128], strides = [1, 1]} : vector<16x128xf32> to vector<1x128xf32>
    %994 = vector.broadcast %993 : vector<1x128xf32> to vector<8x128xf32>
    %995 = arith.addf %992, %994 : vector<8x128xf32>
    %996 = arith.addf %924, %995 : vector<8x128xf32>
    %997 = vector.extract_strided_slice %900 {offsets = [4, 0], sizes = [1, 128], strides = [1, 1]} : vector<16x128xf32> to vector<1x128xf32>
    %998 = vector.extract_strided_slice %900 {offsets = [5, 0], sizes = [1, 128], strides = [1, 1]} : vector<16x128xf32> to vector<1x128xf32>
    %cst_313 = arith.constant dense<0.000000e+00> : vector<8xf32>
    %999 = vector.multi_reduction <add>, %996, %cst_313 [1] : vector<8x128xf32> to vector<8xf32>
    %1000 = vector.shape_cast %999 : vector<8xf32> to vector<8x1xf32>
    %cst_314 = arith.constant 3.125000e-02 : f32
    %1001 = vector.broadcast %cst_314 : f32 to vector<8x1xf32>
    %1002 = arith.mulf %1000, %1001 : vector<8x1xf32>
    %1003 = arith.mulf %996, %996 : vector<8x128xf32>
    %cst_315 = arith.constant dense<0.000000e+00> : vector<8xf32>
    %1004 = vector.multi_reduction <add>, %1003, %cst_315 [1] : vector<8x128xf32> to vector<8xf32>
    %1005 = vector.shape_cast %1004 : vector<8xf32> to vector<8x1xf32>
    %cst_316 = arith.constant 3.125000e-02 : f32
    %1006 = vector.broadcast %cst_316 : f32 to vector<8x1xf32>
    %1007 = arith.mulf %1005, %1006 : vector<8x1xf32>
    %1008 = arith.mulf %1002, %1002 : vector<8x1xf32>
    %1009 = arith.subf %1007, %1008 : vector<8x1xf32>
    %1010 = vector.broadcast %1002 : vector<8x1xf32> to vector<8x128xf32>
    %1011 = arith.subf %996, %1010 : vector<8x128xf32>
    %cst_317 = arith.constant 9.99999974E-6 : f32
    %1012 = vector.broadcast %cst_317 : f32 to vector<8x1xf32>
    %1013 = arith.addf %1009, %1012 : vector<8x1xf32>
    %1014 = math.rsqrt %1013 : vector<8x1xf32>
    %1015 = vector.broadcast %1014 : vector<8x1xf32> to vector<8x128xf32>
    %1016 = arith.mulf %1011, %1015 : vector<8x128xf32>
    %1017 = vector.broadcast %997 : vector<1x128xf32> to vector<8x128xf32>
    %1018 = arith.mulf %1016, %1017 : vector<8x128xf32>
    %1019 = vector.broadcast %998 : vector<1x128xf32> to vector<8x128xf32>
    %1020 = arith.addf %1018, %1019 : vector<8x128xf32>
    %c16_318 = arith.constant 16 : index
    %c0_319 = arith.constant 0 : index
    %c0_320 = arith.constant 0 : index
    %1021 = vector.load %arg3[%c16_318, %c0_319, %c0_320] : memref<24x128x128xbf16, #tpu.memory_space<vmem>>, vector<1x128x128xbf16>
    %1022 = vector.shape_cast %1021 : vector<1x128x128xbf16> to vector<128x128xbf16>
    %1023 = arith.truncf %1020 : vector<8x128xf32> to vector<8x128xbf16>
    %cst_321 = arith.constant dense<0.000000e+00> : vector<8x128xf32>
    %1024 = tpu.matmul %1023, %1022, %cst_321 {dimension_numbers = #tpu.dot_dimension_numbers<[1], [0], [0], [1], [0, 0, 1, 1], [], []>} : vector<8x128xbf16>, vector<128x128xbf16>, vector<8x128xf32> -> vector<8x128xf32>
    %1025 = vector.extract_strided_slice %900 {offsets = [10, 0], sizes = [1, 128], strides = [1, 1]} : vector<16x128xf32> to vector<1x128xf32>
    %1026 = vector.broadcast %1025 : vector<1x128xf32> to vector<8x128xf32>
    %1027 = arith.addf %1024, %1026 : vector<8x128xf32>
    %cst_322 = arith.constant 5.000000e-01 : f32
    %1028 = vector.broadcast %cst_322 : f32 to vector<8x128xf32>
    %1029 = arith.mulf %1028, %1027 : vector<8x128xf32>
    %cst_323 = arith.constant 4.471500e-02 : f32
    %1030 = vector.broadcast %cst_323 : f32 to vector<8x128xf32>
    %1031 = arith.mulf %1030, %1027 : vector<8x128xf32>
    %1032 = arith.mulf %1031, %1027 : vector<8x128xf32>
    %1033 = arith.mulf %1032, %1027 : vector<8x128xf32>
    %1034 = arith.addf %1027, %1033 : vector<8x128xf32>
    %cst_324 = arith.constant 0.797884583 : f32
    %1035 = vector.broadcast %cst_324 : f32 to vector<8x128xf32>
    %1036 = arith.mulf %1035, %1034 : vector<8x128xf32>
    %1037 = math.tanh %1036 : vector<8x128xf32>
    %cst_325 = arith.constant 1.000000e+00 : f32
    %1038 = vector.broadcast %cst_325 : f32 to vector<8x128xf32>
    %1039 = arith.addf %1038, %1037 : vector<8x128xf32>
    %1040 = arith.mulf %1029, %1039 : vector<8x128xf32>
    %c17_326 = arith.constant 17 : index
    %c0_327 = arith.constant 0 : index
    %c0_328 = arith.constant 0 : index
    %1041 = vector.load %arg3[%c17_326, %c0_327, %c0_328] : memref<24x128x128xbf16, #tpu.memory_space<vmem>>, vector<1x128x128xbf16>
    %1042 = vector.shape_cast %1041 : vector<1x128x128xbf16> to vector<128x128xbf16>
    %1043 = arith.truncf %1040 : vector<8x128xf32> to vector<8x128xbf16>
    %cst_329 = arith.constant dense<0.000000e+00> : vector<8x128xf32>
    %1044 = tpu.matmul %1043, %1042, %cst_329 {dimension_numbers = #tpu.dot_dimension_numbers<[1], [0], [0], [1], [0, 0, 1, 1], [], []>} : vector<8x128xbf16>, vector<128x128xbf16>, vector<8x128xf32> -> vector<8x128xf32>
    %1045 = vector.extract_strided_slice %900 {offsets = [11, 0], sizes = [1, 128], strides = [1, 1]} : vector<16x128xf32> to vector<1x128xf32>
    %1046 = vector.broadcast %1045 : vector<1x128xf32> to vector<8x128xf32>
    %1047 = arith.addf %1044, %1046 : vector<8x128xf32>
    %cst_330 = arith.constant 5.000000e-01 : f32
    %1048 = vector.broadcast %cst_330 : f32 to vector<8x128xf32>
    %1049 = arith.mulf %1048, %1047 : vector<8x128xf32>
    %cst_331 = arith.constant 4.471500e-02 : f32
    %1050 = vector.broadcast %cst_331 : f32 to vector<8x128xf32>
    %1051 = arith.mulf %1050, %1047 : vector<8x128xf32>
    %1052 = arith.mulf %1051, %1047 : vector<8x128xf32>
    %1053 = arith.mulf %1052, %1047 : vector<8x128xf32>
    %1054 = arith.addf %1047, %1053 : vector<8x128xf32>
    %cst_332 = arith.constant 0.797884583 : f32
    %1055 = vector.broadcast %cst_332 : f32 to vector<8x128xf32>
    %1056 = arith.mulf %1055, %1054 : vector<8x128xf32>
    %1057 = math.tanh %1056 : vector<8x128xf32>
    %cst_333 = arith.constant 1.000000e+00 : f32
    %1058 = vector.broadcast %cst_333 : f32 to vector<8x128xf32>
    %1059 = arith.addf %1058, %1057 : vector<8x128xf32>
    %1060 = arith.mulf %1049, %1059 : vector<8x128xf32>
    %1061 = arith.addf %1020, %1060 : vector<8x128xf32>
    %c3_334 = arith.constant 3 : index
    %c0_335 = arith.constant 0 : index
    %c0_336 = arith.constant 0 : index
    %1062 = vector.load %arg4[%c3_334, %c0_335, %c0_336] : memref<4x16x128xf32, #tpu.memory_space<vmem>>, vector<1x16x128xf32>
    %1063 = vector.shape_cast %1062 : vector<1x16x128xf32> to vector<16x128xf32>
    %1064 = vector.extract_strided_slice %1063 {offsets = [0, 0], sizes = [1, 128], strides = [1, 1]} : vector<16x128xf32> to vector<1x128xf32>
    %1065 = vector.extract_strided_slice %1063 {offsets = [1, 0], sizes = [1, 128], strides = [1, 1]} : vector<16x128xf32> to vector<1x128xf32>
    %cst_337 = arith.constant dense<0.000000e+00> : vector<8xf32>
    %1066 = vector.multi_reduction <add>, %2, %cst_337 [1] : vector<8x128xf32> to vector<8xf32>
    %1067 = vector.shape_cast %1066 : vector<8xf32> to vector<8x1xf32>
    %cst_338 = arith.constant 3.125000e-02 : f32
    %1068 = vector.broadcast %cst_338 : f32 to vector<8x1xf32>
    %1069 = arith.mulf %1067, %1068 : vector<8x1xf32>
    %1070 = arith.mulf %2, %2 : vector<8x128xf32>
    %cst_339 = arith.constant dense<0.000000e+00> : vector<8xf32>
    %1071 = vector.multi_reduction <add>, %1070, %cst_339 [1] : vector<8x128xf32> to vector<8xf32>
    %1072 = vector.shape_cast %1071 : vector<8xf32> to vector<8x1xf32>
    %cst_340 = arith.constant 3.125000e-02 : f32
    %1073 = vector.broadcast %cst_340 : f32 to vector<8x1xf32>
    %1074 = arith.mulf %1072, %1073 : vector<8x1xf32>
    %1075 = arith.mulf %1069, %1069 : vector<8x1xf32>
    %1076 = arith.subf %1074, %1075 : vector<8x1xf32>
    %1077 = vector.broadcast %1069 : vector<8x1xf32> to vector<8x128xf32>
    %1078 = arith.subf %2, %1077 : vector<8x128xf32>
    %cst_341 = arith.constant 9.99999974E-6 : f32
    %1079 = vector.broadcast %cst_341 : f32 to vector<8x1xf32>
    %1080 = arith.addf %1076, %1079 : vector<8x1xf32>
    %1081 = math.rsqrt %1080 : vector<8x1xf32>
    %1082 = vector.broadcast %1081 : vector<8x1xf32> to vector<8x128xf32>
    %1083 = arith.mulf %1078, %1082 : vector<8x128xf32>
    %1084 = vector.broadcast %1064 : vector<1x128xf32> to vector<8x128xf32>
    %1085 = arith.mulf %1083, %1084 : vector<8x128xf32>
    %1086 = vector.broadcast %1065 : vector<1x128xf32> to vector<8x128xf32>
    %1087 = arith.addf %1085, %1086 : vector<8x128xf32>
    %1088 = vector.extract_strided_slice %1063 {offsets = [2, 0], sizes = [1, 128], strides = [1, 1]} : vector<16x128xf32> to vector<1x128xf32>
    %1089 = vector.extract_strided_slice %1063 {offsets = [3, 0], sizes = [1, 128], strides = [1, 1]} : vector<16x128xf32> to vector<1x128xf32>
    %cst_342 = arith.constant dense<0.000000e+00> : vector<8xf32>
    %1090 = vector.multi_reduction <add>, %1061, %cst_342 [1] : vector<8x128xf32> to vector<8xf32>
    %1091 = vector.shape_cast %1090 : vector<8xf32> to vector<8x1xf32>
    %cst_343 = arith.constant 3.125000e-02 : f32
    %1092 = vector.broadcast %cst_343 : f32 to vector<8x1xf32>
    %1093 = arith.mulf %1091, %1092 : vector<8x1xf32>
    %1094 = arith.mulf %1061, %1061 : vector<8x128xf32>
    %cst_344 = arith.constant dense<0.000000e+00> : vector<8xf32>
    %1095 = vector.multi_reduction <add>, %1094, %cst_344 [1] : vector<8x128xf32> to vector<8xf32>
    %1096 = vector.shape_cast %1095 : vector<8xf32> to vector<8x1xf32>
    %cst_345 = arith.constant 3.125000e-02 : f32
    %1097 = vector.broadcast %cst_345 : f32 to vector<8x1xf32>
    %1098 = arith.mulf %1096, %1097 : vector<8x1xf32>
    %1099 = arith.mulf %1093, %1093 : vector<8x1xf32>
    %1100 = arith.subf %1098, %1099 : vector<8x1xf32>
    %1101 = vector.broadcast %1093 : vector<8x1xf32> to vector<8x128xf32>
    %1102 = arith.subf %1061, %1101 : vector<8x128xf32>
    %cst_346 = arith.constant 9.99999974E-6 : f32
    %1103 = vector.broadcast %cst_346 : f32 to vector<8x1xf32>
    %1104 = arith.addf %1100, %1103 : vector<8x1xf32>
    %1105 = math.rsqrt %1104 : vector<8x1xf32>
    %1106 = vector.broadcast %1105 : vector<8x1xf32> to vector<8x128xf32>
    %1107 = arith.mulf %1102, %1106 : vector<8x128xf32>
    %1108 = vector.broadcast %1088 : vector<1x128xf32> to vector<8x128xf32>
    %1109 = arith.mulf %1107, %1108 : vector<8x128xf32>
    %1110 = vector.broadcast %1089 : vector<1x128xf32> to vector<8x128xf32>
    %1111 = arith.addf %1109, %1110 : vector<8x128xf32>
    %c18 = arith.constant 18 : index
    %c0_347 = arith.constant 0 : index
    %c0_348 = arith.constant 0 : index
    %1112 = vector.load %arg3[%c18, %c0_347, %c0_348] : memref<24x128x128xbf16, #tpu.memory_space<vmem>>, vector<1x128x128xbf16>
    %1113 = vector.shape_cast %1112 : vector<1x128x128xbf16> to vector<128x128xbf16>
    %1114 = arith.truncf %1087 : vector<8x128xf32> to vector<8x128xbf16>
    %cst_349 = arith.constant dense<0.000000e+00> : vector<8x128xf32>
    %1115 = tpu.matmul %1114, %1113, %cst_349 {dimension_numbers = #tpu.dot_dimension_numbers<[1], [0], [0], [1], [0, 0, 1, 1], [], []>} : vector<8x128xbf16>, vector<128x128xbf16>, vector<8x128xf32> -> vector<8x128xf32>
    %1116 = vector.extract_strided_slice %1063 {offsets = [6, 0], sizes = [1, 128], strides = [1, 1]} : vector<16x128xf32> to vector<1x128xf32>
    %1117 = vector.broadcast %1116 : vector<1x128xf32> to vector<8x128xf32>
    %1118 = arith.addf %1115, %1117 : vector<8x128xf32>
    %c19 = arith.constant 19 : index
    %c0_350 = arith.constant 0 : index
    %c0_351 = arith.constant 0 : index
    %1119 = vector.load %arg3[%c19, %c0_350, %c0_351] : memref<24x128x128xbf16, #tpu.memory_space<vmem>>, vector<1x128x128xbf16>
    %1120 = vector.shape_cast %1119 : vector<1x128x128xbf16> to vector<128x128xbf16>
    %1121 = arith.truncf %1111 : vector<8x128xf32> to vector<8x128xbf16>
    %cst_352 = arith.constant dense<0.000000e+00> : vector<8x128xf32>
    %1122 = tpu.matmul %1121, %1120, %cst_352 {dimension_numbers = #tpu.dot_dimension_numbers<[1], [0], [0], [1], [0, 0, 1, 1], [], []>} : vector<8x128xbf16>, vector<128x128xbf16>, vector<8x128xf32> -> vector<8x128xf32>
    %1123 = vector.extract_strided_slice %1063 {offsets = [7, 0], sizes = [1, 128], strides = [1, 1]} : vector<16x128xf32> to vector<1x128xf32>
    %1124 = vector.broadcast %1123 : vector<1x128xf32> to vector<8x128xf32>
    %1125 = arith.addf %1122, %1124 : vector<8x128xf32>
    %c20 = arith.constant 20 : index
    %c0_353 = arith.constant 0 : index
    %c0_354 = arith.constant 0 : index
    %1126 = vector.load %arg3[%c20, %c0_353, %c0_354] : memref<24x128x128xbf16, #tpu.memory_space<vmem>>, vector<1x128x128xbf16>
    %1127 = vector.shape_cast %1126 : vector<1x128x128xbf16> to vector<128x128xbf16>
    %1128 = arith.truncf %1111 : vector<8x128xf32> to vector<8x128xbf16>
    %cst_355 = arith.constant dense<0.000000e+00> : vector<8x128xf32>
    %1129 = tpu.matmul %1128, %1127, %cst_355 {dimension_numbers = #tpu.dot_dimension_numbers<[1], [0], [0], [1], [0, 0, 1, 1], [], []>} : vector<8x128xbf16>, vector<128x128xbf16>, vector<8x128xf32> -> vector<8x128xf32>
    %1130 = vector.extract_strided_slice %1063 {offsets = [8, 0], sizes = [1, 128], strides = [1, 1]} : vector<16x128xf32> to vector<1x128xf32>
    %1131 = vector.broadcast %1130 : vector<1x128xf32> to vector<8x128xf32>
    %1132 = arith.addf %1129, %1131 : vector<8x128xf32>
    %cst_356 = arith.constant 0.000000e+00 : f32
    %1133 = vector.broadcast %cst_356 : f32 to vector<8x128xf32>
    %1134 = vector.broadcast %83 : vector<1x128xf32> to vector<8x128xf32>
    %1135 = arith.mulf %1118, %1134 : vector<8x128xf32>
    %1136 = arith.truncf %1135 : vector<8x128xf32> to vector<8x128xbf16>
    %1137 = arith.truncf %1125 : vector<8x128xf32> to vector<8x128xbf16>
    %cst_357 = arith.constant dense<0.000000e+00> : vector<8x8xf32>
    %1138 = tpu.matmul %1136, %1137, %cst_357 {dimension_numbers = #tpu.dot_dimension_numbers<[1], [1], [0], [0], [0, 0, 1, 0], [], []>} : vector<8x128xbf16>, vector<8x128xbf16>, vector<8x8xf32> -> vector<8x8xf32>
    %cst_358 = arith.constant dense<0xFF800000> : vector<8xf32>
    %1139 = vector.multi_reduction <maximumf>, %1138, %cst_358 [1] : vector<8x8xf32> to vector<8xf32>
    %1140 = vector.shape_cast %1139 : vector<8xf32> to vector<8x1xf32>
    %1141 = vector.broadcast %1140 : vector<8x1xf32> to vector<8x8xf32>
    %1142 = arith.subf %1138, %1141 : vector<8x8xf32>
    %1143 = math.exp %1142 : vector<8x8xf32>
    %cst_359 = arith.constant dense<0.000000e+00> : vector<8xf32>
    %1144 = vector.multi_reduction <add>, %1143, %cst_359 [1] : vector<8x8xf32> to vector<8xf32>
    %1145 = vector.shape_cast %1144 : vector<8xf32> to vector<8x1xf32>
    %1146 = tpu.reciprocal %1145 {approx = true} : vector<8x1xf32> -> vector<8x1xf32>
    %1147 = vector.broadcast %1146 : vector<8x1xf32> to vector<8x8xf32>
    %1148 = arith.mulf %1143, %1147 : vector<8x8xf32>
    %1149 = arith.truncf %1148 : vector<8x8xf32> to vector<8x8xbf16>
    %1150 = arith.truncf %1132 : vector<8x128xf32> to vector<8x128xbf16>
    %cst_360 = arith.constant dense<0.000000e+00> : vector<8x128xf32>
    %1151 = tpu.matmul %1149, %1150, %cst_360 {dimension_numbers = #tpu.dot_dimension_numbers<[1], [0], [0], [1], [0, 0, 1, 1], [], []>} : vector<8x8xbf16>, vector<8x128xbf16>, vector<8x128xf32> -> vector<8x128xf32>
    %1152 = vector.broadcast %109 : vector<1x128xf32> to vector<8x128xf32>
    %1153 = arith.mulf %1151, %1152 : vector<8x128xf32>
    %1154 = arith.addf %1133, %1153 : vector<8x128xf32>
    %1155 = vector.broadcast %120 : vector<1x128xf32> to vector<8x128xf32>
    %1156 = arith.mulf %1118, %1155 : vector<8x128xf32>
    %1157 = arith.truncf %1156 : vector<8x128xf32> to vector<8x128xbf16>
    %1158 = arith.truncf %1125 : vector<8x128xf32> to vector<8x128xbf16>
    %cst_361 = arith.constant dense<0.000000e+00> : vector<8x8xf32>
    %1159 = tpu.matmul %1157, %1158, %cst_361 {dimension_numbers = #tpu.dot_dimension_numbers<[1], [1], [0], [0], [0, 0, 1, 0], [], []>} : vector<8x128xbf16>, vector<8x128xbf16>, vector<8x8xf32> -> vector<8x8xf32>
    %cst_362 = arith.constant dense<0xFF800000> : vector<8xf32>
    %1160 = vector.multi_reduction <maximumf>, %1159, %cst_362 [1] : vector<8x8xf32> to vector<8xf32>
    %1161 = vector.shape_cast %1160 : vector<8xf32> to vector<8x1xf32>
    %1162 = vector.broadcast %1161 : vector<8x1xf32> to vector<8x8xf32>
    %1163 = arith.subf %1159, %1162 : vector<8x8xf32>
    %1164 = math.exp %1163 : vector<8x8xf32>
    %cst_363 = arith.constant dense<0.000000e+00> : vector<8xf32>
    %1165 = vector.multi_reduction <add>, %1164, %cst_363 [1] : vector<8x8xf32> to vector<8xf32>
    %1166 = vector.shape_cast %1165 : vector<8xf32> to vector<8x1xf32>
    %1167 = tpu.reciprocal %1166 {approx = true} : vector<8x1xf32> -> vector<8x1xf32>
    %1168 = vector.broadcast %1167 : vector<8x1xf32> to vector<8x8xf32>
    %1169 = arith.mulf %1164, %1168 : vector<8x8xf32>
    %1170 = arith.truncf %1169 : vector<8x8xf32> to vector<8x8xbf16>
    %1171 = arith.truncf %1132 : vector<8x128xf32> to vector<8x128xbf16>
    %cst_364 = arith.constant dense<0.000000e+00> : vector<8x128xf32>
    %1172 = tpu.matmul %1170, %1171, %cst_364 {dimension_numbers = #tpu.dot_dimension_numbers<[1], [0], [0], [1], [0, 0, 1, 1], [], []>} : vector<8x8xbf16>, vector<8x128xbf16>, vector<8x128xf32> -> vector<8x128xf32>
    %1173 = vector.broadcast %146 : vector<1x128xf32> to vector<8x128xf32>
    %1174 = arith.mulf %1172, %1173 : vector<8x128xf32>
    %1175 = arith.addf %1154, %1174 : vector<8x128xf32>
    %c21 = arith.constant 21 : index
    %c0_365 = arith.constant 0 : index
    %c0_366 = arith.constant 0 : index
    %1176 = vector.load %arg3[%c21, %c0_365, %c0_366] : memref<24x128x128xbf16, #tpu.memory_space<vmem>>, vector<1x128x128xbf16>
    %1177 = vector.shape_cast %1176 : vector<1x128x128xbf16> to vector<128x128xbf16>
    %1178 = arith.truncf %1175 : vector<8x128xf32> to vector<8x128xbf16>
    %cst_367 = arith.constant dense<0.000000e+00> : vector<8x128xf32>
    %1179 = tpu.matmul %1178, %1177, %cst_367 {dimension_numbers = #tpu.dot_dimension_numbers<[1], [0], [0], [1], [0, 0, 1, 1], [], []>} : vector<8x128xbf16>, vector<128x128xbf16>, vector<8x128xf32> -> vector<8x128xf32>
    %1180 = vector.extract_strided_slice %1063 {offsets = [9, 0], sizes = [1, 128], strides = [1, 1]} : vector<16x128xf32> to vector<1x128xf32>
    %1181 = vector.broadcast %1180 : vector<1x128xf32> to vector<8x128xf32>
    %1182 = arith.addf %1179, %1181 : vector<8x128xf32>
    %1183 = arith.addf %1087, %1182 : vector<8x128xf32>
    %1184 = vector.extract_strided_slice %1063 {offsets = [4, 0], sizes = [1, 128], strides = [1, 1]} : vector<16x128xf32> to vector<1x128xf32>
    %1185 = vector.extract_strided_slice %1063 {offsets = [5, 0], sizes = [1, 128], strides = [1, 1]} : vector<16x128xf32> to vector<1x128xf32>
    %cst_368 = arith.constant dense<0.000000e+00> : vector<8xf32>
    %1186 = vector.multi_reduction <add>, %1183, %cst_368 [1] : vector<8x128xf32> to vector<8xf32>
    %1187 = vector.shape_cast %1186 : vector<8xf32> to vector<8x1xf32>
    %cst_369 = arith.constant 3.125000e-02 : f32
    %1188 = vector.broadcast %cst_369 : f32 to vector<8x1xf32>
    %1189 = arith.mulf %1187, %1188 : vector<8x1xf32>
    %1190 = arith.mulf %1183, %1183 : vector<8x128xf32>
    %cst_370 = arith.constant dense<0.000000e+00> : vector<8xf32>
    %1191 = vector.multi_reduction <add>, %1190, %cst_370 [1] : vector<8x128xf32> to vector<8xf32>
    %1192 = vector.shape_cast %1191 : vector<8xf32> to vector<8x1xf32>
    %cst_371 = arith.constant 3.125000e-02 : f32
    %1193 = vector.broadcast %cst_371 : f32 to vector<8x1xf32>
    %1194 = arith.mulf %1192, %1193 : vector<8x1xf32>
    %1195 = arith.mulf %1189, %1189 : vector<8x1xf32>
    %1196 = arith.subf %1194, %1195 : vector<8x1xf32>
    %1197 = vector.broadcast %1189 : vector<8x1xf32> to vector<8x128xf32>
    %1198 = arith.subf %1183, %1197 : vector<8x128xf32>
    %cst_372 = arith.constant 9.99999974E-6 : f32
    %1199 = vector.broadcast %cst_372 : f32 to vector<8x1xf32>
    %1200 = arith.addf %1196, %1199 : vector<8x1xf32>
    %1201 = math.rsqrt %1200 : vector<8x1xf32>
    %1202 = vector.broadcast %1201 : vector<8x1xf32> to vector<8x128xf32>
    %1203 = arith.mulf %1198, %1202 : vector<8x128xf32>
    %1204 = vector.broadcast %1184 : vector<1x128xf32> to vector<8x128xf32>
    %1205 = arith.mulf %1203, %1204 : vector<8x128xf32>
    %1206 = vector.broadcast %1185 : vector<1x128xf32> to vector<8x128xf32>
    %1207 = arith.addf %1205, %1206 : vector<8x128xf32>
    %c22 = arith.constant 22 : index
    %c0_373 = arith.constant 0 : index
    %c0_374 = arith.constant 0 : index
    %1208 = vector.load %arg3[%c22, %c0_373, %c0_374] : memref<24x128x128xbf16, #tpu.memory_space<vmem>>, vector<1x128x128xbf16>
    %1209 = vector.shape_cast %1208 : vector<1x128x128xbf16> to vector<128x128xbf16>
    %1210 = arith.truncf %1207 : vector<8x128xf32> to vector<8x128xbf16>
    %cst_375 = arith.constant dense<0.000000e+00> : vector<8x128xf32>
    %1211 = tpu.matmul %1210, %1209, %cst_375 {dimension_numbers = #tpu.dot_dimension_numbers<[1], [0], [0], [1], [0, 0, 1, 1], [], []>} : vector<8x128xbf16>, vector<128x128xbf16>, vector<8x128xf32> -> vector<8x128xf32>
    %1212 = vector.extract_strided_slice %1063 {offsets = [10, 0], sizes = [1, 128], strides = [1, 1]} : vector<16x128xf32> to vector<1x128xf32>
    %1213 = vector.broadcast %1212 : vector<1x128xf32> to vector<8x128xf32>
    %1214 = arith.addf %1211, %1213 : vector<8x128xf32>
    %cst_376 = arith.constant 5.000000e-01 : f32
    %1215 = vector.broadcast %cst_376 : f32 to vector<8x128xf32>
    %1216 = arith.mulf %1215, %1214 : vector<8x128xf32>
    %cst_377 = arith.constant 4.471500e-02 : f32
    %1217 = vector.broadcast %cst_377 : f32 to vector<8x128xf32>
    %1218 = arith.mulf %1217, %1214 : vector<8x128xf32>
    %1219 = arith.mulf %1218, %1214 : vector<8x128xf32>
    %1220 = arith.mulf %1219, %1214 : vector<8x128xf32>
    %1221 = arith.addf %1214, %1220 : vector<8x128xf32>
    %cst_378 = arith.constant 0.797884583 : f32
    %1222 = vector.broadcast %cst_378 : f32 to vector<8x128xf32>
    %1223 = arith.mulf %1222, %1221 : vector<8x128xf32>
    %1224 = math.tanh %1223 : vector<8x128xf32>
    %cst_379 = arith.constant 1.000000e+00 : f32
    %1225 = vector.broadcast %cst_379 : f32 to vector<8x128xf32>
    %1226 = arith.addf %1225, %1224 : vector<8x128xf32>
    %1227 = arith.mulf %1216, %1226 : vector<8x128xf32>
    %c23 = arith.constant 23 : index
    %c0_380 = arith.constant 0 : index
    %c0_381 = arith.constant 0 : index
    %1228 = vector.load %arg3[%c23, %c0_380, %c0_381] : memref<24x128x128xbf16, #tpu.memory_space<vmem>>, vector<1x128x128xbf16>
    %1229 = vector.shape_cast %1228 : vector<1x128x128xbf16> to vector<128x128xbf16>
    %1230 = arith.truncf %1227 : vector<8x128xf32> to vector<8x128xbf16>
    %cst_382 = arith.constant dense<0.000000e+00> : vector<8x128xf32>
    %1231 = tpu.matmul %1230, %1229, %cst_382 {dimension_numbers = #tpu.dot_dimension_numbers<[1], [0], [0], [1], [0, 0, 1, 1], [], []>} : vector<8x128xbf16>, vector<128x128xbf16>, vector<8x128xf32> -> vector<8x128xf32>
    %1232 = vector.extract_strided_slice %1063 {offsets = [11, 0], sizes = [1, 128], strides = [1, 1]} : vector<16x128xf32> to vector<1x128xf32>
    %1233 = vector.broadcast %1232 : vector<1x128xf32> to vector<8x128xf32>
    %1234 = arith.addf %1231, %1233 : vector<8x128xf32>
    %cst_383 = arith.constant 5.000000e-01 : f32
    %1235 = vector.broadcast %cst_383 : f32 to vector<8x128xf32>
    %1236 = arith.mulf %1235, %1234 : vector<8x128xf32>
    %cst_384 = arith.constant 4.471500e-02 : f32
    %1237 = vector.broadcast %cst_384 : f32 to vector<8x128xf32>
    %1238 = arith.mulf %1237, %1234 : vector<8x128xf32>
    %1239 = arith.mulf %1238, %1234 : vector<8x128xf32>
    %1240 = arith.mulf %1239, %1234 : vector<8x128xf32>
    %1241 = arith.addf %1234, %1240 : vector<8x128xf32>
    %cst_385 = arith.constant 0.797884583 : f32
    %1242 = vector.broadcast %cst_385 : f32 to vector<8x128xf32>
    %1243 = arith.mulf %1242, %1241 : vector<8x128xf32>
    %1244 = math.tanh %1243 : vector<8x128xf32>
    %cst_386 = arith.constant 1.000000e+00 : f32
    %1245 = vector.broadcast %cst_386 : f32 to vector<8x128xf32>
    %1246 = arith.addf %1245, %1244 : vector<8x128xf32>
    %1247 = arith.mulf %1236, %1246 : vector<8x128xf32>
    %1248 = arith.addf %1207, %1247 : vector<8x128xf32>
    %c0_387 = arith.constant 0 : index
    %c0_388 = arith.constant 0 : index
    %1249 = vector.load %arg5[%c0_387, %c0_388] : memref<8x128xf32, #tpu.memory_space<vmem>>, vector<8x128xf32>
    tpu.vector_store %arg5[%c0_387, %c0_388], %1248 {strides = array<i32>} : memref<8x128xf32, #tpu.memory_space<vmem>>, vector<8x128xf32>,
    return
  }
}

</mosaic_0001>

<llo_original>
// kernel: perceiver_forward.1
$region0: #{perceiver_forward.1}
  #allocation0 [shape = 'u32[]', space=smem, size = 0x4, offset = 0x4, fixed_abs, tag = 'smem constant byte address 0x4 - core index']
  #allocation1 [shape = 'u32[72,128]{1,0:T(1,128)}', space=vmem, size = 0x9000, scoped, tag = 'internal scratch']
  %s0 = inlined_call_operand.vmem [shape: f32[16,128], index: 0, kind: input, shape index: {}]
  %s1 = inlined_call_operand.hbm [shape: f32[8,128], index: 1, kind: input, shape index: {}]
  %s2 = inlined_call_operand.hbm [shape: f32[8,128], index: 2, kind: input, shape index: {}]
  %s3 = inlined_call_operand.hbm [shape: bf16[24,128,128], index: 3, kind: input, shape index: {}]
  %s4 = inlined_call_operand.vmem [shape: f32[4,16,128], index: 4, kind: input, shape index: {}]
  %s5 = inlined_call_operand.vmem [shape: f32[8,128], index: 5, kind: output, shape index: {}]
  %s6 = sld [smem:[#allocation0]]
  $region42: #{perceiver_forward.1} parent=0
    _
  %s8 = ssub.s32 1, %s6
  %s9 = scalar_select 0, %s8, %s6
  $region1: #{perceiver_forward.1} parent=0
    #allocation2 [shape = 'u8[4096]{0}', space=vmem, size = 0x1000, scoped, tag = 'input window, operand 1, single buffered']
    #allocation3 [shape = 's32[1]{0}', space=sflag, size = 0x4, scoped, tag = 'scoped memory for perceiver_forward.1']
    #allocation4 [shape = 'u8[4096]{0}', space=vmem, size = 0x1000, scoped, tag = 'input window, operand 2, single buffered']
    #allocation5 [shape = 's32[1]{0}', space=sflag, size = 0x4, scoped, tag = 'scoped memory for perceiver_forward.1']
    #allocation6 [shape = 'u8[786432]{0}', space=vmem, size = 0xc0000, scoped, tag = 'input window, operand 3, single buffered']
    %10 = vsyncpa [#allocation3], 0
    %11 = vsyncpa [#allocation5], 0
    // Predicated region
    $region2: #{perceiver_forward.1} parent=1 // pred_check
      _
    $region3: #{perceiver_forward.1} parent=1 // pred_check_branch
      %13 = sbr.rel (0) target = $region5
    $region4: #{perceiver_forward.1} parent=1 // pred_region
      _
    $region5: #{perceiver_forward.1} parent=1 // pred_fallthru
      _
    // Predicated region
    $region6: #{perceiver_forward.1} parent=1 // pred_check
      _
    $region7: #{perceiver_forward.1} parent=1 // pred_check_branch
      %15 = sbr.rel (0) target = $region9
    $region8: #{perceiver_forward.1} parent=1 // pred_region
      %17 = vsyncadd [#allocation3], 0
      %s19 = sshll.u32 %s1, 4
      %s20 = int_to_ptr.hbm [resolvable:$true] %s19
      %s21 = sshll.u32 [#allocation2], 4
      %s22 = int_to_ptr.vmem [resolvable:$true] %s21
      %24 = dma.hbm_to_vmem [thread:$0]  %s20, 128, %s22, [#allocation3]
    $region9: #{perceiver_forward.1} parent=1 // pred_fallthru
      _
    // Predicated region
    $region10: #{perceiver_forward.1} parent=1 // pred_check
      _
    $region11: #{perceiver_forward.1} parent=1 // pred_check_branch
      %26 = sbr.rel (0) target = $region13
    $region12: #{perceiver_forward.1} parent=1 // pred_region
      %28 = vsyncadd [#allocation5], 0
      %s30 = sshll.u32 %s2, 4
      %s31 = int_to_ptr.hbm [resolvable:$true] %s30
      %s32 = sshll.u32 [#allocation4], 4
      %s33 = int_to_ptr.vmem [resolvable:$true] %s32
      %35 = dma.hbm_to_vmem [thread:$0]  %s31, 128, %s33, [#allocation5]
    $region13: #{perceiver_forward.1} parent=1 // pred_fallthru
      _
    // Predicated region
    $region14: #{perceiver_forward.1} parent=1 // pred_check
      _
    $region15: #{perceiver_forward.1} parent=1 // pred_check_branch
      %37 = sbr.rel (0) target = $region17
    $region16: #{perceiver_forward.1} parent=1 // pred_region
      %39 = vsyncadd [#allocation5], 0
      %s40 = sshll.u32 %s3, 4
      %s41 = int_to_ptr.hbm [resolvable:$true] %s40
      %s42 = sshll.u32 [#allocation6], 4
      %s43 = int_to_ptr.vmem [resolvable:$true] %s42
      %48 = dma.hbm_to_vmem [thread:$0]  %s41, 24576, %s43, [#allocation5], 64, 64, 4
    $region17: #{perceiver_forward.1} parent=1 // pred_fallthru
      _
    // Predicated region
    $region18: #{perceiver_forward.1} parent=1 // pred_check
      _
    $region19: #{perceiver_forward.1} parent=1 // pred_check_branch
      %50 = sbr.rel (0) target = $region21
    $region20: #{perceiver_forward.1} parent=1 // pred_region
      _
    $region21: #{perceiver_forward.1} parent=1 // pred_fallthru
      _
    // Predicated region
    $region22: #{perceiver_forward.1} parent=1 // pred_check
      _
    $region23: #{perceiver_forward.1} parent=1 // pred_check_branch
      %52 = sbr.rel (0) target = $region25
    $region24: #{perceiver_forward.1} parent=1 // pred_region
      %54 = dma.done [#allocation3], 128
    $region25: #{perceiver_forward.1} parent=1 // pred_fallthru
      _
    // Predicated region
    $region26: #{perceiver_forward.1} parent=1 // pred_check
      _
    $region27: #{perceiver_forward.1} parent=1 // pred_check_branch
      %56 = sbr.rel (0) target = $region29
    $region28: #{perceiver_forward.1} parent=1 // pred_region
      %58 = dma.done [#allocation5], 128
    $region29: #{perceiver_forward.1} parent=1 // pred_fallthru
      _
    // Predicated region
    $region30: #{perceiver_forward.1} parent=1 // pred_check
      _
    $region31: #{perceiver_forward.1} parent=1 // pred_check_branch
      %60 = sbr.rel (0) target = $region33
    $region32: #{perceiver_forward.1} parent=1 // pred_region
      %62 = dma.done [#allocation5], 24576
    $region33: #{perceiver_forward.1} parent=1 // pred_fallthru
      _
    %v64 = vld [vmem:[%s0] sm:$0xff]
    %v65 = vld [vmem:[%s0 + $0x8] sm:$0xff]
    %v66 = vld [vmem:[#allocation2] sm:$0xff]
    %v67 = vld [vmem:[#allocation4] sm:$0xff]
    %v68 = vlaneseq
    %v69 = vand.u32 %v68, 127
    %v70 = vld [vmem:[%s4] sm:$0xff]
    %v71 = vld [vmem:[%s4 + $0x8] sm:$0xff]
    %72 = vadd.xlane.f32.xlu0 %v66
    %v73 = vpop.xlane.xlu0 %72
    %v74 = vmul.f32 %v73, 0.03125
    %v75 = vmul.f32 %v66, %v66
    %76 = vadd.xlane.f32.xlu0 %v75
    %v77 = vpop.xlane.xlu0 %76
    %v78 = vmul.f32 %v77, 0.03125
    %v79 = vmul.f32 %v74, %v74
    %v80 = vsub.f32 %v78, %v79
    %v81 = vsub.f32 %v66, %v74
    %v82 = vadd.f32 %v80, 1e-05
    %v83 = vrsqrt.pop %v82
    %v84 = vmul.f32 %v83, %v82
    %v85 = vmul.f32 %v84, %v83
    %v86 = vmul.f32 0.5, %v85
    %v87 = vsub.f32 1.5, %v86
    %v88 = vmul.f32 %v83, %v87
    %vm89 = vweird.f32 %v82
    %vm90 = vweird.f32 %v83
    %vm91 = vmor %vm89, %vm90
    %v92 = vsel %vm91, %v83, %v88
    %v93 = vmul.f32 %v81, %v92
    %v94 = vperm.slane %v70, 0
    %v95 = vmul.f32 %v93, %v94
    %v96 = vperm.slane %v70, 1
    %v97 = vadd.f32 %v95, %v96
    %98 = vadd.xlane.f32.xlu0 %v64
    %v99 = vpop.xlane.xlu0 %98
    %100 = vadd.xlane.f32.xlu0 %v65
    %v101 = vpop.xlane.xlu0 %100
    %v102 = vmul.f32 %v99, 0.0625
    %v103 = vmul.f32 %v101, 0.0625
    %v104 = vmul.f32 %v64, %v64
    %v105 = vmul.f32 %v65, %v65
    %106 = vadd.xlane.f32.xlu0 %v104
    %v107 = vpop.xlane.xlu0 %106
    %108 = vadd.xlane.f32.xlu0 %v105
    %v109 = vpop.xlane.xlu0 %108
    %v110 = vmul.f32 %v107, 0.0625
    %v111 = vmul.f32 %v109, 0.0625
    %v112 = vmul.f32 %v102, %v102
    %v113 = vmul.f32 %v103, %v103
    %v114 = vsub.f32 %v110, %v112
    %v115 = vsub.f32 %v111, %v113
    %v116 = vsub.f32 %v64, %v102
    %v117 = vsub.f32 %v65, %v103
    %v118 = vadd.f32 %v114, 1e-05
    %v119 = vadd.f32 %v115, 1e-05
    %v120 = vrsqrt.pop %v118
    %v121 = vmul.f32 %v120, %v118
    %v122 = vmul.f32 %v121, %v120
    %v123 = vmul.f32 0.5, %v122
    %v124 = vsub.f32 1.5, %v123
    %v125 = vmul.f32 %v120, %v124
    %vm126 = vweird.f32 %v118
    %vm127 = vweird.f32 %v120
    %vm128 = vmor %vm126, %vm127
    %v129 = vsel %vm128, %v120, %v125
    %v130 = vrsqrt.pop %v119
    %v131 = vmul.f32 %v130, %v119
    %v132 = vmul.f32 %v131, %v130
    %v133 = vmul.f32 0.5, %v132
    %v134 = vsub.f32 1.5, %v133
    %v135 = vmul.f32 %v130, %v134
    %vm136 = vweird.f32 %v119
    %vm137 = vweird.f32 %v130
    %vm138 = vmor %vm136, %vm137
    %v139 = vsel %vm138, %v130, %v135
    %v140 = vmul.f32 %v116, %v129
    %v141 = vmul.f32 %v117, %v139
    %v142 = vperm.slane %v70, 2
    %v143 = vmul.f32 %v140, %v142
    %v144 = vmul.f32 %v141, %v142
    %v145 = vperm.slane %v70, 3
    %v146 = vadd.f32 %v143, %v145
    %v147 = vadd.f32 %v144, %v145
    %v148 = vld [vmem:[#allocation6] sm:$0xf]
    %v149 = vld [vmem:[#allocation6 + $0x4] sm:$0xf]
    %v150 = vld [vmem:[#allocation6 + $0x8] sm:$0xf]
    %v151 = vld [vmem:[#allocation6 + $0xc] sm:$0xf]
    %v152 = vld [vmem:[#allocation6 + $0x10] sm:$0xf]
    %v153 = vld [vmem:[#allocation6 + $0x14] sm:$0xf]
    %v154 = vld [vmem:[#allocation6 + $0x18] sm:$0xf]
    %v155 = vld [vmem:[#allocation6 + $0x1c] sm:$0xf]
    %v156 = vld [vmem:[#allocation6 + $0x20] sm:$0xf]
    %v157 = vld [vmem:[#allocation6 + $0x24] sm:$0xf]
    %v158 = vld [vmem:[#allocation6 + $0x28] sm:$0xf]
    %v159 = vld [vmem:[#allocation6 + $0x2c] sm:$0xf]
    %v160 = vld [vmem:[#allocation6 + $0x30] sm:$0xf]
    %v161 = vld [vmem:[#allocation6 + $0x34] sm:$0xf]
    %v162 = vld [vmem:[#allocation6 + $0x38] sm:$0xf]
    %v163 = vld [vmem:[#allocation6 + $0x3c] sm:$0xf]
    %v164 = vpack.c.bf16 %v97, %v97
    %v165 = vperm.slane %v70, 6
    %v182 = vunpack.c.l.b16 %v148
    %v183 = vunpack.c.l.b16 %v149
    %v184 = vunpack.c.l.b16 %v150
    %v185 = vunpack.c.l.b16 %v151
    %v186 = vunpack.c.l.b16 %v152
    %v187 = vunpack.c.l.b16 %v153
    %v188 = vunpack.c.l.b16 %v154
    %v189 = vunpack.c.l.b16 %v155
    %v190 = vunpack.c.l.b16 %v156
    %v191 = vunpack.c.l.b16 %v157
    %v192 = vunpack.c.l.b16 %v158
    %v193 = vunpack.c.l.b16 %v159
    %v194 = vunpack.c.l.b16 %v160
    %v195 = vunpack.c.l.b16 %v161
    %v196 = vunpack.c.l.b16 %v162
    %v197 = vunpack.c.l.b16 %v163
    %v198 = vpack.c.b16 %v183, %v182
    %v199 = vpack.c.b16 %v185, %v184
    %v200 = vpack.c.b16 %v187, %v186
    %v201 = vpack.c.b16 %v189, %v188
    %v202 = vpack.c.b16 %v191, %v190
    %v203 = vpack.c.b16 %v193, %v192
    %v204 = vpack.c.b16 %v195, %v194
    %v205 = vpack.c.b16 %v197, %v196
    %214 = vmatpush.bf16.msra.mxu0 %v205
    %215 = vmatpush.bf16.msra.mxu0 %v204
    %216 = vmatpush.bf16.msra.mxu0 %v203
    %217 = vmatpush.bf16.msra.mxu0 %v202
    %218 = vmatpush.bf16.msra.mxu0 %v201
    %219 = vmatpush.bf16.msra.mxu0 %v200
    %220 = vmatpush.bf16.msra.mxu0 %v199
    %221 = vmatpush.bf16.msra.mxu0 %v198
    %222 = vmatmul.bf16.gmra.mxu0 %v164
    %v223 = vpop.f32.mrf.mxu0
    %v224 = vadd.f32 %v165, %v223
    %v225 = vpop.f32.mrf.mxu0
    %226 = vdwg.mxu0
    %s227 = scalar_lea.vmem [#allocation6], 64
    %v228 = vld [vmem:[%s227] sm:$0xf]
    %v229 = vld [vmem:[%s227 + $0x4] sm:$0xf]
    %v230 = vld [vmem:[%s227 + $0x8] sm:$0xf]
    %v231 = vld [vmem:[%s227 + $0xc] sm:$0xf]
    %v232 = vld [vmem:[%s227 + $0x10] sm:$0xf]
    %v233 = vld [vmem:[%s227 + $0x14] sm:$0xf]
    %v234 = vld [vmem:[%s227 + $0x18] sm:$0xf]
    %v235 = vld [vmem:[%s227 + $0x1c] sm:$0xf]
    %v236 = vld [vmem:[%s227 + $0x20] sm:$0xf]
    %v237 = vld [vmem:[%s227 + $0x24] sm:$0xf]
    %v238 = vld [vmem:[%s227 + $0x28] sm:$0xf]
    %v239 = vld [vmem:[%s227 + $0x2c] sm:$0xf]
    %v240 = vld [vmem:[%s227 + $0x30] sm:$0xf]
    %v241 = vld [vmem:[%s227 + $0x34] sm:$0xf]
    %v242 = vld [vmem:[%s227 + $0x38] sm:$0xf]
    %v243 = vld [vmem:[%s227 + $0x3c] sm:$0xf]
    %v244 = vpack.c.bf16 %v147, %v146
    %v245 = vperm.slane %v70, 7
    %v262 = vunpack.c.l.b16 %v228
    %v263 = vunpack.c.l.b16 %v229
    %v264 = vunpack.c.l.b16 %v230
    %v265 = vunpack.c.l.b16 %v231
    %v266 = vunpack.c.l.b16 %v232
    %v267 = vunpack.c.l.b16 %v233
    %v268 = vunpack.c.l.b16 %v234
    %v269 = vunpack.c.l.b16 %v235
    %v270 = vunpack.c.l.b16 %v236
    %v271 = vunpack.c.l.b16 %v237
    %v272 = vunpack.c.l.b16 %v238
    %v273 = vunpack.c.l.b16 %v239
    %v274 = vunpack.c.l.b16 %v240
    %v275 = vunpack.c.l.b16 %v241
    %v276 = vunpack.c.l.b16 %v242
    %v277 = vunpack.c.l.b16 %v243
    %v278 = vpack.c.b16 %v263, %v262
    %v279 = vpack.c.b16 %v265, %v264
    %v280 = vpack.c.b16 %v267, %v266
    %v281 = vpack.c.b16 %v269, %v268
    %v282 = vpack.c.b16 %v271, %v270
    %v283 = vpack.c.b16 %v273, %v272
    %v284 = vpack.c.b16 %v275, %v274
    %v285 = vpack.c.b16 %v277, %v276
    %294 = vmatpush.bf16.msra.mxu0 %v285
    %295 = vmatpush.bf16.msra.mxu0 %v284
    %296 = vmatpush.bf16.msra.mxu0 %v283
    %297 = vmatpush.bf16.msra.mxu0 %v282
    %298 = vmatpush.bf16.msra.mxu0 %v281
    %299 = vmatpush.bf16.msra.mxu0 %v280
    %300 = vmatpush.bf16.msra.mxu0 %v279
    %301 = vmatpush.bf16.msra.mxu0 %v278
    %302 = vmatmul.bf16.gmra.mxu0 %v244
    %v303 = vpop.f32.mrf.mxu0
    %v304 = vadd.f32 %v245, %v303
    %v305 = vpop.f32.mrf.mxu0
    %v306 = vadd.f32 %v245, %v305
    %307 = vdwg.mxu0
    %s308 = scalar_lea.vmem [#allocation6], 128
    %v309 = vld [vmem:[%s308] sm:$0xf]
    %v310 = vld [vmem:[%s308 + $0x4] sm:$0xf]
    %v311 = vld [vmem:[%s308 + $0x8] sm:$0xf]
    %v312 = vld [vmem:[%s308 + $0xc] sm:$0xf]
    %v313 = vld [vmem:[%s308 + $0x10] sm:$0xf]
    %v314 = vld [vmem:[%s308 + $0x14] sm:$0xf]
    %v315 = vld [vmem:[%s308 + $0x18] sm:$0xf]
    %v316 = vld [vmem:[%s308 + $0x1c] sm:$0xf]
    %v317 = vld [vmem:[%s308 + $0x20] sm:$0xf]
    %v318 = vld [vmem:[%s308 + $0x24] sm:$0xf]
    %v319 = vld [vmem:[%s308 + $0x28] sm:$0xf]
    %v320 = vld [vmem:[%s308 + $0x2c] sm:$0xf]
    %v321 = vld [vmem:[%s308 + $0x30] sm:$0xf]
    %v322 = vld [vmem:[%s308 + $0x34] sm:$0xf]
    %v323 = vld [vmem:[%s308 + $0x38] sm:$0xf]
    %v324 = vld [vmem:[%s308 + $0x3c] sm:$0xf]
    %v325 = vperm.slane %v71, 0
    %v342 = vunpack.c.l.b16 %v309
    %v343 = vunpack.c.l.b16 %v310
    %v344 = vunpack.c.l.b16 %v311
    %v345 = vunpack.c.l.b16 %v312
    %v346 = vunpack.c.l.b16 %v313
    %v347 = vunpack.c.l.b16 %v314
    %v348 = vunpack.c.l.b16 %v315
    %v349 = vunpack.c.l.b16 %v316
    %v350 = vunpack.c.l.b16 %v317
    %v351 = vunpack.c.l.b16 %v318
    %v352 = vunpack.c.l.b16 %v319
    %v353 = vunpack.c.l.b16 %v320
    %v354 = vunpack.c.l.b16 %v321
    %v355 = vunpack.c.l.b16 %v322
    %v356 = vunpack.c.l.b16 %v323
    %v357 = vunpack.c.l.b16 %v324
    %v358 = vpack.c.b16 %v343, %v342
    %v359 = vpack.c.b16 %v345, %v344
    %v360 = vpack.c.b16 %v347, %v346
    %v361 = vpack.c.b16 %v349, %v348
    %v362 = vpack.c.b16 %v351, %v350
    %v363 = vpack.c.b16 %v353, %v352
    %v364 = vpack.c.b16 %v355, %v354
    %v365 = vpack.c.b16 %v357, %v356
    %374 = vmatpush.bf16.msra.mxu0 %v365
    %375 = vmatpush.bf16.msra.mxu0 %v364
    %376 = vmatpush.bf16.msra.mxu0 %v363
    %377 = vmatpush.bf16.msra.mxu0 %v362
    %378 = vmatpush.bf16.msra.mxu0 %v361
    %379 = vmatpush.bf16.msra.mxu0 %v360
    %380 = vmatpush.bf16.msra.mxu0 %v359
    %381 = vmatpush.bf16.msra.mxu0 %v358
    %382 = vmatmul.bf16.gmra.mxu0 %v244
    %v383 = vpop.f32.mrf.mxu0
    %v384 = vadd.f32 %v325, %v383
    %v385 = vpop.f32.mrf.mxu0
    %v386 = vadd.f32 %v325, %v385
    %387 = vdwg.mxu0
    %vm388 = vcmp.ge.s32.totalorder %v69, 0
    %vm389 = vcmp.lt.s32.totalorder %v69, 16
    %vm390 = vmand %vm388, %vm389
    %v391 = vsel %vm390, 0.25, 0.0
    %v392 = vmul.f32 %v224, %v391
    %v393 = vpack.c.bf16 %v392, %v392
    %v394 = vpack.c.bf16 %v306, %v304
    %395 = vmatpush.bf16.xpose.msra.mxu0 0
    %396 = vmatpush.bf16.xpose.msra.mxu0 0
    %397 = vmatpush.bf16.xpose.msra.mxu0 0
    %398 = vmatpush.bf16.xpose.msra.mxu0 0
    %399 = vmatpush.bf16.xpose.msra.mxu0 0
    %400 = vmatpush.bf16.xpose.msra.mxu0 0
    %401 = vmatpush.bf16.xpose.msra.mxu0 0
    %402 = vmatpush.bf16.xpose.msra.mxu0 %v394
    %403 = vmatmul.bf16.gmra.mxu0 %v393
    %v404 = vpop.f32.mrf.mxu0
    %v405 = vadd.f32 0.0, %v404
    %v406 = vpop.f32.mrf.mxu0
    %407 = vdwg.mxu0
    %vm408 = vcmask 130048
    %v409 = vsel %vm408, %v405, -inf
    %410 = vmax.xlane.f32.xlu0 %v409
    %v411 = vpop.xlane.xlu0 %410
    %v412 = vsub.f32 %v405, %v411
    %v413 = vmul.f32 %v412, 1.442695
    %v414 = vpow.pop %v413
    %v415 = vsel %vm408, %v414, 0.0
    %416 = vadd.xlane.f32.xlu0 %v415
    %v417 = vpop.xlane.xlu0 %416
    %v418 = vrcp.pop %v417
    %v419 = vmul.f32 %v414, %v418
    %v420 = vpack.c.bf16 %v419, %v419
    %v421 = vpack.c.bf16 %v386, %v384
    %v423 = vsel %vm408, %v420, 0
    %425 = vmatpush.bf16.msra.mxu0 0
    %426 = vmatpush.bf16.msra.mxu0 0
    %427 = vmatpush.bf16.msra.mxu0 0
    %428 = vmatpush.bf16.msra.mxu0 0
    %429 = vmatpush.bf16.msra.mxu0 0
    %430 = vmatpush.bf16.msra.mxu0 0
    %431 = vmatpush.bf16.msra.mxu0 0
    %432 = vmatpush.bf16.msra.mxu0 %v421
    %433 = vmatmul.bf16.gmra.mxu0 %v423
    %v434 = vpop.f32.mrf.mxu0
    %v435 = vadd.f32 0.0, %v434
    %v436 = vpop.f32.mrf.mxu0
    %437 = vdwg.mxu0
    %v438 = vsel %vm390, 1.0, 0.0
    %v439 = vmul.f32 %v435, %v438
    %v440 = vadd.f32 %v439, 0.0
    %vm441 = vcmp.ge.s32.totalorder %v69, 16
    %vm442 = vcmp.lt.s32.totalorder %v69, 32
    %vm443 = vmand %vm441, %vm442
    %v444 = vsel %vm443, 0.25, 0.0
    %v445 = vmul.f32 %v224, %v444
    %v446 = vpack.c.bf16 %v445, %v445
    %447 = vmatpush.bf16.xpose.msra.mxu0 0
    %448 = vmatpush.bf16.xpose.msra.mxu0 0
    %449 = vmatpush.bf16.xpose.msra.mxu0 0
    %450 = vmatpush.bf16.xpose.msra.mxu0 0
    %451 = vmatpush.bf16.xpose.msra.mxu0 0
    %452 = vmatpush.bf16.xpose.msra.mxu0 0
    %453 = vmatpush.bf16.xpose.msra.mxu0 0
    %454 = vmatpush.bf16.xpose.msra.mxu0 %v394
    %455 = vmatmul.bf16.gmra.mxu0 %v446
    %v456 = vpop.f32.mrf.mxu0
    %v457 = vadd.f32 0.0, %v456
    %v458 = vpop.f32.mrf.mxu0
    %459 = vdwg.mxu0
    %v460 = vsel %vm408, %v457, -inf
    %461 = vmax.xlane.f32.xlu0 %v460
    %v462 = vpop.xlane.xlu0 %461
    %v463 = vsub.f32 %v457, %v462
    %v464 = vmul.f32 %v463, 1.442695
    %v465 = vpow.pop %v464
    %v466 = vsel %vm408, %v465, 0.0
    %467 = vadd.xlane.f32.xlu0 %v466
    %v468 = vpop.xlane.xlu0 %467
    %v469 = vrcp.pop %v468
    %v470 = vmul.f32 %v465, %v469
    %v471 = vpack.c.bf16 %v470, %v470
    %v473 = vsel %vm408, %v471, 0
    %475 = vmatpush.bf16.msra.mxu0 0
    %476 = vmatpush.bf16.msra.mxu0 0
    %477 = vmatpush.bf16.msra.mxu0 0
    %478 = vmatpush.bf16.msra.mxu0 0
    %479 = vmatpush.bf16.msra.mxu0 0
    %480 = vmatpush.bf16.msra.mxu0 0
    %481 = vmatpush.bf16.msra.mxu0 0
    %482 = vmatpush.bf16.msra.mxu0 %v421
    %483 = vmatmul.bf16.gmra.mxu0 %v473
    %v484 = vpop.f32.mrf.mxu0
    %v485 = vadd.f32 0.0, %v484
    %v486 = vpop.f32.mrf.mxu0
    %487 = vdwg.mxu0
    %v488 = vsel %vm443, 1.0, 0.0
    %v489 = vmul.f32 %v485, %v488
    %v490 = vadd.f32 %v440, %v489
    %s491 = scalar_lea.vmem [#allocation6], 192
    %v492 = vld [vmem:[%s491] sm:$0xf]
    %v493 = vld [vmem:[%s491 + $0x4] sm:$0xf]
    %v494 = vld [vmem:[%s491 + $0x8] sm:$0xf]
    %v495 = vld [vmem:[%s491 + $0xc] sm:$0xf]
    %v496 = vld [vmem:[%s491 + $0x10] sm:$0xf]
    %v497 = vld [vmem:[%s491 + $0x14] sm:$0xf]
    %v498 = vld [vmem:[%s491 + $0x18] sm:$0xf]
    %v499 = vld [vmem:[%s491 + $0x1c] sm:$0xf]
    %v500 = vld [vmem:[%s491 + $0x20] sm:$0xf]
    %v501 = vld [vmem:[%s491 + $0x24] sm:$0xf]
    %v502 = vld [vmem:[%s491 + $0x28] sm:$0xf]
    %v503 = vld [vmem:[%s491 + $0x2c] sm:$0xf]
    %v504 = vld [vmem:[%s491 + $0x30] sm:$0xf]
    %v505 = vld [vmem:[%s491 + $0x34] sm:$0xf]
    %v506 = vld [vmem:[%s491 + $0x38] sm:$0xf]
    %v507 = vld [vmem:[%s491 + $0x3c] sm:$0xf]
    %v508 = vpack.c.bf16 %v490, %v490
    %v509 = vperm.slane %v71, 1
    %v526 = vunpack.c.l.b16 %v492
    %v527 = vunpack.c.l.b16 %v493
    %v528 = vunpack.c.l.b16 %v494
    %v529 = vunpack.c.l.b16 %v495
    %v530 = vunpack.c.l.b16 %v496
    %v531 = vunpack.c.l.b16 %v497
    %v532 = vunpack.c.l.b16 %v498
    %v533 = vunpack.c.l.b16 %v499
    %v534 = vunpack.c.l.b16 %v500
    %v535 = vunpack.c.l.b16 %v501
    %v536 = vunpack.c.l.b16 %v502
    %v537 = vunpack.c.l.b16 %v503
    %v538 = vunpack.c.l.b16 %v504
    %v539 = vunpack.c.l.b16 %v505
    %v540 = vunpack.c.l.b16 %v506
    %v541 = vunpack.c.l.b16 %v507
    %v542 = vpack.c.b16 %v527, %v526
    %v543 = vpack.c.b16 %v529, %v528
    %v544 = vpack.c.b16 %v531, %v530
    %v545 = vpack.c.b16 %v533, %v532
    %v546 = vpack.c.b16 %v535, %v534
    %v547 = vpack.c.b16 %v537, %v536
    %v548 = vpack.c.b16 %v539, %v538
    %v549 = vpack.c.b16 %v541, %v540
    %558 = vmatpush.bf16.msra.mxu0 %v549
    %559 = vmatpush.bf16.msra.mxu0 %v548
    %560 = vmatpush.bf16.msra.mxu0 %v547
    %561 = vmatpush.bf16.msra.mxu0 %v546
    %562 = vmatpush.bf16.msra.mxu0 %v545
    %563 = vmatpush.bf16.msra.mxu0 %v544
    %564 = vmatpush.bf16.msra.mxu0 %v543
    %565 = vmatpush.bf16.msra.mxu0 %v542
    %566 = vmatmul.bf16.gmra.mxu0 %v508
    %v567 = vpop.f32.mrf.mxu0
    %v568 = vadd.f32 %v509, %v567
    %v569 = vpop.f32.mrf.mxu0
    %570 = vdwg.mxu0
    %v571 = vadd.f32 %v97, %v568
    %572 = vadd.xlane.f32.xlu0 %v571
    %v573 = vpop.xlane.xlu0 %572
    %v574 = vmul.f32 %v573, 0.03125
    %v575 = vmul.f32 %v571, %v571
    %576 = vadd.xlane.f32.xlu0 %v575
    %v577 = vpop.xlane.xlu0 %576
    %v578 = vmul.f32 %v577, 0.03125
    %v579 = vmul.f32 %v574, %v574
    %v580 = vsub.f32 %v578, %v579
    %v581 = vsub.f32 %v571, %v574
    %v582 = vadd.f32 %v580, 1e-05
    %v583 = vrsqrt.pop %v582
    %v584 = vmul.f32 %v583, %v582
    %v585 = vmul.f32 %v584, %v583
    %v586 = vmul.f32 0.5, %v585
    %v587 = vsub.f32 1.5, %v586
    %v588 = vmul.f32 %v583, %v587
    %vm589 = vweird.f32 %v582
    %vm590 = vweird.f32 %v583
    %vm591 = vmor %vm589, %vm590
    %v592 = vsel %vm591, %v583, %v588
    %v593 = vmul.f32 %v581, %v592
    %v594 = vperm.slane %v70, 4
    %v595 = vmul.f32 %v593, %v594
    %v596 = vperm.slane %v70, 5
    %v597 = vadd.f32 %v595, %v596
    %s598 = scalar_lea.vmem [#allocation6], 256
    %v599 = vld [vmem:[%s598] sm:$0xf]
    %v600 = vld [vmem:[%s598 + $0x4] sm:$0xf]
    %v601 = vld [vmem:[%s598 + $0x8] sm:$0xf]
    %v602 = vld [vmem:[%s598 + $0xc] sm:$0xf]
    %v603 = vld [vmem:[%s598 + $0x10] sm:$0xf]
    %v604 = vld [vmem:[%s598 + $0x14] sm:$0xf]
    %v605 = vld [vmem:[%s598 + $0x18] sm:$0xf]
    %v606 = vld [vmem:[%s598 + $0x1c] sm:$0xf]
    %v607 = vld [vmem:[%s598 + $0x20] sm:$0xf]
    %v608 = vld [vmem:[%s598 + $0x24] sm:$0xf]
    %v609 = vld [vmem:[%s598 + $0x28] sm:$0xf]
    %v610 = vld [vmem:[%s598 + $0x2c] sm:$0xf]
    %v611 = vld [vmem:[%s598 + $0x30] sm:$0xf]
    %v612 = vld [vmem:[%s598 + $0x34] sm:$0xf]
    %v613 = vld [vmem:[%s598 + $0x38] sm:$0xf]
    %v614 = vld [vmem:[%s598 + $0x3c] sm:$0xf]
    %v615 = vpack.c.bf16 %v597, %v597
    %v616 = vperm.slane %v71, 2
    %v633 = vunpack.c.l.b16 %v599
    %v634 = vunpack.c.l.b16 %v600
    %v635 = vunpack.c.l.b16 %v601
    %v636 = vunpack.c.l.b16 %v602
    %v637 = vunpack.c.l.b16 %v603
    %v638 = vunpack.c.l.b16 %v604
    %v639 = vunpack.c.l.b16 %v605
    %v640 = vunpack.c.l.b16 %v606
    %v641 = vunpack.c.l.b16 %v607
    %v642 = vunpack.c.l.b16 %v608
    %v643 = vunpack.c.l.b16 %v609
    %v644 = vunpack.c.l.b16 %v610
    %v645 = vunpack.c.l.b16 %v611
    %v646 = vunpack.c.l.b16 %v612
    %v647 = vunpack.c.l.b16 %v613
    %v648 = vunpack.c.l.b16 %v614
    %v649 = vpack.c.b16 %v634, %v633
    %v650 = vpack.c.b16 %v636, %v635
    %v651 = vpack.c.b16 %v638, %v637
    %v652 = vpack.c.b16 %v640, %v639
    %v653 = vpack.c.b16 %v642, %v641
    %v654 = vpack.c.b16 %v644, %v643
    %v655 = vpack.c.b16 %v646, %v645
    %v656 = vpack.c.b16 %v648, %v647
    %665 = vmatpush.bf16.msra.mxu0 %v656
    %666 = vmatpush.bf16.msra.mxu0 %v655
    %667 = vmatpush.bf16.msra.mxu0 %v654
    %668 = vmatpush.bf16.msra.mxu0 %v653
    %669 = vmatpush.bf16.msra.mxu0 %v652
    %670 = vmatpush.bf16.msra.mxu0 %v651
    %671 = vmatpush.bf16.msra.mxu0 %v650
    %672 = vmatpush.bf16.msra.mxu0 %v649
    %673 = vmatmul.bf16.gmra.mxu0 %v615
    %v674 = vpop.f32.mrf.mxu0
    %v675 = vadd.f32 %v616, %v674
    %v676 = vpop.f32.mrf.mxu0
    %677 = vdwg.mxu0
    %v678 = vmul.f32 %v675, 0.5
    %v679 = vmul.f32 %v675, 0.044715
    %v680 = vmul.f32 %v679, %v675
    %v681 = vmul.f32 %v680, %v675
    %v682 = vadd.f32 %v675, %v681
    %v683 = vmul.f32 %v682, 0.7978846
    %v684 = vtanh.pop %v683
    %v685 = vadd.f32 %v684, 1.0
    %v686 = vmul.f32 %v678, %v685
    %s687 = scalar_lea.vmem [#allocation6], 320
    %v688 = vld [vmem:[%s687] sm:$0xf]
    %v689 = vld [vmem:[%s687 + $0x4] sm:$0xf]
    %v690 = vld [vmem:[%s687 + $0x8] sm:$0xf]
    %v691 = vld [vmem:[%s687 + $0xc] sm:$0xf]
    %v692 = vld [vmem:[%s687 + $0x10] sm:$0xf]
    %v693 = vld [vmem:[%s687 + $0x14] sm:$0xf]
    %v694 = vld [vmem:[%s687 + $0x18] sm:$0xf]
    %v695 = vld [vmem:[%s687 + $0x1c] sm:$0xf]
    %v696 = vld [vmem:[%s687 + $0x20] sm:$0xf]
    %v697 = vld [vmem:[%s687 + $0x24] sm:$0xf]
    %v698 = vld [vmem:[%s687 + $0x28] sm:$0xf]
    %v699 = vld [vmem:[%s687 + $0x2c] sm:$0xf]
    %v700 = vld [vmem:[%s687 + $0x30] sm:$0xf]
    %v701 = vld [vmem:[%s687 + $0x34] sm:$0xf]
    %v702 = vld [vmem:[%s687 + $0x38] sm:$0xf]
    %v703 = vld [vmem:[%s687 + $0x3c] sm:$0xf]
    %v704 = vpack.c.bf16 %v686, %v686
    %v705 = vperm.slane %v71, 3
    %v722 = vunpack.c.l.b16 %v688
    %v723 = vunpack.c.l.b16 %v689
    %v724 = vunpack.c.l.b16 %v690
    %v725 = vunpack.c.l.b16 %v691
    %v726 = vunpack.c.l.b16 %v692
    %v727 = vunpack.c.l.b16 %v693
    %v728 = vunpack.c.l.b16 %v694
    %v729 = vunpack.c.l.b16 %v695
    %v730 = vunpack.c.l.b16 %v696
    %v731 = vunpack.c.l.b16 %v697
    %v732 = vunpack.c.l.b16 %v698
    %v733 = vunpack.c.l.b16 %v699
    %v734 = vunpack.c.l.b16 %v700
    %v735 = vunpack.c.l.b16 %v701
    %v736 = vunpack.c.l.b16 %v702
    %v737 = vunpack.c.l.b16 %v703
    %v738 = vpack.c.b16 %v723, %v722
    %v739 = vpack.c.b16 %v725, %v724
    %v740 = vpack.c.b16 %v727, %v726
    %v741 = vpack.c.b16 %v729, %v728
    %v742 = vpack.c.b16 %v731, %v730
    %v743 = vpack.c.b16 %v733, %v732
    %v744 = vpack.c.b16 %v735, %v734
    %v745 = vpack.c.b16 %v737, %v736
    %754 = vmatpush.bf16.msra.mxu0 %v745
    %755 = vmatpush.bf16.msra.mxu0 %v744
    %756 = vmatpush.bf16.msra.mxu0 %v743
    %757 = vmatpush.bf16.msra.mxu0 %v742
    %758 = vmatpush.bf16.msra.mxu0 %v741
    %759 = vmatpush.bf16.msra.mxu0 %v740
    %760 = vmatpush.bf16.msra.mxu0 %v739
    %761 = vmatpush.bf16.msra.mxu0 %v738
    %762 = vmatmul.bf16.gmra.mxu0 %v704
    %v763 = vpop.f32.mrf.mxu0
    %v764 = vadd.f32 %v705, %v763
    %v765 = vpop.f32.mrf.mxu0
    %766 = vdwg.mxu0
    %v767 = vmul.f32 %v764, 0.5
    %v768 = vmul.f32 %v764, 0.044715
    %v769 = vmul.f32 %v768, %v764
    %v770 = vmul.f32 %v769, %v764
    %v771 = vadd.f32 %v764, %v770
    %v772 = vmul.f32 %v771, 0.7978846
    %v773 = vtanh.pop %v772
    %v774 = vadd.f32 %v773, 1.0
    %v775 = vmul.f32 %v767, %v774
    %v776 = vadd.f32 %v597, %v775
    %s777 = scalar_lea.vmem %s4, 16
    %v778 = vld [vmem:[%s777] sm:$0xff]
    %v779 = vld [vmem:[%s777 + $0x8] sm:$0xff]
    %780 = vadd.xlane.f32.xlu0 %v776
    %v781 = vpop.xlane.xlu0 %780
    %v782 = vmul.f32 %v781, 0.03125
    %v783 = vmul.f32 %v776, %v776
    %784 = vadd.xlane.f32.xlu0 %v783
    %v785 = vpop.xlane.xlu0 %784
    %v786 = vmul.f32 %v785, 0.03125
    %v787 = vmul.f32 %v782, %v782
    %v788 = vsub.f32 %v786, %v787
    %v789 = vsub.f32 %v776, %v782
    %v790 = vadd.f32 %v788, 1e-05
    %v791 = vrsqrt.pop %v790
    %v792 = vmul.f32 %v791, %v790
    %v793 = vmul.f32 %v792, %v791
    %v794 = vmul.f32 0.5, %v793
    %v795 = vsub.f32 1.5, %v794
    %v796 = vmul.f32 %v791, %v795
    %vm797 = vweird.f32 %v790
    %vm798 = vweird.f32 %v791
    %vm799 = vmor %vm797, %vm798
    %v800 = vsel %vm799, %v791, %v796
    %v801 = vmul.f32 %v789, %v800
    %v802 = vperm.slane %v778, 0
    %v803 = vmul.f32 %v801, %v802
    %v804 = vperm.slane %v778, 1
    %v805 = vadd.f32 %v803, %v804
    %s806 = scalar_lea.vmem [#allocation6], 384
    %v807 = vld [vmem:[%s806] sm:$0xf]
    %v808 = vld [vmem:[%s806 + $0x4] sm:$0xf]
    %v809 = vld [vmem:[%s806 + $0x8] sm:$0xf]
    %v810 = vld [vmem:[%s806 + $0xc] sm:$0xf]
    %v811 = vld [vmem:[%s806 + $0x10] sm:$0xf]
    %v812 = vld [vmem:[%s806 + $0x14] sm:$0xf]
    %v813 = vld [vmem:[%s806 + $0x18] sm:$0xf]
    %v814 = vld [vmem:[%s806 + $0x1c] sm:$0xf]
    %v815 = vld [vmem:[%s806 + $0x20] sm:$0xf]
    %v816 = vld [vmem:[%s806 + $0x24] sm:$0xf]
    %v817 = vld [vmem:[%s806 + $0x28] sm:$0xf]
    %v818 = vld [vmem:[%s806 + $0x2c] sm:$0xf]
    %v819 = vld [vmem:[%s806 + $0x30] sm:$0xf]
    %v820 = vld [vmem:[%s806 + $0x34] sm:$0xf]
    %v821 = vld [vmem:[%s806 + $0x38] sm:$0xf]
    %v822 = vld [vmem:[%s806 + $0x3c] sm:$0xf]
    %v823 = vpack.c.bf16 %v805, %v805
    %v824 = vperm.slane %v778, 6
    %v841 = vunpack.c.l.b16 %v807
    %v842 = vunpack.c.l.b16 %v808
    %v843 = vunpack.c.l.b16 %v809
    %v844 = vunpack.c.l.b16 %v810
    %v845 = vunpack.c.l.b16 %v811
    %v846 = vunpack.c.l.b16 %v812
    %v847 = vunpack.c.l.b16 %v813
    %v848 = vunpack.c.l.b16 %v814
    %v849 = vunpack.c.l.b16 %v815
    %v850 = vunpack.c.l.b16 %v816
    %v851 = vunpack.c.l.b16 %v817
    %v852 = vunpack.c.l.b16 %v818
    %v853 = vunpack.c.l.b16 %v819
    %v854 = vunpack.c.l.b16 %v820
    %v855 = vunpack.c.l.b16 %v821
    %v856 = vunpack.c.l.b16 %v822
    %v857 = vpack.c.b16 %v842, %v841
    %v858 = vpack.c.b16 %v844, %v843
    %v859 = vpack.c.b16 %v846, %v845
    %v860 = vpack.c.b16 %v848, %v847
    %v861 = vpack.c.b16 %v850, %v849
    %v862 = vpack.c.b16 %v852, %v851
    %v863 = vpack.c.b16 %v854, %v853
    %v864 = vpack.c.b16 %v856, %v855
    %873 = vmatpush.bf16.msra.mxu0 %v864
    %874 = vmatpush.bf16.msra.mxu0 %v863
    %875 = vmatpush.bf16.msra.mxu0 %v862
    %876 = vmatpush.bf16.msra.mxu0 %v861
    %877 = vmatpush.bf16.msra.mxu0 %v860
    %878 = vmatpush.bf16.msra.mxu0 %v859
    %879 = vmatpush.bf16.msra.mxu0 %v858
    %880 = vmatpush.bf16.msra.mxu0 %v857
    %881 = vmatmul.bf16.gmra.mxu0 %v823
    %v882 = vpop.f32.mrf.mxu0
    %v883 = vadd.f32 %v824, %v882
    %v884 = vpop.f32.mrf.mxu0
    %885 = vdwg.mxu0
    %s886 = scalar_lea.vmem [#allocation6], 448
    %v887 = vld [vmem:[%s886] sm:$0xf]
    %v888 = vld [vmem:[%s886 + $0x4] sm:$0xf]
    %v889 = vld [vmem:[%s886 + $0x8] sm:$0xf]
    %v890 = vld [vmem:[%s886 + $0xc] sm:$0xf]
    %v891 = vld [vmem:[%s886 + $0x10] sm:$0xf]
    %v892 = vld [vmem:[%s886 + $0x14] sm:$0xf]
    %v893 = vld [vmem:[%s886 + $0x18] sm:$0xf]
    %v894 = vld [vmem:[%s886 + $0x1c] sm:$0xf]
    %v895 = vld [vmem:[%s886 + $0x20] sm:$0xf]
    %v896 = vld [vmem:[%s886 + $0x24] sm:$0xf]
    %v897 = vld [vmem:[%s886 + $0x28] sm:$0xf]
    %v898 = vld [vmem:[%s886 + $0x2c] sm:$0xf]
    %v899 = vld [vmem:[%s886 + $0x30] sm:$0xf]
    %v900 = vld [vmem:[%s886 + $0x34] sm:$0xf]
    %v901 = vld [vmem:[%s886 + $0x38] sm:$0xf]
    %v902 = vld [vmem:[%s886 + $0x3c] sm:$0xf]
    %v903 = vperm.slane %v778, 7
    %v920 = vunpack.c.l.b16 %v887
    %v921 = vunpack.c.l.b16 %v888
    %v922 = vunpack.c.l.b16 %v889
    %v923 = vunpack.c.l.b16 %v890
    %v924 = vunpack.c.l.b16 %v891
    %v925 = vunpack.c.l.b16 %v892
    %v926 = vunpack.c.l.b16 %v893
    %v927 = vunpack.c.l.b16 %v894
    %v928 = vunpack.c.l.b16 %v895
    %v929 = vunpack.c.l.b16 %v896
    %v930 = vunpack.c.l.b16 %v897
    %v931 = vunpack.c.l.b16 %v898
    %v932 = vunpack.c.l.b16 %v899
    %v933 = vunpack.c.l.b16 %v900
    %v934 = vunpack.c.l.b16 %v901
    %v935 = vunpack.c.l.b16 %v902
    %v936 = vpack.c.b16 %v921, %v920
    %v937 = vpack.c.b16 %v923, %v922
    %v938 = vpack.c.b16 %v925, %v924
    %v939 = vpack.c.b16 %v927, %v926
    %v940 = vpack.c.b16 %v929, %v928
    %v941 = vpack.c.b16 %v931, %v930
    %v942 = vpack.c.b16 %v933, %v932
    %v943 = vpack.c.b16 %v935, %v934
    %952 = vmatpush.bf16.msra.mxu0 %v943
    %953 = vmatpush.bf16.msra.mxu0 %v942
    %954 = vmatpush.bf16.msra.mxu0 %v941
    %955 = vmatpush.bf16.msra.mxu0 %v940
    %956 = vmatpush.bf16.msra.mxu0 %v939
    %957 = vmatpush.bf16.msra.mxu0 %v938
    %958 = vmatpush.bf16.msra.mxu0 %v937
    %959 = vmatpush.bf16.msra.mxu0 %v936
    %960 = vmatmul.bf16.gmra.mxu0 %v823
    %v961 = vpop.f32.mrf.mxu0
    %v962 = vadd.f32 %v903, %v961
    %v963 = vpop.f32.mrf.mxu0
    %964 = vdwg.mxu0
    %s965 = scalar_lea.vmem [#allocation6], 512
    %v966 = vld [vmem:[%s965] sm:$0xf]
    %v967 = vld [vmem:[%s965 + $0x4] sm:$0xf]
    %v968 = vld [vmem:[%s965 + $0x8] sm:$0xf]
    %v969 = vld [vmem:[%s965 + $0xc] sm:$0xf]
    %v970 = vld [vmem:[%s965 + $0x10] sm:$0xf]
    %v971 = vld [vmem:[%s965 + $0x14] sm:$0xf]
    %v972 = vld [vmem:[%s965 + $0x18] sm:$0xf]
    %v973 = vld [vmem:[%s965 + $0x1c] sm:$0xf]
    %v974 = vld [vmem:[%s965 + $0x20] sm:$0xf]
    %v975 = vld [vmem:[%s965 + $0x24] sm:$0xf]
    %v976 = vld [vmem:[%s965 + $0x28] sm:$0xf]
    %v977 = vld [vmem:[%s965 + $0x2c] sm:$0xf]
    %v978 = vld [vmem:[%s965 + $0x30] sm:$0xf]
    %v979 = vld [vmem:[%s965 + $0x34] sm:$0xf]
    %v980 = vld [vmem:[%s965 + $0x38] sm:$0xf]
    %v981 = vld [vmem:[%s965 + $0x3c] sm:$0xf]
    %v982 = vperm.slane %v779, 0
    %v999 = vunpack.c.l.b16 %v966
    %v1000 = vunpack.c.l.b16 %v967
    %v1001 = vunpack.c.l.b16 %v968
    %v1002 = vunpack.c.l.b16 %v969
    %v1003 = vunpack.c.l.b16 %v970
    %v1004 = vunpack.c.l.b16 %v971
    %v1005 = vunpack.c.l.b16 %v972
    %v1006 = vunpack.c.l.b16 %v973
    %v1007 = vunpack.c.l.b16 %v974
    %v1008 = vunpack.c.l.b16 %v975
    %v1009 = vunpack.c.l.b16 %v976
    %v1010 = vunpack.c.l.b16 %v977
    %v1011 = vunpack.c.l.b16 %v978
    %v1012 = vunpack.c.l.b16 %v979
    %v1013 = vunpack.c.l.b16 %v980
    %v1014 = vunpack.c.l.b16 %v981
    %v1015 = vpack.c.b16 %v1000, %v999
    %v1016 = vpack.c.b16 %v1002, %v1001
    %v1017 = vpack.c.b16 %v1004, %v1003
    %v1018 = vpack.c.b16 %v1006, %v1005
    %v1019 = vpack.c.b16 %v1008, %v1007
    %v1020 = vpack.c.b16 %v1010, %v1009
    %v1021 = vpack.c.b16 %v1012, %v1011
    %v1022 = vpack.c.b16 %v1014, %v1013
    %1031 = vmatpush.bf16.msra.mxu0 %v1022
    %1032 = vmatpush.bf16.msra.mxu0 %v1021
    %1033 = vmatpush.bf16.msra.mxu0 %v1020
    %1034 = vmatpush.bf16.msra.mxu0 %v1019
    %1035 = vmatpush.bf16.msra.mxu0 %v1018
    %1036 = vmatpush.bf16.msra.mxu0 %v1017
    %1037 = vmatpush.bf16.msra.mxu0 %v1016
    %1038 = vmatpush.bf16.msra.mxu0 %v1015
    %1039 = vmatmul.bf16.gmra.mxu0 %v823
    %v1040 = vpop.f32.mrf.mxu0
    %v1041 = vadd.f32 %v982, %v1040
    %v1042 = vpop.f32.mrf.mxu0
    %1043 = vdwg.mxu0
    %v1044 = vmul.f32 %v883, %v391
    %v1045 = vpack.c.bf16 %v1044, %v1044
    %v1046 = vpack.c.bf16 %v962, %v962
    %1047 = vmatpush.bf16.xpose.msra.mxu0 0
    %1048 = vmatpush.bf16.xpose.msra.mxu0 0
    %1049 = vmatpush.bf16.xpose.msra.mxu0 0
    %1050 = vmatpush.bf16.xpose.msra.mxu0 0
    %1051 = vmatpush.bf16.xpose.msra.mxu0 0
    %1052 = vmatpush.bf16.xpose.msra.mxu0 0
    %1053 = vmatpush.bf16.xpose.msra.mxu0 0
    %1054 = vmatpush.bf16.xpose.msra.mxu0 %v1046
    %1055 = vmatmul.bf16.gmra.mxu0 %v1045
    %v1056 = vpop.f32.mrf.mxu0
    %v1057 = vadd.f32 0.0, %v1056
    %v1058 = vpop.f32.mrf.mxu0
    %1059 = vdwg.mxu0
    %vm1060 = vcmask 64512
    %v1061 = vsel %vm1060, %v1057, -inf
    %1062 = vmax.xlane.f32.xlu0 %v1061
    %v1063 = vpop.xlane.xlu0 %1062
    %v1064 = vsub.f32 %v1057, %v1063
    %v1065 = vmul.f32 %v1064, 1.442695
    %v1066 = vpow.pop %v1065
    %v1067 = vsel %vm1060, %v1066, 0.0
    %1068 = vadd.xlane.f32.xlu0 %v1067
    %v1069 = vpop.xlane.xlu0 %1068
    %v1070 = vrcp.pop %v1069
    %v1071 = vmul.f32 %v1066, %v1070
    %v1072 = vpack.c.bf16 %v1071, %v1071
    %v1073 = vpack.c.bf16 %v1041, %v1041
    %v1075 = vsel %vm1060, %v1072, 0
    %vm1077 = vcmask 1043456
    %v1079 = vsel %vm1077, %v1073, 0
    %1081 = vmatpush.bf16.msra.mxu0 0
    %1082 = vmatpush.bf16.msra.mxu0 0
    %1083 = vmatpush.bf16.msra.mxu0 0
    %1084 = vmatpush.bf16.msra.mxu0 0
    %1085 = vmatpush.bf16.msra.mxu0 0
    %1086 = vmatpush.bf16.msra.mxu0 0
    %1087 = vmatpush.bf16.msra.mxu0 0
    %1088 = vmatpush.bf16.msra.mxu0 %v1079
    %1089 = vmatmul.bf16.gmra.mxu0 %v1075
    %v1090 = vpop.f32.mrf.mxu0
    %v1091 = vadd.f32 0.0, %v1090
    %v1092 = vpop.f32.mrf.mxu0
    %1093 = vdwg.mxu0
    %v1094 = vmul.f32 %v1091, %v438
    %v1095 = vadd.f32 %v1094, 0.0
    %v1096 = vmul.f32 %v883, %v444
    %v1097 = vpack.c.bf16 %v1096, %v1096
    %1098 = vmatpush.bf16.xpose.msra.mxu0 0
    %1099 = vmatpush.bf16.xpose.msra.mxu0 0
    %1100 = vmatpush.bf16.xpose.msra.mxu0 0
    %1101 = vmatpush.bf16.xpose.msra.mxu0 0
    %1102 = vmatpush.bf16.xpose.msra.mxu0 0
    %1103 = vmatpush.bf16.xpose.msra.mxu0 0
    %1104 = vmatpush.bf16.xpose.msra.mxu0 0
    %1105 = vmatpush.bf16.xpose.msra.mxu0 %v1046
    %1106 = vmatmul.bf16.gmra.mxu0 %v1097
    %v1107 = vpop.f32.mrf.mxu0
    %v1108 = vadd.f32 0.0, %v1107
    %v1109 = vpop.f32.mrf.mxu0
    %1110 = vdwg.mxu0
    %v1111 = vsel %vm1060, %v1108, -inf
    %1112 = vmax.xlane.f32.xlu0 %v1111
    %v1113 = vpop.xlane.xlu0 %1112
    %v1114 = vsub.f32 %v1108, %v1113
    %v1115 = vmul.f32 %v1114, 1.442695
    %v1116 = vpow.pop %v1115
    %v1117 = vsel %vm1060, %v1116, 0.0
    %1118 = vadd.xlane.f32.xlu0 %v1117
    %v1119 = vpop.xlane.xlu0 %1118
    %v1120 = vrcp.pop %v1119
    %v1121 = vmul.f32 %v1116, %v1120
    %v1122 = vpack.c.bf16 %v1121, %v1121
    %v1124 = vsel %vm1060, %v1122, 0
    %1126 = vmatpush.bf16.msra.mxu0 0
    %1127 = vmatpush.bf16.msra.mxu0 0
    %1128 = vmatpush.bf16.msra.mxu0 0
    %1129 = vmatpush.bf16.msra.mxu0 0
    %1130 = vmatpush.bf16.msra.mxu0 0
    %1131 = vmatpush.bf16.msra.mxu0 0
    %1132 = vmatpush.bf16.msra.mxu0 0
    %1133 = vmatpush.bf16.msra.mxu0 %v1079
    %1134 = vmatmul.bf16.gmra.mxu0 %v1124
    %v1135 = vpop.f32.mrf.mxu0
    %v1136 = vadd.f32 0.0, %v1135
    %v1137 = vpop.f32.mrf.mxu0
    %1138 = vdwg.mxu0
    %v1139 = vmul.f32 %v1136, %v488
    %v1140 = vadd.f32 %v1095, %v1139
    %s1141 = scalar_lea.vmem [#allocation6], 576
    %v1142 = vld [vmem:[%s1141] sm:$0xf]
    %v1143 = vld [vmem:[%s1141 + $0x4] sm:$0xf]
    %v1144 = vld [vmem:[%s1141 + $0x8] sm:$0xf]
    %v1145 = vld [vmem:[%s1141 + $0xc] sm:$0xf]
    %v1146 = vld [vmem:[%s1141 + $0x10] sm:$0xf]
    %v1147 = vld [vmem:[%s1141 + $0x14] sm:$0xf]
    %v1148 = vld [vmem:[%s1141 + $0x18] sm:$0xf]
    %v1149 = vld [vmem:[%s1141 + $0x1c] sm:$0xf]
    %v1150 = vld [vmem:[%s1141 + $0x20] sm:$0xf]
    %v1151 = vld [vmem:[%s1141 + $0x24] sm:$0xf]
    %v1152 = vld [vmem:[%s1141 + $0x28] sm:$0xf]
    %v1153 = vld [vmem:[%s1141 + $0x2c] sm:$0xf]
    %v1154 = vld [vmem:[%s1141 + $0x30] sm:$0xf]
    %v1155 = vld [vmem:[%s1141 + $0x34] sm:$0xf]
    %v1156 = vld [vmem:[%s1141 + $0x38] sm:$0xf]
    %v1157 = vld [vmem:[%s1141 + $0x3c] sm:$0xf]
    %v1158 = vpack.c.bf16 %v1140, %v1140
    %v1159 = vperm.slane %v779, 1
    %v1176 = vunpack.c.l.b16 %v1142
    %v1177 = vunpack.c.l.b16 %v1143
    %v1178 = vunpack.c.l.b16 %v1144
    %v1179 = vunpack.c.l.b16 %v1145
    %v1180 = vunpack.c.l.b16 %v1146
    %v1181 = vunpack.c.l.b16 %v1147
    %v1182 = vunpack.c.l.b16 %v1148
    %v1183 = vunpack.c.l.b16 %v1149
    %v1184 = vunpack.c.l.b16 %v1150
    %v1185 = vunpack.c.l.b16 %v1151
    %v1186 = vunpack.c.l.b16 %v1152
    %v1187 = vunpack.c.l.b16 %v1153
    %v1188 = vunpack.c.l.b16 %v1154
    %v1189 = vunpack.c.l.b16 %v1155
    %v1190 = vunpack.c.l.b16 %v1156
    %v1191 = vunpack.c.l.b16 %v1157
    %v1192 = vpack.c.b16 %v1177, %v1176
    %v1193 = vpack.c.b16 %v1179, %v1178
    %v1194 = vpack.c.b16 %v1181, %v1180
    %v1195 = vpack.c.b16 %v1183, %v1182
    %v1196 = vpack.c.b16 %v1185, %v1184
    %v1197 = vpack.c.b16 %v1187, %v1186
    %v1198 = vpack.c.b16 %v1189, %v1188
    %v1199 = vpack.c.b16 %v1191, %v1190
    %1208 = vmatpush.bf16.msra.mxu0 %v1199
    %1209 = vmatpush.bf16.msra.mxu0 %v1198
    %1210 = vmatpush.bf16.msra.mxu0 %v1197
    %1211 = vmatpush.bf16.msra.mxu0 %v1196
    %1212 = vmatpush.bf16.msra.mxu0 %v1195
    %1213 = vmatpush.bf16.msra.mxu0 %v1194
    %1214 = vmatpush.bf16.msra.mxu0 %v1193
    %1215 = vmatpush.bf16.msra.mxu0 %v1192
    %1216 = vmatmul.bf16.gmra.mxu0 %v1158
    %v1217 = vpop.f32.mrf.mxu0
    %v1218 = vadd.f32 %v1159, %v1217
    %v1219 = vpop.f32.mrf.mxu0
    %1220 = vdwg.mxu0
    %v1221 = vadd.f32 %v805, %v1218
    %1222 = vadd.xlane.f32.xlu0 %v1221
    %v1223 = vpop.xlane.xlu0 %1222
    %v1224 = vmul.f32 %v1223, 0.03125
    %v1225 = vmul.f32 %v1221, %v1221
    %1226 = vadd.xlane.f32.xlu0 %v1225
    %v1227 = vpop.xlane.xlu0 %1226
    %v1228 = vmul.f32 %v1227, 0.03125
    %v1229 = vmul.f32 %v1224, %v1224
    %v1230 = vsub.f32 %v1228, %v1229
    %v1231 = vsub.f32 %v1221, %v1224
    %v1232 = vadd.f32 %v1230, 1e-05
    %v1233 = vrsqrt.pop %v1232
    %v1234 = vmul.f32 %v1233, %v1232
    %v1235 = vmul.f32 %v1234, %v1233
    %v1236 = vmul.f32 0.5, %v1235
    %v1237 = vsub.f32 1.5, %v1236
    %v1238 = vmul.f32 %v1233, %v1237
    %vm1239 = vweird.f32 %v1232
    %vm1240 = vweird.f32 %v1233
    %vm1241 = vmor %vm1239, %vm1240
    %v1242 = vsel %vm1241, %v1233, %v1238
    %v1243 = vmul.f32 %v1231, %v1242
    %v1244 = vperm.slane %v778, 4
    %v1245 = vmul.f32 %v1243, %v1244
    %v1246 = vperm.slane %v778, 5
    %v1247 = vadd.f32 %v1245, %v1246
    %s1248 = scalar_lea.vmem [#allocation6], 640
    %v1249 = vld [vmem:[%s1248] sm:$0xf]
    %v1250 = vld [vmem:[%s1248 + $0x4] sm:$0xf]
    %v1251 = vld [vmem:[%s1248 + $0x8] sm:$0xf]
    %v1252 = vld [vmem:[%s1248 + $0xc] sm:$0xf]
    %v1253 = vld [vmem:[%s1248 + $0x10] sm:$0xf]
    %v1254 = vld [vmem:[%s1248 + $0x14] sm:$0xf]
    %v1255 = vld [vmem:[%s1248 + $0x18] sm:$0xf]
    %v1256 = vld [vmem:[%s1248 + $0x1c] sm:$0xf]
    %v1257 = vld [vmem:[%s1248 + $0x20] sm:$0xf]
    %v1258 = vld [vmem:[%s1248 + $0x24] sm:$0xf]
    %v1259 = vld [vmem:[%s1248 + $0x28] sm:$0xf]
    %v1260 = vld [vmem:[%s1248 + $0x2c] sm:$0xf]
    %v1261 = vld [vmem:[%s1248 + $0x30] sm:$0xf]
    %v1262 = vld [vmem:[%s1248 + $0x34] sm:$0xf]
    %v1263 = vld [vmem:[%s1248 + $0x38] sm:$0xf]
    %v1264 = vld [vmem:[%s1248 + $0x3c] sm:$0xf]
    %v1265 = vpack.c.bf16 %v1247, %v1247
    %v1266 = vperm.slane %v779, 2
    %v1283 = vunpack.c.l.b16 %v1249
    %v1284 = vunpack.c.l.b16 %v1250
    %v1285 = vunpack.c.l.b16 %v1251
    %v1286 = vunpack.c.l.b16 %v1252
    %v1287 = vunpack.c.l.b16 %v1253
    %v1288 = vunpack.c.l.b16 %v1254
    %v1289 = vunpack.c.l.b16 %v1255
    %v1290 = vunpack.c.l.b16 %v1256
    %v1291 = vunpack.c.l.b16 %v1257
    %v1292 = vunpack.c.l.b16 %v1258
    %v1293 = vunpack.c.l.b16 %v1259
    %v1294 = vunpack.c.l.b16 %v1260
    %v1295 = vunpack.c.l.b16 %v1261
    %v1296 = vunpack.c.l.b16 %v1262
    %v1297 = vunpack.c.l.b16 %v1263
    %v1298 = vunpack.c.l.b16 %v1264
    %v1299 = vpack.c.b16 %v1284, %v1283
    %v1300 = vpack.c.b16 %v1286, %v1285
    %v1301 = vpack.c.b16 %v1288, %v1287
    %v1302 = vpack.c.b16 %v1290, %v1289
    %v1303 = vpack.c.b16 %v1292, %v1291
    %v1304 = vpack.c.b16 %v1294, %v1293
    %v1305 = vpack.c.b16 %v1296, %v1295
    %v1306 = vpack.c.b16 %v1298, %v1297
    %1315 = vmatpush.bf16.msra.mxu0 %v1306
    %1316 = vmatpush.bf16.msra.mxu0 %v1305
    %1317 = vmatpush.bf16.msra.mxu0 %v1304
    %1318 = vmatpush.bf16.msra.mxu0 %v1303
    %1319 = vmatpush.bf16.msra.mxu0 %v1302
    %1320 = vmatpush.bf16.msra.mxu0 %v1301
    %1321 = vmatpush.bf16.msra.mxu0 %v1300
    %1322 = vmatpush.bf16.msra.mxu0 %v1299
    %1323 = vmatmul.bf16.gmra.mxu0 %v1265
    %v1324 = vpop.f32.mrf.mxu0
    %v1325 = vadd.f32 %v1266, %v1324
    %v1326 = vpop.f32.mrf.mxu0
    %1327 = vdwg.mxu0
    %v1328 = vmul.f32 %v1325, 0.5
    %v1329 = vmul.f32 %v1325, 0.044715
    %v1330 = vmul.f32 %v1329, %v1325
    %v1331 = vmul.f32 %v1330, %v1325
    %v1332 = vadd.f32 %v1325, %v1331
    %v1333 = vmul.f32 %v1332, 0.7978846
    %v1334 = vtanh.pop %v1333
    %v1335 = vadd.f32 %v1334, 1.0
    %v1336 = vmul.f32 %v1328, %v1335
    %s1337 = scalar_lea.vmem [#allocation6], 704
    %v1338 = vld [vmem:[%s1337] sm:$0xf]
    %v1339 = vld [vmem:[%s1337 + $0x4] sm:$0xf]
    %v1340 = vld [vmem:[%s1337 + $0x8] sm:$0xf]
    %v1341 = vld [vmem:[%s1337 + $0xc] sm:$0xf]
    %v1342 = vld [vmem:[%s1337 + $0x10] sm:$0xf]
    %v1343 = vld [vmem:[%s1337 + $0x14] sm:$0xf]
    %v1344 = vld [vmem:[%s1337 + $0x18] sm:$0xf]
    %v1345 = vld [vmem:[%s1337 + $0x1c] sm:$0xf]
    %v1346 = vld [vmem:[%s1337 + $0x20] sm:$0xf]
    %v1347 = vld [vmem:[%s1337 + $0x24] sm:$0xf]
    %v1348 = vld [vmem:[%s1337 + $0x28] sm:$0xf]
    %v1349 = vld [vmem:[%s1337 + $0x2c] sm:$0xf]
    %v1350 = vld [vmem:[%s1337 + $0x30] sm:$0xf]
    %v1351 = vld [vmem:[%s1337 + $0x34] sm:$0xf]
    %v1352 = vld [vmem:[%s1337 + $0x38] sm:$0xf]
    %v1353 = vld [vmem:[%s1337 + $0x3c] sm:$0xf]
    %v1354 = vpack.c.bf16 %v1336, %v1336
    %v1355 = vperm.slane %v779, 3
    %v1372 = vunpack.c.l.b16 %v1338
    %v1373 = vunpack.c.l.b16 %v1339
    %v1374 = vunpack.c.l.b16 %v1340
    %v1375 = vunpack.c.l.b16 %v1341
    %v1376 = vunpack.c.l.b16 %v1342
    %v1377 = vunpack.c.l.b16 %v1343
    %v1378 = vunpack.c.l.b16 %v1344
    %v1379 = vunpack.c.l.b16 %v1345
    %v1380 = vunpack.c.l.b16 %v1346
    %v1381 = vunpack.c.l.b16 %v1347
    %v1382 = vunpack.c.l.b16 %v1348
    %v1383 = vunpack.c.l.b16 %v1349
    %v1384 = vunpack.c.l.b16 %v1350
    %v1385 = vunpack.c.l.b16 %v1351
    %v1386 = vunpack.c.l.b16 %v1352
    %v1387 = vunpack.c.l.b16 %v1353
    %v1388 = vpack.c.b16 %v1373, %v1372
    %v1389 = vpack.c.b16 %v1375, %v1374
    %v1390 = vpack.c.b16 %v1377, %v1376
    %v1391 = vpack.c.b16 %v1379, %v1378
    %v1392 = vpack.c.b16 %v1381, %v1380
    %v1393 = vpack.c.b16 %v1383, %v1382
    %v1394 = vpack.c.b16 %v1385, %v1384
    %v1395 = vpack.c.b16 %v1387, %v1386
    %1404 = vmatpush.bf16.msra.mxu0 %v1395
    %1405 = vmatpush.bf16.msra.mxu0 %v1394
    %1406 = vmatpush.bf16.msra.mxu0 %v1393
    %1407 = vmatpush.bf16.msra.mxu0 %v1392
    %1408 = vmatpush.bf16.msra.mxu0 %v1391
    %1409 = vmatpush.bf16.msra.mxu0 %v1390
    %1410 = vmatpush.bf16.msra.mxu0 %v1389
    %1411 = vmatpush.bf16.msra.mxu0 %v1388
    %1412 = vmatmul.bf16.gmra.mxu0 %v1354
    %v1413 = vpop.f32.mrf.mxu0
    %v1414 = vadd.f32 %v1355, %v1413
    %v1415 = vpop.f32.mrf.mxu0
    %1416 = vdwg.mxu0
    %v1417 = vmul.f32 %v1414, 0.5
    %v1418 = vmul.f32 %v1414, 0.044715
    %v1419 = vmul.f32 %v1418, %v1414
    %v1420 = vmul.f32 %v1419, %v1414
    %v1421 = vadd.f32 %v1414, %v1420
    %v1422 = vmul.f32 %v1421, 0.7978846
    %v1423 = vtanh.pop %v1422
    %v1424 = vadd.f32 %v1423, 1.0
    %v1425 = vmul.f32 %v1417, %v1424
    %v1426 = vadd.f32 %v1247, %v1425
    %s1427 = scalar_lea.vmem %s4, 32
    %v1428 = vld [vmem:[%s1427] sm:$0xff]
    %v1429 = vld [vmem:[%s1427 + $0x8] sm:$0xff]
    %1430 = vadd.xlane.f32.xlu0 %v1426
    %v1431 = vpop.xlane.xlu0 %1430
    %v1432 = vmul.f32 %v1431, 0.03125
    %v1433 = vmul.f32 %v1426, %v1426
    %1434 = vadd.xlane.f32.xlu0 %v1433
    %v1435 = vpop.xlane.xlu0 %1434
    %v1436 = vmul.f32 %v1435, 0.03125
    %v1437 = vmul.f32 %v1432, %v1432
    %v1438 = vsub.f32 %v1436, %v1437
    %v1439 = vsub.f32 %v1426, %v1432
    %v1440 = vadd.f32 %v1438, 1e-05
    %v1441 = vrsqrt.pop %v1440
    %v1442 = vmul.f32 %v1441, %v1440
    %v1443 = vmul.f32 %v1442, %v1441
    %v1444 = vmul.f32 0.5, %v1443
    %v1445 = vsub.f32 1.5, %v1444
    %v1446 = vmul.f32 %v1441, %v1445
    %vm1447 = vweird.f32 %v1440
    %vm1448 = vweird.f32 %v1441
    %vm1449 = vmor %vm1447, %vm1448
    %v1450 = vsel %vm1449, %v1441, %v1446
    %v1451 = vmul.f32 %v1439, %v1450
    %v1452 = vperm.slane %v1428, 0
    %v1453 = vmul.f32 %v1451, %v1452
    %v1454 = vperm.slane %v1428, 1
    %v1455 = vadd.f32 %v1453, %v1454
    %s1456 = scalar_lea.vmem [#allocation6], 768
    %v1457 = vld [vmem:[%s1456] sm:$0xf]
    %v1458 = vld [vmem:[%s1456 + $0x4] sm:$0xf]
    %v1459 = vld [vmem:[%s1456 + $0x8] sm:$0xf]
    %v1460 = vld [vmem:[%s1456 + $0xc] sm:$0xf]
    %v1461 = vld [vmem:[%s1456 + $0x10] sm:$0xf]
    %v1462 = vld [vmem:[%s1456 + $0x14] sm:$0xf]
    %v1463 = vld [vmem:[%s1456 + $0x18] sm:$0xf]
    %v1464 = vld [vmem:[%s1456 + $0x1c] sm:$0xf]
    %v1465 = vld [vmem:[%s1456 + $0x20] sm:$0xf]
    %v1466 = vld [vmem:[%s1456 + $0x24] sm:$0xf]
    %v1467 = vld [vmem:[%s1456 + $0x28] sm:$0xf]
    %v1468 = vld [vmem:[%s1456 + $0x2c] sm:$0xf]
    %v1469 = vld [vmem:[%s1456 + $0x30] sm:$0xf]
    %v1470 = vld [vmem:[%s1456 + $0x34] sm:$0xf]
    %v1471 = vld [vmem:[%s1456 + $0x38] sm:$0xf]
    %v1472 = vld [vmem:[%s1456 + $0x3c] sm:$0xf]
    %v1473 = vpack.c.bf16 %v1455, %v1455
    %v1474 = vperm.slane %v1428, 6
    %v1491 = vunpack.c.l.b16 %v1457
    %v1492 = vunpack.c.l.b16 %v1458
    %v1493 = vunpack.c.l.b16 %v1459
    %v1494 = vunpack.c.l.b16 %v1460
    %v1495 = vunpack.c.l.b16 %v1461
    %v1496 = vunpack.c.l.b16 %v1462
    %v1497 = vunpack.c.l.b16 %v1463
    %v1498 = vunpack.c.l.b16 %v1464
    %v1499 = vunpack.c.l.b16 %v1465
    %v1500 = vunpack.c.l.b16 %v1466
    %v1501 = vunpack.c.l.b16 %v1467
    %v1502 = vunpack.c.l.b16 %v1468
    %v1503 = vunpack.c.l.b16 %v1469
    %v1504 = vunpack.c.l.b16 %v1470
    %v1505 = vunpack.c.l.b16 %v1471
    %v1506 = vunpack.c.l.b16 %v1472
    %v1507 = vpack.c.b16 %v1492, %v1491
    %v1508 = vpack.c.b16 %v1494, %v1493
    %v1509 = vpack.c.b16 %v1496, %v1495
    %v1510 = vpack.c.b16 %v1498, %v1497
    %v1511 = vpack.c.b16 %v1500, %v1499
    %v1512 = vpack.c.b16 %v1502, %v1501
    %v1513 = vpack.c.b16 %v1504, %v1503
    %v1514 = vpack.c.b16 %v1506, %v1505
    %1523 = vmatpush.bf16.msra.mxu0 %v1514
    %1524 = vmatpush.bf16.msra.mxu0 %v1513
    %1525 = vmatpush.bf16.msra.mxu0 %v1512
    %1526 = vmatpush.bf16.msra.mxu0 %v1511
    %1527 = vmatpush.bf16.msra.mxu0 %v1510
    %1528 = vmatpush.bf16.msra.mxu0 %v1509
    %1529 = vmatpush.bf16.msra.mxu0 %v1508
    %1530 = vmatpush.bf16.msra.mxu0 %v1507
    %1531 = vmatmul.bf16.gmra.mxu0 %v1473
    %v1532 = vpop.f32.mrf.mxu0
    %v1533 = vadd.f32 %v1474, %v1532
    %v1534 = vpop.f32.mrf.mxu0
    %1535 = vdwg.mxu0
    %s1536 = scalar_lea.vmem [#allocation6], 832
    %v1537 = vld [vmem:[%s1536] sm:$0xf]
    %v1538 = vld [vmem:[%s1536 + $0x4] sm:$0xf]
    %v1539 = vld [vmem:[%s1536 + $0x8] sm:$0xf]
    %v1540 = vld [vmem:[%s1536 + $0xc] sm:$0xf]
    %v1541 = vld [vmem:[%s1536 + $0x10] sm:$0xf]
    %v1542 = vld [vmem:[%s1536 + $0x14] sm:$0xf]
    %v1543 = vld [vmem:[%s1536 + $0x18] sm:$0xf]
    %v1544 = vld [vmem:[%s1536 + $0x1c] sm:$0xf]
    %v1545 = vld [vmem:[%s1536 + $0x20] sm:$0xf]
    %v1546 = vld [vmem:[%s1536 + $0x24] sm:$0xf]
    %v1547 = vld [vmem:[%s1536 + $0x28] sm:$0xf]
    %v1548 = vld [vmem:[%s1536 + $0x2c] sm:$0xf]
    %v1549 = vld [vmem:[%s1536 + $0x30] sm:$0xf]
    %v1550 = vld [vmem:[%s1536 + $0x34] sm:$0xf]
    %v1551 = vld [vmem:[%s1536 + $0x38] sm:$0xf]
    %v1552 = vld [vmem:[%s1536 + $0x3c] sm:$0xf]
    %v1553 = vperm.slane %v1428, 7
    %v1570 = vunpack.c.l.b16 %v1537
    %v1571 = vunpack.c.l.b16 %v1538
    %v1572 = vunpack.c.l.b16 %v1539
    %v1573 = vunpack.c.l.b16 %v1540
    %v1574 = vunpack.c.l.b16 %v1541
    %v1575 = vunpack.c.l.b16 %v1542
    %v1576 = vunpack.c.l.b16 %v1543
    %v1577 = vunpack.c.l.b16 %v1544
    %v1578 = vunpack.c.l.b16 %v1545
    %v1579 = vunpack.c.l.b16 %v1546
    %v1580 = vunpack.c.l.b16 %v1547
    %v1581 = vunpack.c.l.b16 %v1548
    %v1582 = vunpack.c.l.b16 %v1549
    %v1583 = vunpack.c.l.b16 %v1550
    %v1584 = vunpack.c.l.b16 %v1551
    %v1585 = vunpack.c.l.b16 %v1552
    %v1586 = vpack.c.b16 %v1571, %v1570
    %v1587 = vpack.c.b16 %v1573, %v1572
    %v1588 = vpack.c.b16 %v1575, %v1574
    %v1589 = vpack.c.b16 %v1577, %v1576
    %v1590 = vpack.c.b16 %v1579, %v1578
    %v1591 = vpack.c.b16 %v1581, %v1580
    %v1592 = vpack.c.b16 %v1583, %v1582
    %v1593 = vpack.c.b16 %v1585, %v1584
    %1602 = vmatpush.bf16.msra.mxu0 %v1593
    %1603 = vmatpush.bf16.msra.mxu0 %v1592
    %1604 = vmatpush.bf16.msra.mxu0 %v1591
    %1605 = vmatpush.bf16.msra.mxu0 %v1590
    %1606 = vmatpush.bf16.msra.mxu0 %v1589
    %1607 = vmatpush.bf16.msra.mxu0 %v1588
    %1608 = vmatpush.bf16.msra.mxu0 %v1587
    %1609 = vmatpush.bf16.msra.mxu0 %v1586
    %1610 = vmatmul.bf16.gmra.mxu0 %v1473
    %v1611 = vpop.f32.mrf.mxu0
    %v1612 = vadd.f32 %v1553, %v1611
    %v1613 = vpop.f32.mrf.mxu0
    %1614 = vdwg.mxu0
    %s1615 = scalar_lea.vmem [#allocation6], 896
    %v1616 = vld [vmem:[%s1615] sm:$0xf]
    %v1617 = vld [vmem:[%s1615 + $0x4] sm:$0xf]
    %v1618 = vld [vmem:[%s1615 + $0x8] sm:$0xf]
    %v1619 = vld [vmem:[%s1615 + $0xc] sm:$0xf]
    %v1620 = vld [vmem:[%s1615 + $0x10] sm:$0xf]
    %v1621 = vld [vmem:[%s1615 + $0x14] sm:$0xf]
    %v1622 = vld [vmem:[%s1615 + $0x18] sm:$0xf]
    %v1623 = vld [vmem:[%s1615 + $0x1c] sm:$0xf]
    %v1624 = vld [vmem:[%s1615 + $0x20] sm:$0xf]
    %v1625 = vld [vmem:[%s1615 + $0x24] sm:$0xf]
    %v1626 = vld [vmem:[%s1615 + $0x28] sm:$0xf]
    %v1627 = vld [vmem:[%s1615 + $0x2c] sm:$0xf]
    %v1628 = vld [vmem:[%s1615 + $0x30] sm:$0xf]
    %v1629 = vld [vmem:[%s1615 + $0x34] sm:$0xf]
    %v1630 = vld [vmem:[%s1615 + $0x38] sm:$0xf]
    %v1631 = vld [vmem:[%s1615 + $0x3c] sm:$0xf]
    %v1632 = vperm.slane %v1429, 0
    %v1649 = vunpack.c.l.b16 %v1616
    %v1650 = vunpack.c.l.b16 %v1617
    %v1651 = vunpack.c.l.b16 %v1618
    %v1652 = vunpack.c.l.b16 %v1619
    %v1653 = vunpack.c.l.b16 %v1620
    %v1654 = vunpack.c.l.b16 %v1621
    %v1655 = vunpack.c.l.b16 %v1622
    %v1656 = vunpack.c.l.b16 %v1623
    %v1657 = vunpack.c.l.b16 %v1624
    %v1658 = vunpack.c.l.b16 %v1625
    %v1659 = vunpack.c.l.b16 %v1626
    %v1660 = vunpack.c.l.b16 %v1627
    %v1661 = vunpack.c.l.b16 %v1628
    %v1662 = vunpack.c.l.b16 %v1629
    %v1663 = vunpack.c.l.b16 %v1630
    %v1664 = vunpack.c.l.b16 %v1631
    %v1665 = vpack.c.b16 %v1650, %v1649
    %v1666 = vpack.c.b16 %v1652, %v1651
    %v1667 = vpack.c.b16 %v1654, %v1653
    %v1668 = vpack.c.b16 %v1656, %v1655
    %v1669 = vpack.c.b16 %v1658, %v1657
    %v1670 = vpack.c.b16 %v1660, %v1659
    %v1671 = vpack.c.b16 %v1662, %v1661
    %v1672 = vpack.c.b16 %v1664, %v1663
    %1681 = vmatpush.bf16.msra.mxu0 %v1672
    %1682 = vmatpush.bf16.msra.mxu0 %v1671
    %1683 = vmatpush.bf16.msra.mxu0 %v1670
    %1684 = vmatpush.bf16.msra.mxu0 %v1669
    %1685 = vmatpush.bf16.msra.mxu0 %v1668
    %1686 = vmatpush.bf16.msra.mxu0 %v1667
    %1687 = vmatpush.bf16.msra.mxu0 %v1666
    %1688 = vmatpush.bf16.msra.mxu0 %v1665
    %1689 = vmatmul.bf16.gmra.mxu0 %v1473
    %v1690 = vpop.f32.mrf.mxu0
    %v1691 = vadd.f32 %v1632, %v1690
    %v1692 = vpop.f32.mrf.mxu0
    %1693 = vdwg.mxu0
    %v1694 = vmul.f32 %v1533, %v391
    %v1695 = vpack.c.bf16 %v1694, %v1694
    %v1696 = vpack.c.bf16 %v1612, %v1612
    %1697 = vmatpush.bf16.xpose.msra.mxu0 0
    %1698 = vmatpush.bf16.xpose.msra.mxu0 0
    %1699 = vmatpush.bf16.xpose.msra.mxu0 0
    %1700 = vmatpush.bf16.xpose.msra.mxu0 0
    %1701 = vmatpush.bf16.xpose.msra.mxu0 0
    %1702 = vmatpush.bf16.xpose.msra.mxu0 0
    %1703 = vmatpush.bf16.xpose.msra.mxu0 0
    %1704 = vmatpush.bf16.xpose.msra.mxu0 %v1696
    %1705 = vmatmul.bf16.gmra.mxu0 %v1695
    %v1706 = vpop.f32.mrf.mxu0
    %v1707 = vadd.f32 0.0, %v1706
    %v1708 = vpop.f32.mrf.mxu0
    %1709 = vdwg.mxu0
    %v1710 = vsel %vm1060, %v1707, -inf
    %1711 = vmax.xlane.f32.xlu0 %v1710
    %v1712 = vpop.xlane.xlu0 %1711
    %v1713 = vsub.f32 %v1707, %v1712
    %v1714 = vmul.f32 %v1713, 1.442695
    %v1715 = vpow.pop %v1714
    %v1716 = vsel %vm1060, %v1715, 0.0
    %1717 = vadd.xlane.f32.xlu0 %v1716
    %v1718 = vpop.xlane.xlu0 %1717
    %v1719 = vrcp.pop %v1718
    %v1720 = vmul.f32 %v1715, %v1719
    %v1721 = vpack.c.bf16 %v1720, %v1720
    %v1722 = vpack.c.bf16 %v1691, %v1691
    %v1724 = vsel %vm1060, %v1721, 0
    %v1727 = vsel %vm1077, %v1722, 0
    %1729 = vmatpush.bf16.msra.mxu0 0
    %1730 = vmatpush.bf16.msra.mxu0 0
    %1731 = vmatpush.bf16.msra.mxu0 0
    %1732 = vmatpush.bf16.msra.mxu0 0
    %1733 = vmatpush.bf16.msra.mxu0 0
    %1734 = vmatpush.bf16.msra.mxu0 0
    %1735 = vmatpush.bf16.msra.mxu0 0
    %1736 = vmatpush.bf16.msra.mxu0 %v1727
    %1737 = vmatmul.bf16.gmra.mxu0 %v1724
    %v1738 = vpop.f32.mrf.mxu0
    %v1739 = vadd.f32 0.0, %v1738
    %v1740 = vpop.f32.mrf.mxu0
    %1741 = vdwg.mxu0
    %v1742 = vmul.f32 %v1739, %v438
    %v1743 = vadd.f32 %v1742, 0.0
    %v1744 = vmul.f32 %v1533, %v444
    %v1745 = vpack.c.bf16 %v1744, %v1744
    %1746 = vmatpush.bf16.xpose.msra.mxu0 0
    %1747 = vmatpush.bf16.xpose.msra.mxu0 0
    %1748 = vmatpush.bf16.xpose.msra.mxu0 0
    %1749 = vmatpush.bf16.xpose.msra.mxu0 0
    %1750 = vmatpush.bf16.xpose.msra.mxu0 0
    %1751 = vmatpush.bf16.xpose.msra.mxu0 0
    %1752 = vmatpush.bf16.xpose.msra.mxu0 0
    %1753 = vmatpush.bf16.xpose.msra.mxu0 %v1696
    %1754 = vmatmul.bf16.gmra.mxu0 %v1745
    %v1755 = vpop.f32.mrf.mxu0
    %v1756 = vadd.f32 0.0, %v1755
    %v1757 = vpop.f32.mrf.mxu0
    %1758 = vdwg.mxu0
    %v1759 = vsel %vm1060, %v1756, -inf
    %1760 = vmax.xlane.f32.xlu0 %v1759
    %v1761 = vpop.xlane.xlu0 %1760
    %v1762 = vsub.f32 %v1756, %v1761
    %v1763 = vmul.f32 %v1762, 1.442695
    %v1764 = vpow.pop %v1763
    %v1765 = vsel %vm1060, %v1764, 0.0
    %1766 = vadd.xlane.f32.xlu0 %v1765
    %v1767 = vpop.xlane.xlu0 %1766
    %v1768 = vrcp.pop %v1767
    %v1769 = vmul.f32 %v1764, %v1768
    %v1770 = vpack.c.bf16 %v1769, %v1769
    %v1772 = vsel %vm1060, %v1770, 0
    %1774 = vmatpush.bf16.msra.mxu0 0
    %1775 = vmatpush.bf16.msra.mxu0 0
    %1776 = vmatpush.bf16.msra.mxu0 0
    %1777 = vmatpush.bf16.msra.mxu0 0
    %1778 = vmatpush.bf16.msra.mxu0 0
    %1779 = vmatpush.bf16.msra.mxu0 0
    %1780 = vmatpush.bf16.msra.mxu0 0
    %1781 = vmatpush.bf16.msra.mxu0 %v1727
    %1782 = vmatmul.bf16.gmra.mxu0 %v1772
    %v1783 = vpop.f32.mrf.mxu0
    %v1784 = vadd.f32 0.0, %v1783
    %v1785 = vpop.f32.mrf.mxu0
    %1786 = vdwg.mxu0
    %v1787 = vmul.f32 %v1784, %v488
    %v1788 = vadd.f32 %v1743, %v1787
    %s1789 = scalar_lea.vmem [#allocation6], 960
    %v1790 = vld [vmem:[%s1789] sm:$0xf]
    %v1791 = vld [vmem:[%s1789 + $0x4] sm:$0xf]
    %v1792 = vld [vmem:[%s1789 + $0x8] sm:$0xf]
    %v1793 = vld [vmem:[%s1789 + $0xc] sm:$0xf]
    %v1794 = vld [vmem:[%s1789 + $0x10] sm:$0xf]
    %v1795 = vld [vmem:[%s1789 + $0x14] sm:$0xf]
    %v1796 = vld [vmem:[%s1789 + $0x18] sm:$0xf]
    %v1797 = vld [vmem:[%s1789 + $0x1c] sm:$0xf]
    %v1798 = vld [vmem:[%s1789 + $0x20] sm:$0xf]
    %v1799 = vld [vmem:[%s1789 + $0x24] sm:$0xf]
    %v1800 = vld [vmem:[%s1789 + $0x28] sm:$0xf]
    %v1801 = vld [vmem:[%s1789 + $0x2c] sm:$0xf]
    %v1802 = vld [vmem:[%s1789 + $0x30] sm:$0xf]
    %v1803 = vld [vmem:[%s1789 + $0x34] sm:$0xf]
    %v1804 = vld [vmem:[%s1789 + $0x38] sm:$0xf]
    %v1805 = vld [vmem:[%s1789 + $0x3c] sm:$0xf]
    %v1806 = vpack.c.bf16 %v1788, %v1788
    %v1807 = vperm.slane %v1429, 1
    %v1824 = vunpack.c.l.b16 %v1790
    %v1825 = vunpack.c.l.b16 %v1791
    %v1826 = vunpack.c.l.b16 %v1792
    %v1827 = vunpack.c.l.b16 %v1793
    %v1828 = vunpack.c.l.b16 %v1794
    %v1829 = vunpack.c.l.b16 %v1795
    %v1830 = vunpack.c.l.b16 %v1796
    %v1831 = vunpack.c.l.b16 %v1797
    %v1832 = vunpack.c.l.b16 %v1798
    %v1833 = vunpack.c.l.b16 %v1799
    %v1834 = vunpack.c.l.b16 %v1800
    %v1835 = vunpack.c.l.b16 %v1801
    %v1836 = vunpack.c.l.b16 %v1802
    %v1837 = vunpack.c.l.b16 %v1803
    %v1838 = vunpack.c.l.b16 %v1804
    %v1839 = vunpack.c.l.b16 %v1805
    %v1840 = vpack.c.b16 %v1825, %v1824
    %v1841 = vpack.c.b16 %v1827, %v1826
    %v1842 = vpack.c.b16 %v1829, %v1828
    %v1843 = vpack.c.b16 %v1831, %v1830
    %v1844 = vpack.c.b16 %v1833, %v1832
    %v1845 = vpack.c.b16 %v1835, %v1834
    %v1846 = vpack.c.b16 %v1837, %v1836
    %v1847 = vpack.c.b16 %v1839, %v1838
    %1856 = vmatpush.bf16.msra.mxu0 %v1847
    %1857 = vmatpush.bf16.msra.mxu0 %v1846
    %1858 = vmatpush.bf16.msra.mxu0 %v1845
    %1859 = vmatpush.bf16.msra.mxu0 %v1844
    %1860 = vmatpush.bf16.msra.mxu0 %v1843
    %1861 = vmatpush.bf16.msra.mxu0 %v1842
    %1862 = vmatpush.bf16.msra.mxu0 %v1841
    %1863 = vmatpush.bf16.msra.mxu0 %v1840
    %1864 = vmatmul.bf16.gmra.mxu0 %v1806
    %v1865 = vpop.f32.mrf.mxu0
    %v1866 = vadd.f32 %v1807, %v1865
    %v1867 = vpop.f32.mrf.mxu0
    %1868 = vdwg.mxu0
    %v1869 = vadd.f32 %v1455, %v1866
    %1870 = vadd.xlane.f32.xlu0 %v1869
    %v1871 = vpop.xlane.xlu0 %1870
    %v1872 = vmul.f32 %v1871, 0.03125
    %v1873 = vmul.f32 %v1869, %v1869
    %1874 = vadd.xlane.f32.xlu0 %v1873
    %v1875 = vpop.xlane.xlu0 %1874
    %v1876 = vmul.f32 %v1875, 0.03125
    %v1877 = vmul.f32 %v1872, %v1872
    %v1878 = vsub.f32 %v1876, %v1877
    %v1879 = vsub.f32 %v1869, %v1872
    %v1880 = vadd.f32 %v1878, 1e-05
    %v1881 = vrsqrt.pop %v1880
    %v1882 = vmul.f32 %v1881, %v1880
    %v1883 = vmul.f32 %v1882, %v1881
    %v1884 = vmul.f32 0.5, %v1883
    %v1885 = vsub.f32 1.5, %v1884
    %v1886 = vmul.f32 %v1881, %v1885
    %vm1887 = vweird.f32 %v1880
    %vm1888 = vweird.f32 %v1881
    %vm1889 = vmor %vm1887, %vm1888
    %v1890 = vsel %vm1889, %v1881, %v1886
    %v1891 = vmul.f32 %v1879, %v1890
    %v1892 = vperm.slane %v1428, 4
    %v1893 = vmul.f32 %v1891, %v1892
    %v1894 = vperm.slane %v1428, 5
    %v1895 = vadd.f32 %v1893, %v1894
    %s1896 = scalar_lea.vmem [#allocation6], 1024
    %v1897 = vld [vmem:[%s1896] sm:$0xf]
    %v1898 = vld [vmem:[%s1896 + $0x4] sm:$0xf]
    %v1899 = vld [vmem:[%s1896 + $0x8] sm:$0xf]
    %v1900 = vld [vmem:[%s1896 + $0xc] sm:$0xf]
    %v1901 = vld [vmem:[%s1896 + $0x10] sm:$0xf]
    %v1902 = vld [vmem:[%s1896 + $0x14] sm:$0xf]
    %v1903 = vld [vmem:[%s1896 + $0x18] sm:$0xf]
    %v1904 = vld [vmem:[%s1896 + $0x1c] sm:$0xf]
    %v1905 = vld [vmem:[%s1896 + $0x20] sm:$0xf]
    %v1906 = vld [vmem:[%s1896 + $0x24] sm:$0xf]
    %v1907 = vld [vmem:[%s1896 + $0x28] sm:$0xf]
    %v1908 = vld [vmem:[%s1896 + $0x2c] sm:$0xf]
    %v1909 = vld [vmem:[%s1896 + $0x30] sm:$0xf]
    %v1910 = vld [vmem:[%s1896 + $0x34] sm:$0xf]
    %v1911 = vld [vmem:[%s1896 + $0x38] sm:$0xf]
    %v1912 = vld [vmem:[%s1896 + $0x3c] sm:$0xf]
    %v1913 = vpack.c.bf16 %v1895, %v1895
    %v1914 = vperm.slane %v1429, 2
    %v1931 = vunpack.c.l.b16 %v1897
    %v1932 = vunpack.c.l.b16 %v1898
    %v1933 = vunpack.c.l.b16 %v1899
    %v1934 = vunpack.c.l.b16 %v1900
    %v1935 = vunpack.c.l.b16 %v1901
    %v1936 = vunpack.c.l.b16 %v1902
    %v1937 = vunpack.c.l.b16 %v1903
    %v1938 = vunpack.c.l.b16 %v1904
    %v1939 = vunpack.c.l.b16 %v1905
    %v1940 = vunpack.c.l.b16 %v1906
    %v1941 = vunpack.c.l.b16 %v1907
    %v1942 = vunpack.c.l.b16 %v1908
    %v1943 = vunpack.c.l.b16 %v1909
    %v1944 = vunpack.c.l.b16 %v1910
    %v1945 = vunpack.c.l.b16 %v1911
    %v1946 = vunpack.c.l.b16 %v1912
    %v1947 = vpack.c.b16 %v1932, %v1931
    %v1948 = vpack.c.b16 %v1934, %v1933
    %v1949 = vpack.c.b16 %v1936, %v1935
    %v1950 = vpack.c.b16 %v1938, %v1937
    %v1951 = vpack.c.b16 %v1940, %v1939
    %v1952 = vpack.c.b16 %v1942, %v1941
    %v1953 = vpack.c.b16 %v1944, %v1943
    %v1954 = vpack.c.b16 %v1946, %v1945
    %1963 = vmatpush.bf16.msra.mxu0 %v1954
    %1964 = vmatpush.bf16.msra.mxu0 %v1953
    %1965 = vmatpush.bf16.msra.mxu0 %v1952
    %1966 = vmatpush.bf16.msra.mxu0 %v1951
    %1967 = vmatpush.bf16.msra.mxu0 %v1950
    %1968 = vmatpush.bf16.msra.mxu0 %v1949
    %1969 = vmatpush.bf16.msra.mxu0 %v1948
    %1970 = vmatpush.bf16.msra.mxu0 %v1947
    %1971 = vmatmul.bf16.gmra.mxu0 %v1913
    %v1972 = vpop.f32.mrf.mxu0
    %v1973 = vadd.f32 %v1914, %v1972
    %v1974 = vpop.f32.mrf.mxu0
    %1975 = vdwg.mxu0
    %v1976 = vmul.f32 %v1973, 0.5
    %v1977 = vmul.f32 %v1973, 0.044715
    %v1978 = vmul.f32 %v1977, %v1973
    %v1979 = vmul.f32 %v1978, %v1973
    %v1980 = vadd.f32 %v1973, %v1979
    %v1981 = vmul.f32 %v1980, 0.7978846
    %v1982 = vtanh.pop %v1981
    %v1983 = vadd.f32 %v1982, 1.0
    %v1984 = vmul.f32 %v1976, %v1983
    %s1985 = scalar_lea.vmem [#allocation6], 1088
    %v1986 = vld [vmem:[%s1985] sm:$0xf]
    %v1987 = vld [vmem:[%s1985 + $0x4] sm:$0xf]
    %v1988 = vld [vmem:[%s1985 + $0x8] sm:$0xf]
    %v1989 = vld [vmem:[%s1985 + $0xc] sm:$0xf]
    %v1990 = vld [vmem:[%s1985 + $0x10] sm:$0xf]
    %v1991 = vld [vmem:[%s1985 + $0x14] sm:$0xf]
    %v1992 = vld [vmem:[%s1985 + $0x18] sm:$0xf]
    %v1993 = vld [vmem:[%s1985 + $0x1c] sm:$0xf]
    %v1994 = vld [vmem:[%s1985 + $0x20] sm:$0xf]
    %v1995 = vld [vmem:[%s1985 + $0x24] sm:$0xf]
    %v1996 = vld [vmem:[%s1985 + $0x28] sm:$0xf]
    %v1997 = vld [vmem:[%s1985 + $0x2c] sm:$0xf]
    %v1998 = vld [vmem:[%s1985 + $0x30] sm:$0xf]
    %v1999 = vld [vmem:[%s1985 + $0x34] sm:$0xf]
    %v2000 = vld [vmem:[%s1985 + $0x38] sm:$0xf]
    %v2001 = vld [vmem:[%s1985 + $0x3c] sm:$0xf]
    %v2002 = vpack.c.bf16 %v1984, %v1984
    %v2003 = vperm.slane %v1429, 3
    %v2020 = vunpack.c.l.b16 %v1986
    %v2021 = vunpack.c.l.b16 %v1987
    %v2022 = vunpack.c.l.b16 %v1988
    %v2023 = vunpack.c.l.b16 %v1989
    %v2024 = vunpack.c.l.b16 %v1990
    %v2025 = vunpack.c.l.b16 %v1991
    %v2026 = vunpack.c.l.b16 %v1992
    %v2027 = vunpack.c.l.b16 %v1993
    %v2028 = vunpack.c.l.b16 %v1994
    %v2029 = vunpack.c.l.b16 %v1995
    %v2030 = vunpack.c.l.b16 %v1996
    %v2031 = vunpack.c.l.b16 %v1997
    %v2032 = vunpack.c.l.b16 %v1998
    %v2033 = vunpack.c.l.b16 %v1999
    %v2034 = vunpack.c.l.b16 %v2000
    %v2035 = vunpack.c.l.b16 %v2001
    %v2036 = vpack.c.b16 %v2021, %v2020
    %v2037 = vpack.c.b16 %v2023, %v2022
    %v2038 = vpack.c.b16 %v2025, %v2024
    %v2039 = vpack.c.b16 %v2027, %v2026
    %v2040 = vpack.c.b16 %v2029, %v2028
    %v2041 = vpack.c.b16 %v2031, %v2030
    %v2042 = vpack.c.b16 %v2033, %v2032
    %v2043 = vpack.c.b16 %v2035, %v2034
    %2052 = vmatpush.bf16.msra.mxu0 %v2043
    %2053 = vmatpush.bf16.msra.mxu0 %v2042
    %2054 = vmatpush.bf16.msra.mxu0 %v2041
    %2055 = vmatpush.bf16.msra.mxu0 %v2040
    %2056 = vmatpush.bf16.msra.mxu0 %v2039
    %2057 = vmatpush.bf16.msra.mxu0 %v2038
    %2058 = vmatpush.bf16.msra.mxu0 %v2037
    %2059 = vmatpush.bf16.msra.mxu0 %v2036
    %2060 = vmatmul.bf16.gmra.mxu0 %v2002
    %v2061 = vpop.f32.mrf.mxu0
    %v2062 = vadd.f32 %v2003, %v2061
    %v2063 = vpop.f32.mrf.mxu0
    %2064 = vdwg.mxu0
    %v2065 = vmul.f32 %v2062, 0.5
    %v2066 = vmul.f32 %v2062, 0.044715
    %v2067 = vmul.f32 %v2066, %v2062
    %v2068 = vmul.f32 %v2067, %v2062
    %v2069 = vadd.f32 %v2062, %v2068
    %v2070 = vmul.f32 %v2069, 0.7978846
    %v2071 = vtanh.pop %v2070
    %v2072 = vadd.f32 %v2071, 1.0
    %v2073 = vmul.f32 %v2065, %v2072
    %v2074 = vadd.f32 %v1895, %v2073
    %2075 = vadd.xlane.f32.xlu0 %v2074
    %v2076 = vpop.xlane.xlu0 %2075
    %v2077 = vmul.f32 %v2076, 0.03125
    %v2078 = vmul.f32 %v2074, %v2074
    %2079 = vadd.xlane.f32.xlu0 %v2078
    %v2080 = vpop.xlane.xlu0 %2079
    %v2081 = vmul.f32 %v2080, 0.03125
    %v2082 = vmul.f32 %v2077, %v2077
    %v2083 = vsub.f32 %v2081, %v2082
    %v2084 = vsub.f32 %v2074, %v2077
    %v2085 = vadd.f32 %v2083, 1e-05
    %v2086 = vrsqrt.pop %v2085
    %v2087 = vmul.f32 %v2086, %v2085
    %v2088 = vmul.f32 %v2087, %v2086
    %v2089 = vmul.f32 0.5, %v2088
    %v2090 = vsub.f32 1.5, %v2089
    %v2091 = vmul.f32 %v2086, %v2090
    %vm2092 = vweird.f32 %v2085
    %vm2093 = vweird.f32 %v2086
    %vm2094 = vmor %vm2092, %vm2093
    %v2095 = vsel %vm2094, %v2086, %v2091
    %v2096 = vmul.f32 %v2084, %v2095
    %v2097 = vmul.f32 %v2096, %v94
    %v2098 = vadd.f32 %v2097, %v96
    %v2099 = vpack.c.bf16 %v2098, %v2098
    %2100 = vmatpush.bf16.msra.mxu0 %v205
    %2101 = vmatpush.bf16.msra.mxu0 %v204
    %2102 = vmatpush.bf16.msra.mxu0 %v203
    %2103 = vmatpush.bf16.msra.mxu0 %v202
    %2104 = vmatpush.bf16.msra.mxu0 %v201
    %2105 = vmatpush.bf16.msra.mxu0 %v200
    %2106 = vmatpush.bf16.msra.mxu0 %v199
    %2107 = vmatpush.bf16.msra.mxu0 %v198
    %2108 = vmatmul.bf16.gmra.mxu0 %v2099
    %v2109 = vpop.f32.mrf.mxu0
    %v2110 = vadd.f32 %v165, %v2109
    %v2111 = vpop.f32.mrf.mxu0
    %2112 = vdwg.mxu0
    %v2113 = vmul.f32 %v2110, %v391
    %v2114 = vpack.c.bf16 %v2113, %v2113
    %2115 = vmatpush.bf16.xpose.msra.mxu0 0
    %2116 = vmatpush.bf16.xpose.msra.mxu0 0
    %2117 = vmatpush.bf16.xpose.msra.mxu0 0
    %2118 = vmatpush.bf16.xpose.msra.mxu0 0
    %2119 = vmatpush.bf16.xpose.msra.mxu0 0
    %2120 = vmatpush.bf16.xpose.msra.mxu0 0
    %2121 = vmatpush.bf16.xpose.msra.mxu0 0
    %2122 = vmatpush.bf16.xpose.msra.mxu0 %v394
    %2123 = vmatmul.bf16.gmra.mxu0 %v2114
    %v2124 = vpop.f32.mrf.mxu0
    %v2125 = vadd.f32 0.0, %v2124
    %v2126 = vpop.f32.mrf.mxu0
    %2127 = vdwg.mxu0
    %v2128 = vsel %vm408, %v2125, -inf
    %2129 = vmax.xlane.f32.xlu0 %v2128
    %v2130 = vpop.xlane.xlu0 %2129
    %v2131 = vsub.f32 %v2125, %v2130
    %v2132 = vmul.f32 %v2131, 1.442695
    %v2133 = vpow.pop %v2132
    %v2134 = vsel %vm408, %v2133, 0.0
    %2135 = vadd.xlane.f32.xlu0 %v2134
    %v2136 = vpop.xlane.xlu0 %2135
    %v2137 = vrcp.pop %v2136
    %v2138 = vmul.f32 %v2133, %v2137
    %v2139 = vpack.c.bf16 %v2138, %v2138
    %v2141 = vsel %vm408, %v2139, 0
    %2143 = vmatpush.bf16.msra.mxu0 0
    %2144 = vmatpush.bf16.msra.mxu0 0
    %2145 = vmatpush.bf16.msra.mxu0 0
    %2146 = vmatpush.bf16.msra.mxu0 0
    %2147 = vmatpush.bf16.msra.mxu0 0
    %2148 = vmatpush.bf16.msra.mxu0 0
    %2149 = vmatpush.bf16.msra.mxu0 0
    %2150 = vmatpush.bf16.msra.mxu0 %v421
    %2151 = vmatmul.bf16.gmra.mxu0 %v2141
    %v2152 = vpop.f32.mrf.mxu0
    %v2153 = vadd.f32 0.0, %v2152
    %v2154 = vpop.f32.mrf.mxu0
    %2155 = vdwg.mxu0
    %v2156 = vmul.f32 %v2153, %v438
    %v2157 = vadd.f32 %v2156, 0.0
    %v2158 = vmul.f32 %v2110, %v444
    %v2159 = vpack.c.bf16 %v2158, %v2158
    %2160 = vmatpush.bf16.xpose.msra.mxu0 0
    %2161 = vmatpush.bf16.xpose.msra.mxu0 0
    %2162 = vmatpush.bf16.xpose.msra.mxu0 0
    %2163 = vmatpush.bf16.xpose.msra.mxu0 0
    %2164 = vmatpush.bf16.xpose.msra.mxu0 0
    %2165 = vmatpush.bf16.xpose.msra.mxu0 0
    %2166 = vmatpush.bf16.xpose.msra.mxu0 0
    %2167 = vmatpush.bf16.xpose.msra.mxu0 %v394
    %2168 = vmatmul.bf16.gmra.mxu0 %v2159
    %v2169 = vpop.f32.mrf.mxu0
    %v2170 = vadd.f32 0.0, %v2169
    %v2171 = vpop.f32.mrf.mxu0
    %2172 = vdwg.mxu0
    %v2173 = vsel %vm408, %v2170, -inf
    %2174 = vmax.xlane.f32.xlu0 %v2173
    %v2175 = vpop.xlane.xlu0 %2174
    %v2176 = vsub.f32 %v2170, %v2175
    %v2177 = vmul.f32 %v2176, 1.442695
    %v2178 = vpow.pop %v2177
    %v2179 = vsel %vm408, %v2178, 0.0
    %2180 = vadd.xlane.f32.xlu0 %v2179
    %v2181 = vpop.xlane.xlu0 %2180
    %v2182 = vrcp.pop %v2181
    %v2183 = vmul.f32 %v2178, %v2182
    %v2184 = vpack.c.bf16 %v2183, %v2183
    %v2186 = vsel %vm408, %v2184, 0
    %2188 = vmatpush.bf16.msra.mxu0 0
    %2189 = vmatpush.bf16.msra.mxu0 0
    %2190 = vmatpush.bf16.msra.mxu0 0
    %2191 = vmatpush.bf16.msra.mxu0 0
    %2192 = vmatpush.bf16.msra.mxu0 0
    %2193 = vmatpush.bf16.msra.mxu0 0
    %2194 = vmatpush.bf16.msra.mxu0 0
    %2195 = vmatpush.bf16.msra.mxu0 %v421
    %2196 = vmatmul.bf16.gmra.mxu0 %v2186
    %v2197 = vpop.f32.mrf.mxu0
    %v2198 = vadd.f32 0.0, %v2197
    %v2199 = vpop.f32.mrf.mxu0
    %2200 = vdwg.mxu0
    %v2201 = vmul.f32 %v2198, %v488
    %v2202 = vadd.f32 %v2157, %v2201
    %v2203 = vpack.c.bf16 %v2202, %v2202
    %2204 = vmatpush.bf16.msra.mxu0 %v549
    %2205 = vmatpush.bf16.msra.mxu0 %v548
    %2206 = vmatpush.bf16.msra.mxu0 %v547
    %2207 = vmatpush.bf16.msra.mxu0 %v546
    %2208 = vmatpush.bf16.msra.mxu0 %v545
    %2209 = vmatpush.bf16.msra.mxu0 %v544
    %2210 = vmatpush.bf16.msra.mxu0 %v543
    %2211 = vmatpush.bf16.msra.mxu0 %v542
    %2212 = vmatmul.bf16.gmra.mxu0 %v2203
    %v2213 = vpop.f32.mrf.mxu0
    %v2214 = vadd.f32 %v509, %v2213
    %v2215 = vpop.f32.mrf.mxu0
    %2216 = vdwg.mxu0
    %v2217 = vadd.f32 %v2098, %v2214
    %2218 = vadd.xlane.f32.xlu0 %v2217
    %v2219 = vpop.xlane.xlu0 %2218
    %v2220 = vmul.f32 %v2219, 0.03125
    %v2221 = vmul.f32 %v2217, %v2217
    %2222 = vadd.xlane.f32.xlu0 %v2221
    %v2223 = vpop.xlane.xlu0 %2222
    %v2224 = vmul.f32 %v2223, 0.03125
    %v2225 = vmul.f32 %v2220, %v2220
    %v2226 = vsub.f32 %v2224, %v2225
    %v2227 = vsub.f32 %v2217, %v2220
    %v2228 = vadd.f32 %v2226, 1e-05
    %v2229 = vrsqrt.pop %v2228
    %v2230 = vmul.f32 %v2229, %v2228
    %v2231 = vmul.f32 %v2230, %v2229
    %v2232 = vmul.f32 0.5, %v2231
    %v2233 = vsub.f32 1.5, %v2232
    %v2234 = vmul.f32 %v2229, %v2233
    %vm2235 = vweird.f32 %v2228
    %vm2236 = vweird.f32 %v2229
    %vm2237 = vmor %vm2235, %vm2236
    %v2238 = vsel %vm2237, %v2229, %v2234
    %v2239 = vmul.f32 %v2227, %v2238
    %v2240 = vmul.f32 %v2239, %v594
    %v2241 = vadd.f32 %v2240, %v596
    %v2242 = vpack.c.bf16 %v2241, %v2241
    %2243 = vmatpush.bf16.msra.mxu0 %v656
    %2244 = vmatpush.bf16.msra.mxu0 %v655
    %2245 = vmatpush.bf16.msra.mxu0 %v654
    %2246 = vmatpush.bf16.msra.mxu0 %v653
    %2247 = vmatpush.bf16.msra.mxu0 %v652
    %2248 = vmatpush.bf16.msra.mxu0 %v651
    %2249 = vmatpush.bf16.msra.mxu0 %v650
    %2250 = vmatpush.bf16.msra.mxu0 %v649
    %2251 = vmatmul.bf16.gmra.mxu0 %v2242
    %v2252 = vpop.f32.mrf.mxu0
    %v2253 = vadd.f32 %v616, %v2252
    %v2254 = vpop.f32.mrf.mxu0
    %2255 = vdwg.mxu0
    %v2256 = vmul.f32 %v2253, 0.5
    %v2257 = vmul.f32 %v2253, 0.044715
    %v2258 = vmul.f32 %v2257, %v2253
    %v2259 = vmul.f32 %v2258, %v2253
    %v2260 = vadd.f32 %v2253, %v2259
    %v2261 = vmul.f32 %v2260, 0.7978846
    %v2262 = vtanh.pop %v2261
    %v2263 = vadd.f32 %v2262, 1.0
    %v2264 = vmul.f32 %v2256, %v2263
    %v2265 = vpack.c.bf16 %v2264, %v2264
    %2266 = vmatpush.bf16.msra.mxu0 %v745
    %2267 = vmatpush.bf16.msra.mxu0 %v744
    %2268 = vmatpush.bf16.msra.mxu0 %v743
    %2269 = vmatpush.bf16.msra.mxu0 %v742
    %2270 = vmatpush.bf16.msra.mxu0 %v741
    %2271 = vmatpush.bf16.msra.mxu0 %v740
    %2272 = vmatpush.bf16.msra.mxu0 %v739
    %2273 = vmatpush.bf16.msra.mxu0 %v738
    %2274 = vmatmul.bf16.gmra.mxu0 %v2265
    %v2275 = vpop.f32.mrf.mxu0
    %v2276 = vadd.f32 %v705, %v2275
    %v2277 = vpop.f32.mrf.mxu0
    %2278 = vdwg.mxu0
    %v2279 = vmul.f32 %v2276, 0.5
    %v2280 = vmul.f32 %v2276, 0.044715
    %v2281 = vmul.f32 %v2280, %v2276
    %v2282 = vmul.f32 %v2281, %v2276
    %v2283 = vadd.f32 %v2276, %v2282
    %v2284 = vmul.f32 %v2283, 0.7978846
    %v2285 = vtanh.pop %v2284
    %v2286 = vadd.f32 %v2285, 1.0
    %v2287 = vmul.f32 %v2279, %v2286
    %v2288 = vadd.f32 %v2241, %v2287
    %2289 = vadd.xlane.f32.xlu0 %v2288
    %v2290 = vpop.xlane.xlu0 %2289
    %v2291 = vmul.f32 %v2290, 0.03125
    %v2292 = vmul.f32 %v2288, %v2288
    %2293 = vadd.xlane.f32.xlu0 %v2292
    %v2294 = vpop.xlane.xlu0 %2293
    %v2295 = vmul.f32 %v2294, 0.03125
    %v2296 = vmul.f32 %v2291, %v2291
    %v2297 = vsub.f32 %v2295, %v2296
    %v2298 = vsub.f32 %v2288, %v2291
    %v2299 = vadd.f32 %v2297, 1e-05
    %v2300 = vrsqrt.pop %v2299
    %v2301 = vmul.f32 %v2300, %v2299
    %v2302 = vmul.f32 %v2301, %v2300
    %v2303 = vmul.f32 0.5, %v2302
    %v2304 = vsub.f32 1.5, %v2303
    %v2305 = vmul.f32 %v2300, %v2304
    %vm2306 = vweird.f32 %v2299
    %vm2307 = vweird.f32 %v2300
    %vm2308 = vmor %vm2306, %vm2307
    %v2309 = vsel %vm2308, %v2300, %v2305
    %v2310 = vmul.f32 %v2298, %v2309
    %v2311 = vmul.f32 %v2310, %v802
    %v2312 = vadd.f32 %v2311, %v804
    %v2313 = vpack.c.bf16 %v2312, %v2312
    %2314 = vmatpush.bf16.msra.mxu0 %v864
    %2315 = vmatpush.bf16.msra.mxu0 %v863
    %2316 = vmatpush.bf16.msra.mxu0 %v862
    %2317 = vmatpush.bf16.msra.mxu0 %v861
    %2318 = vmatpush.bf16.msra.mxu0 %v860
    %2319 = vmatpush.bf16.msra.mxu0 %v859
    %2320 = vmatpush.bf16.msra.mxu0 %v858
    %2321 = vmatpush.bf16.msra.mxu0 %v857
    %2322 = vmatmul.bf16.gmra.mxu0 %v2313
    %v2323 = vpop.f32.mrf.mxu0
    %v2324 = vadd.f32 %v824, %v2323
    %v2325 = vpop.f32.mrf.mxu0
    %2326 = vdwg.mxu0
    %2327 = vmatpush.bf16.msra.mxu0 %v943
    %2328 = vmatpush.bf16.msra.mxu0 %v942
    %2329 = vmatpush.bf16.msra.mxu0 %v941
    %2330 = vmatpush.bf16.msra.mxu0 %v940
    %2331 = vmatpush.bf16.msra.mxu0 %v939
    %2332 = vmatpush.bf16.msra.mxu0 %v938
    %2333 = vmatpush.bf16.msra.mxu0 %v937
    %2334 = vmatpush.bf16.msra.mxu0 %v936
    %2335 = vmatmul.bf16.gmra.mxu0 %v2313
    %v2336 = vpop.f32.mrf.mxu0
    %v2337 = vadd.f32 %v903, %v2336
    %v2338 = vpop.f32.mrf.mxu0
    %2339 = vdwg.mxu0
    %2340 = vmatpush.bf16.msra.mxu0 %v1022
    %2341 = vmatpush.bf16.msra.mxu0 %v1021
    %2342 = vmatpush.bf16.msra.mxu0 %v1020
    %2343 = vmatpush.bf16.msra.mxu0 %v1019
    %2344 = vmatpush.bf16.msra.mxu0 %v1018
    %2345 = vmatpush.bf16.msra.mxu0 %v1017
    %2346 = vmatpush.bf16.msra.mxu0 %v1016
    %2347 = vmatpush.bf16.msra.mxu0 %v1015
    %2348 = vmatmul.bf16.gmra.mxu0 %v2313
    %v2349 = vpop.f32.mrf.mxu0
    %v2350 = vadd.f32 %v982, %v2349
    %v2351 = vpop.f32.mrf.mxu0
    %2352 = vdwg.mxu0
    %v2353 = vmul.f32 %v2324, %v391
    %v2354 = vpack.c.bf16 %v2353, %v2353
    %v2355 = vpack.c.bf16 %v2337, %v2337
    %2356 = vmatpush.bf16.xpose.msra.mxu0 0
    %2357 = vmatpush.bf16.xpose.msra.mxu0 0
    %2358 = vmatpush.bf16.xpose.msra.mxu0 0
    %2359 = vmatpush.bf16.xpose.msra.mxu0 0
    %2360 = vmatpush.bf16.xpose.msra.mxu0 0
    %2361 = vmatpush.bf16.xpose.msra.mxu0 0
    %2362 = vmatpush.bf16.xpose.msra.mxu0 0
    %2363 = vmatpush.bf16.xpose.msra.mxu0 %v2355
    %2364 = vmatmul.bf16.gmra.mxu0 %v2354
    %v2365 = vpop.f32.mrf.mxu0
    %v2366 = vadd.f32 0.0, %v2365
    %v2367 = vpop.f32.mrf.mxu0
    %2368 = vdwg.mxu0
    %v2369 = vsel %vm1060, %v2366, -inf
    %2370 = vmax.xlane.f32.xlu0 %v2369
    %v2371 = vpop.xlane.xlu0 %2370
    %v2372 = vsub.f32 %v2366, %v2371
    %v2373 = vmul.f32 %v2372, 1.442695
    %v2374 = vpow.pop %v2373
    %v2375 = vsel %vm1060, %v2374, 0.0
    %2376 = vadd.xlane.f32.xlu0 %v2375
    %v2377 = vpop.xlane.xlu0 %2376
    %v2378 = vrcp.pop %v2377
    %v2379 = vmul.f32 %v2374, %v2378
    %v2380 = vpack.c.bf16 %v2379, %v2379
    %v2381 = vpack.c.bf16 %v2350, %v2350
    %v2383 = vsel %vm1060, %v2380, 0
    %v2386 = vsel %vm1077, %v2381, 0
    %2388 = vmatpush.bf16.msra.mxu0 0
    %2389 = vmatpush.bf16.msra.mxu0 0
    %2390 = vmatpush.bf16.msra.mxu0 0
    %2391 = vmatpush.bf16.msra.mxu0 0
    %2392 = vmatpush.bf16.msra.mxu0 0
    %2393 = vmatpush.bf16.msra.mxu0 0
    %2394 = vmatpush.bf16.msra.mxu0 0
    %2395 = vmatpush.bf16.msra.mxu0 %v2386
    %2396 = vmatmul.bf16.gmra.mxu0 %v2383
    %v2397 = vpop.f32.mrf.mxu0
    %v2398 = vadd.f32 0.0, %v2397
    %v2399 = vpop.f32.mrf.mxu0
    %2400 = vdwg.mxu0
    %v2401 = vmul.f32 %v2398, %v438
    %v2402 = vadd.f32 %v2401, 0.0
    %v2403 = vmul.f32 %v2324, %v444
    %v2404 = vpack.c.bf16 %v2403, %v2403
    %2405 = vmatpush.bf16.xpose.msra.mxu0 0
    %2406 = vmatpush.bf16.xpose.msra.mxu0 0
    %2407 = vmatpush.bf16.xpose.msra.mxu0 0
    %2408 = vmatpush.bf16.xpose.msra.mxu0 0
    %2409 = vmatpush.bf16.xpose.msra.mxu0 0
    %2410 = vmatpush.bf16.xpose.msra.mxu0 0
    %2411 = vmatpush.bf16.xpose.msra.mxu0 0
    %2412 = vmatpush.bf16.xpose.msra.mxu0 %v2355
    %2413 = vmatmul.bf16.gmra.mxu0 %v2404
    %v2414 = vpop.f32.mrf.mxu0
    %v2415 = vadd.f32 0.0, %v2414
    %v2416 = vpop.f32.mrf.mxu0
    %2417 = vdwg.mxu0
    %v2418 = vsel %vm1060, %v2415, -inf
    %2419 = vmax.xlane.f32.xlu0 %v2418
    %v2420 = vpop.xlane.xlu0 %2419
    %v2421 = vsub.f32 %v2415, %v2420
    %v2422 = vmul.f32 %v2421, 1.442695
    %v2423 = vpow.pop %v2422
    %v2424 = vsel %vm1060, %v2423, 0.0
    %2425 = vadd.xlane.f32.xlu0 %v2424
    %v2426 = vpop.xlane.xlu0 %2425
    %v2427 = vrcp.pop %v2426
    %v2428 = vmul.f32 %v2423, %v2427
    %v2429 = vpack.c.bf16 %v2428, %v2428
    %v2431 = vsel %vm1060, %v2429, 0
    %2433 = vmatpush.bf16.msra.mxu0 0
    %2434 = vmatpush.bf16.msra.mxu0 0
    %2435 = vmatpush.bf16.msra.mxu0 0
    %2436 = vmatpush.bf16.msra.mxu0 0
    %2437 = vmatpush.bf16.msra.mxu0 0
    %2438 = vmatpush.bf16.msra.mxu0 0
    %2439 = vmatpush.bf16.msra.mxu0 0
    %2440 = vmatpush.bf16.msra.mxu0 %v2386
    %2441 = vmatmul.bf16.gmra.mxu0 %v2431
    %v2442 = vpop.f32.mrf.mxu0
    %v2443 = vadd.f32 0.0, %v2442
    %v2444 = vpop.f32.mrf.mxu0
    %2445 = vdwg.mxu0
    %v2446 = vmul.f32 %v2443, %v488
    %v2447 = vadd.f32 %v2402, %v2446
    %v2448 = vpack.c.bf16 %v2447, %v2447
    %2449 = vmatpush.bf16.msra.mxu0 %v1199
    %2450 = vmatpush.bf16.msra.mxu0 %v1198
    %2451 = vmatpush.bf16.msra.mxu0 %v1197
    %2452 = vmatpush.bf16.msra.mxu0 %v1196
    %2453 = vmatpush.bf16.msra.mxu0 %v1195
    %2454 = vmatpush.bf16.msra.mxu0 %v1194
    %2455 = vmatpush.bf16.msra.mxu0 %v1193
    %2456 = vmatpush.bf16.msra.mxu0 %v1192
    %2457 = vmatmul.bf16.gmra.mxu0 %v2448
    %v2458 = vpop.f32.mrf.mxu0
    %v2459 = vadd.f32 %v1159, %v2458
    %v2460 = vpop.f32.mrf.mxu0
    %2461 = vdwg.mxu0
    %v2462 = vadd.f32 %v2312, %v2459
    %2463 = vadd.xlane.f32.xlu0 %v2462
    %v2464 = vpop.xlane.xlu0 %2463
    %v2465 = vmul.f32 %v2464, 0.03125
    %v2466 = vmul.f32 %v2462, %v2462
    %2467 = vadd.xlane.f32.xlu0 %v2466
    %v2468 = vpop.xlane.xlu0 %2467
    %v2469 = vmul.f32 %v2468, 0.03125
    %v2470 = vmul.f32 %v2465, %v2465
    %v2471 = vsub.f32 %v2469, %v2470
    %v2472 = vsub.f32 %v2462, %v2465
    %v2473 = vadd.f32 %v2471, 1e-05
    %v2474 = vrsqrt.pop %v2473
    %v2475 = vmul.f32 %v2474, %v2473
    %v2476 = vmul.f32 %v2475, %v2474
    %v2477 = vmul.f32 0.5, %v2476
    %v2478 = vsub.f32 1.5, %v2477
    %v2479 = vmul.f32 %v2474, %v2478
    %vm2480 = vweird.f32 %v2473
    %vm2481 = vweird.f32 %v2474
    %vm2482 = vmor %vm2480, %vm2481
    %v2483 = vsel %vm2482, %v2474, %v2479
    %v2484 = vmul.f32 %v2472, %v2483
    %v2485 = vmul.f32 %v2484, %v1244
    %v2486 = vadd.f32 %v2485, %v1246
    %v2487 = vpack.c.bf16 %v2486, %v2486
    %2488 = vmatpush.bf16.msra.mxu0 %v1306
    %2489 = vmatpush.bf16.msra.mxu0 %v1305
    %2490 = vmatpush.bf16.msra.mxu0 %v1304
    %2491 = vmatpush.bf16.msra.mxu0 %v1303
    %2492 = vmatpush.bf16.msra.mxu0 %v1302
    %2493 = vmatpush.bf16.msra.mxu0 %v1301
    %2494 = vmatpush.bf16.msra.mxu0 %v1300
    %2495 = vmatpush.bf16.msra.mxu0 %v1299
    %2496 = vmatmul.bf16.gmra.mxu0 %v2487
    %v2497 = vpop.f32.mrf.mxu0
    %v2498 = vadd.f32 %v1266, %v2497
    %v2499 = vpop.f32.mrf.mxu0
    %2500 = vdwg.mxu0
    %v2501 = vmul.f32 %v2498, 0.5
    %v2502 = vmul.f32 %v2498, 0.044715
    %v2503 = vmul.f32 %v2502, %v2498
    %v2504 = vmul.f32 %v2503, %v2498
    %v2505 = vadd.f32 %v2498, %v2504
    %v2506 = vmul.f32 %v2505, 0.7978846
    %v2507 = vtanh.pop %v2506
    %v2508 = vadd.f32 %v2507, 1.0
    %v2509 = vmul.f32 %v2501, %v2508
    %v2510 = vpack.c.bf16 %v2509, %v2509
    %2511 = vmatpush.bf16.msra.mxu0 %v1395
    %2512 = vmatpush.bf16.msra.mxu0 %v1394
    %2513 = vmatpush.bf16.msra.mxu0 %v1393
    %2514 = vmatpush.bf16.msra.mxu0 %v1392
    %2515 = vmatpush.bf16.msra.mxu0 %v1391
    %2516 = vmatpush.bf16.msra.mxu0 %v1390
    %2517 = vmatpush.bf16.msra.mxu0 %v1389
    %2518 = vmatpush.bf16.msra.mxu0 %v1388
    %2519 = vmatmul.bf16.gmra.mxu0 %v2510
    %v2520 = vpop.f32.mrf.mxu0
    %v2521 = vadd.f32 %v1355, %v2520
    %v2522 = vpop.f32.mrf.mxu0
    %2523 = vdwg.mxu0
    %v2524 = vmul.f32 %v2521, 0.5
    %v2525 = vmul.f32 %v2521, 0.044715
    %v2526 = vmul.f32 %v2525, %v2521
    %v2527 = vmul.f32 %v2526, %v2521
    %v2528 = vadd.f32 %v2521, %v2527
    %v2529 = vmul.f32 %v2528, 0.7978846
    %v2530 = vtanh.pop %v2529
    %v2531 = vadd.f32 %v2530, 1.0
    %v2532 = vmul.f32 %v2524, %v2531
    %v2533 = vadd.f32 %v2486, %v2532
    %2534 = vadd.xlane.f32.xlu0 %v2533
    %v2535 = vpop.xlane.xlu0 %2534
    %v2536 = vmul.f32 %v2535, 0.03125
    %v2537 = vmul.f32 %v2533, %v2533
    %2538 = vadd.xlane.f32.xlu0 %v2537
    %v2539 = vpop.xlane.xlu0 %2538
    %v2540 = vmul.f32 %v2539, 0.03125
    %v2541 = vmul.f32 %v2536, %v2536
    %v2542 = vsub.f32 %v2540, %v2541
    %v2543 = vsub.f32 %v2533, %v2536
    %v2544 = vadd.f32 %v2542, 1e-05
    %v2545 = vrsqrt.pop %v2544
    %v2546 = vmul.f32 %v2545, %v2544
    %v2547 = vmul.f32 %v2546, %v2545
    %v2548 = vmul.f32 0.5, %v2547
    %v2549 = vsub.f32 1.5, %v2548
    %v2550 = vmul.f32 %v2545, %v2549
    %vm2551 = vweird.f32 %v2544
    %vm2552 = vweird.f32 %v2545
    %vm2553 = vmor %vm2551, %vm2552
    %v2554 = vsel %vm2553, %v2545, %v2550
    %v2555 = vmul.f32 %v2543, %v2554
    %v2556 = vmul.f32 %v2555, %v1452
    %v2557 = vadd.f32 %v2556, %v1454
    %v2558 = vpack.c.bf16 %v2557, %v2557
    %2559 = vmatpush.bf16.msra.mxu0 %v1514
    %2560 = vmatpush.bf16.msra.mxu0 %v1513
    %2561 = vmatpush.bf16.msra.mxu0 %v1512
    %2562 = vmatpush.bf16.msra.mxu0 %v1511
    %2563 = vmatpush.bf16.msra.mxu0 %v1510
    %2564 = vmatpush.bf16.msra.mxu0 %v1509
    %2565 = vmatpush.bf16.msra.mxu0 %v1508
    %2566 = vmatpush.bf16.msra.mxu0 %v1507
    %2567 = vmatmul.bf16.gmra.mxu0 %v2558
    %v2568 = vpop.f32.mrf.mxu0
    %v2569 = vadd.f32 %v1474, %v2568
    %v2570 = vpop.f32.mrf.mxu0
    %2571 = vdwg.mxu0
    %2572 = vmatpush.bf16.msra.mxu0 %v1593
    %2573 = vmatpush.bf16.msra.mxu0 %v1592
    %2574 = vmatpush.bf16.msra.mxu0 %v1591
    %2575 = vmatpush.bf16.msra.mxu0 %v1590
    %2576 = vmatpush.bf16.msra.mxu0 %v1589
    %2577 = vmatpush.bf16.msra.mxu0 %v1588
    %2578 = vmatpush.bf16.msra.mxu0 %v1587
    %2579 = vmatpush.bf16.msra.mxu0 %v1586
    %2580 = vmatmul.bf16.gmra.mxu0 %v2558
    %v2581 = vpop.f32.mrf.mxu0
    %v2582 = vadd.f32 %v1553, %v2581
    %v2583 = vpop.f32.mrf.mxu0
    %2584 = vdwg.mxu0
    %2585 = vmatpush.bf16.msra.mxu0 %v1672
    %2586 = vmatpush.bf16.msra.mxu0 %v1671
    %2587 = vmatpush.bf16.msra.mxu0 %v1670
    %2588 = vmatpush.bf16.msra.mxu0 %v1669
    %2589 = vmatpush.bf16.msra.mxu0 %v1668
    %2590 = vmatpush.bf16.msra.mxu0 %v1667
    %2591 = vmatpush.bf16.msra.mxu0 %v1666
    %2592 = vmatpush.bf16.msra.mxu0 %v1665
    %2593 = vmatmul.bf16.gmra.mxu0 %v2558
    %v2594 = vpop.f32.mrf.mxu0
    %v2595 = vadd.f32 %v1632, %v2594
    %v2596 = vpop.f32.mrf.mxu0
    %2597 = vdwg.mxu0
    %v2598 = vmul.f32 %v2569, %v391
    %v2599 = vpack.c.bf16 %v2598, %v2598
    %v2600 = vpack.c.bf16 %v2582, %v2582
    %2601 = vmatpush.bf16.xpose.msra.mxu0 0
    %2602 = vmatpush.bf16.xpose.msra.mxu0 0
    %2603 = vmatpush.bf16.xpose.msra.mxu0 0
    %2604 = vmatpush.bf16.xpose.msra.mxu0 0
    %2605 = vmatpush.bf16.xpose.msra.mxu0 0
    %2606 = vmatpush.bf16.xpose.msra.mxu0 0
    %2607 = vmatpush.bf16.xpose.msra.mxu0 0
    %2608 = vmatpush.bf16.xpose.msra.mxu0 %v2600
    %2609 = vmatmul.bf16.gmra.mxu0 %v2599
    %v2610 = vpop.f32.mrf.mxu0
    %v2611 = vadd.f32 0.0, %v2610
    %v2612 = vpop.f32.mrf.mxu0
    %2613 = vdwg.mxu0
    %v2614 = vsel %vm1060, %v2611, -inf
    %2615 = vmax.xlane.f32.xlu0 %v2614
    %v2616 = vpop.xlane.xlu0 %2615
    %v2617 = vsub.f32 %v2611, %v2616
    %v2618 = vmul.f32 %v2617, 1.442695
    %v2619 = vpow.pop %v2618
    %v2620 = vsel %vm1060, %v2619, 0.0
    %2621 = vadd.xlane.f32.xlu0 %v2620
    %v2622 = vpop.xlane.xlu0 %2621
    %v2623 = vrcp.pop %v2622
    %v2624 = vmul.f32 %v2619, %v2623
    %v2625 = vpack.c.bf16 %v2624, %v2624
    %v2626 = vpack.c.bf16 %v2595, %v2595
    %v2628 = vsel %vm1060, %v2625, 0
    %v2631 = vsel %vm1077, %v2626, 0
    %2633 = vmatpush.bf16.msra.mxu0 0
    %2634 = vmatpush.bf16.msra.mxu0 0
    %2635 = vmatpush.bf16.msra.mxu0 0
    %2636 = vmatpush.bf16.msra.mxu0 0
    %2637 = vmatpush.bf16.msra.mxu0 0
    %2638 = vmatpush.bf16.msra.mxu0 0
    %2639 = vmatpush.bf16.msra.mxu0 0
    %2640 = vmatpush.bf16.msra.mxu0 %v2631
    %2641 = vmatmul.bf16.gmra.mxu0 %v2628
    %v2642 = vpop.f32.mrf.mxu0
    %v2643 = vadd.f32 0.0, %v2642
    %v2644 = vpop.f32.mrf.mxu0
    %2645 = vdwg.mxu0
    %v2646 = vmul.f32 %v2643, %v438
    %v2647 = vadd.f32 %v2646, 0.0
    %v2648 = vmul.f32 %v2569, %v444
    %v2649 = vpack.c.bf16 %v2648, %v2648
    %2650 = vmatpush.bf16.xpose.msra.mxu0 0
    %2651 = vmatpush.bf16.xpose.msra.mxu0 0
    %2652 = vmatpush.bf16.xpose.msra.mxu0 0
    %2653 = vmatpush.bf16.xpose.msra.mxu0 0
    %2654 = vmatpush.bf16.xpose.msra.mxu0 0
    %2655 = vmatpush.bf16.xpose.msra.mxu0 0
    %2656 = vmatpush.bf16.xpose.msra.mxu0 0
    %2657 = vmatpush.bf16.xpose.msra.mxu0 %v2600
    %2658 = vmatmul.bf16.gmra.mxu0 %v2649
    %v2659 = vpop.f32.mrf.mxu0
    %v2660 = vadd.f32 0.0, %v2659
    %v2661 = vpop.f32.mrf.mxu0
    %2662 = vdwg.mxu0
    %v2663 = vsel %vm1060, %v2660, -inf
    %2664 = vmax.xlane.f32.xlu0 %v2663
    %v2665 = vpop.xlane.xlu0 %2664
    %v2666 = vsub.f32 %v2660, %v2665
    %v2667 = vmul.f32 %v2666, 1.442695
    %v2668 = vpow.pop %v2667
    %v2669 = vsel %vm1060, %v2668, 0.0
    %2670 = vadd.xlane.f32.xlu0 %v2669
    %v2671 = vpop.xlane.xlu0 %2670
    %v2672 = vrcp.pop %v2671
    %v2673 = vmul.f32 %v2668, %v2672
    %v2674 = vpack.c.bf16 %v2673, %v2673
    %v2676 = vsel %vm1060, %v2674, 0
    %2678 = vmatpush.bf16.msra.mxu0 0
    %2679 = vmatpush.bf16.msra.mxu0 0
    %2680 = vmatpush.bf16.msra.mxu0 0
    %2681 = vmatpush.bf16.msra.mxu0 0
    %2682 = vmatpush.bf16.msra.mxu0 0
    %2683 = vmatpush.bf16.msra.mxu0 0
    %2684 = vmatpush.bf16.msra.mxu0 0
    %2685 = vmatpush.bf16.msra.mxu0 %v2631
    %2686 = vmatmul.bf16.gmra.mxu0 %v2676
    %v2687 = vpop.f32.mrf.mxu0
    %v2688 = vadd.f32 0.0, %v2687
    %v2689 = vpop.f32.mrf.mxu0
    %2690 = vdwg.mxu0
    %v2691 = vmul.f32 %v2688, %v488
    %v2692 = vadd.f32 %v2647, %v2691
    %v2693 = vpack.c.bf16 %v2692, %v2692
    %2694 = vmatpush.bf16.msra.mxu0 %v1847
    %2695 = vmatpush.bf16.msra.mxu0 %v1846
    %2696 = vmatpush.bf16.msra.mxu0 %v1845
    %2697 = vmatpush.bf16.msra.mxu0 %v1844
    %2698 = vmatpush.bf16.msra.mxu0 %v1843
    %2699 = vmatpush.bf16.msra.mxu0 %v1842
    %2700 = vmatpush.bf16.msra.mxu0 %v1841
    %2701 = vmatpush.bf16.msra.mxu0 %v1840
    %2702 = vmatmul.bf16.gmra.mxu0 %v2693
    %v2703 = vpop.f32.mrf.mxu0
    %v2704 = vadd.f32 %v1807, %v2703
    %v2705 = vpop.f32.mrf.mxu0
    %2706 = vdwg.mxu0
    %v2707 = vadd.f32 %v2557, %v2704
    %2708 = vadd.xlane.f32.xlu0 %v2707
    %v2709 = vpop.xlane.xlu0 %2708
    %v2710 = vmul.f32 %v2709, 0.03125
    %v2711 = vmul.f32 %v2707, %v2707
    %2712 = vadd.xlane.f32.xlu0 %v2711
    %v2713 = vpop.xlane.xlu0 %2712
    %v2714 = vmul.f32 %v2713, 0.03125
    %v2715 = vmul.f32 %v2710, %v2710
    %v2716 = vsub.f32 %v2714, %v2715
    %v2717 = vsub.f32 %v2707, %v2710
    %v2718 = vadd.f32 %v2716, 1e-05
    %v2719 = vrsqrt.pop %v2718
    %v2720 = vmul.f32 %v2719, %v2718
    %v2721 = vmul.f32 %v2720, %v2719
    %v2722 = vmul.f32 0.5, %v2721
    %v2723 = vsub.f32 1.5, %v2722
    %v2724 = vmul.f32 %v2719, %v2723
    %vm2725 = vweird.f32 %v2718
    %vm2726 = vweird.f32 %v2719
    %vm2727 = vmor %vm2725, %vm2726
    %v2728 = vsel %vm2727, %v2719, %v2724
    %v2729 = vmul.f32 %v2717, %v2728
    %v2730 = vmul.f32 %v2729, %v1892
    %v2731 = vadd.f32 %v2730, %v1894
    %v2732 = vpack.c.bf16 %v2731, %v2731
    %2733 = vmatpush.bf16.msra.mxu0 %v1954
    %2734 = vmatpush.bf16.msra.mxu0 %v1953
    %2735 = vmatpush.bf16.msra.mxu0 %v1952
    %2736 = vmatpush.bf16.msra.mxu0 %v1951
    %2737 = vmatpush.bf16.msra.mxu0 %v1950
    %2738 = vmatpush.bf16.msra.mxu0 %v1949
    %2739 = vmatpush.bf16.msra.mxu0 %v1948
    %2740 = vmatpush.bf16.msra.mxu0 %v1947
    %2741 = vmatmul.bf16.gmra.mxu0 %v2732
    %v2742 = vpop.f32.mrf.mxu0
    %v2743 = vadd.f32 %v1914, %v2742
    %v2744 = vpop.f32.mrf.mxu0
    %2745 = vdwg.mxu0
    %v2746 = vmul.f32 %v2743, 0.5
    %v2747 = vmul.f32 %v2743, 0.044715
    %v2748 = vmul.f32 %v2747, %v2743
    %v2749 = vmul.f32 %v2748, %v2743
    %v2750 = vadd.f32 %v2743, %v2749
    %v2751 = vmul.f32 %v2750, 0.7978846
    %v2752 = vtanh.pop %v2751
    %v2753 = vadd.f32 %v2752, 1.0
    %v2754 = vmul.f32 %v2746, %v2753
    %v2755 = vpack.c.bf16 %v2754, %v2754
    %2756 = vmatpush.bf16.msra.mxu0 %v2043
    %2757 = vmatpush.bf16.msra.mxu0 %v2042
    %2758 = vmatpush.bf16.msra.mxu0 %v2041
    %2759 = vmatpush.bf16.msra.mxu0 %v2040
    %2760 = vmatpush.bf16.msra.mxu0 %v2039
    %2761 = vmatpush.bf16.msra.mxu0 %v2038
    %2762 = vmatpush.bf16.msra.mxu0 %v2037
    %2763 = vmatpush.bf16.msra.mxu0 %v2036
    %2764 = vmatmul.bf16.gmra.mxu0 %v2755
    %v2765 = vpop.f32.mrf.mxu0
    %v2766 = vadd.f32 %v2003, %v2765
    %v2767 = vpop.f32.mrf.mxu0
    %2768 = vdwg.mxu0
    %v2769 = vmul.f32 %v2766, 0.5
    %v2770 = vmul.f32 %v2766, 0.044715
    %v2771 = vmul.f32 %v2770, %v2766
    %v2772 = vmul.f32 %v2771, %v2766
    %v2773 = vadd.f32 %v2766, %v2772
    %v2774 = vmul.f32 %v2773, 0.7978846
    %v2775 = vtanh.pop %v2774
    %v2776 = vadd.f32 %v2775, 1.0
    %v2777 = vmul.f32 %v2769, %v2776
    %v2778 = vadd.f32 %v2731, %v2777
    %s2779 = scalar_lea.vmem %s4, 48
    %v2780 = vld [vmem:[%s2779] sm:$0xff]
    %v2781 = vld [vmem:[%s2779 + $0x8] sm:$0xff]
    %2782 = vadd.xlane.f32.xlu0 %v67
    %v2783 = vpop.xlane.xlu0 %2782
    %v2784 = vmul.f32 %v2783, 0.03125
    %v2785 = vmul.f32 %v67, %v67
    %2786 = vadd.xlane.f32.xlu0 %v2785
    %v2787 = vpop.xlane.xlu0 %2786
    %v2788 = vmul.f32 %v2787, 0.03125
    %v2789 = vmul.f32 %v2784, %v2784
    %v2790 = vsub.f32 %v2788, %v2789
    %v2791 = vsub.f32 %v67, %v2784
    %v2792 = vadd.f32 %v2790, 1e-05
    %v2793 = vrsqrt.pop %v2792
    %v2794 = vmul.f32 %v2793, %v2792
    %v2795 = vmul.f32 %v2794, %v2793
    %v2796 = vmul.f32 0.5, %v2795
    %v2797 = vsub.f32 1.5, %v2796
    %v2798 = vmul.f32 %v2793, %v2797
    %vm2799 = vweird.f32 %v2792
    %vm2800 = vweird.f32 %v2793
    %vm2801 = vmor %vm2799, %vm2800
    %v2802 = vsel %vm2801, %v2793, %v2798
    %v2803 = vmul.f32 %v2791, %v2802
    %v2804 = vperm.slane %v2780, 0
    %v2805 = vmul.f32 %v2803, %v2804
    %v2806 = vperm.slane %v2780, 1
    %v2807 = vadd.f32 %v2805, %v2806
    %2808 = vadd.xlane.f32.xlu0 %v2778
    %v2809 = vpop.xlane.xlu0 %2808
    %v2810 = vmul.f32 %v2809, 0.03125
    %v2811 = vmul.f32 %v2778, %v2778
    %2812 = vadd.xlane.f32.xlu0 %v2811
    %v2813 = vpop.xlane.xlu0 %2812
    %v2814 = vmul.f32 %v2813, 0.03125
    %v2815 = vmul.f32 %v2810, %v2810
    %v2816 = vsub.f32 %v2814, %v2815
    %v2817 = vsub.f32 %v2778, %v2810
    %v2818 = vadd.f32 %v2816, 1e-05
    %v2819 = vrsqrt.pop %v2818
    %v2820 = vmul.f32 %v2819, %v2818
    %v2821 = vmul.f32 %v2820, %v2819
    %v2822 = vmul.f32 0.5, %v2821
    %v2823 = vsub.f32 1.5, %v2822
    %v2824 = vmul.f32 %v2819, %v2823
    %vm2825 = vweird.f32 %v2818
    %vm2826 = vweird.f32 %v2819
    %vm2827 = vmor %vm2825, %vm2826
    %v2828 = vsel %vm2827, %v2819, %v2824
    %v2829 = vmul.f32 %v2817, %v2828
    %v2830 = vperm.slane %v2780, 2
    %v2831 = vmul.f32 %v2829, %v2830
    %v2832 = vperm.slane %v2780, 3
    %v2833 = vadd.f32 %v2831, %v2832
    %s2834 = scalar_lea.vmem [#allocation6], 1152
    %v2835 = vld [vmem:[%s2834] sm:$0xf]
    %v2836 = vld [vmem:[%s2834 + $0x4] sm:$0xf]
    %v2837 = vld [vmem:[%s2834 + $0x8] sm:$0xf]
    %v2838 = vld [vmem:[%s2834 + $0xc] sm:$0xf]
    %v2839 = vld [vmem:[%s2834 + $0x10] sm:$0xf]
    %v2840 = vld [vmem:[%s2834 + $0x14] sm:$0xf]
    %v2841 = vld [vmem:[%s2834 + $0x18] sm:$0xf]
    %v2842 = vld [vmem:[%s2834 + $0x1c] sm:$0xf]
    %v2843 = vld [vmem:[%s2834 + $0x20] sm:$0xf]
    %v2844 = vld [vmem:[%s2834 + $0x24] sm:$0xf]
    %v2845 = vld [vmem:[%s2834 + $0x28] sm:$0xf]
    %v2846 = vld [vmem:[%s2834 + $0x2c] sm:$0xf]
    %v2847 = vld [vmem:[%s2834 + $0x30] sm:$0xf]
    %v2848 = vld [vmem:[%s2834 + $0x34] sm:$0xf]
    %v2849 = vld [vmem:[%s2834 + $0x38] sm:$0xf]
    %v2850 = vld [vmem:[%s2834 + $0x3c] sm:$0xf]
    %v2851 = vpack.c.bf16 %v2807, %v2807
    %v2852 = vperm.slane %v2780, 6
    %v2869 = vunpack.c.l.b16 %v2835
    %v2870 = vunpack.c.l.b16 %v2836
    %v2871 = vunpack.c.l.b16 %v2837
    %v2872 = vunpack.c.l.b16 %v2838
    %v2873 = vunpack.c.l.b16 %v2839
    %v2874 = vunpack.c.l.b16 %v2840
    %v2875 = vunpack.c.l.b16 %v2841
    %v2876 = vunpack.c.l.b16 %v2842
    %v2877 = vunpack.c.l.b16 %v2843
    %v2878 = vunpack.c.l.b16 %v2844
    %v2879 = vunpack.c.l.b16 %v2845
    %v2880 = vunpack.c.l.b16 %v2846
    %v2881 = vunpack.c.l.b16 %v2847
    %v2882 = vunpack.c.l.b16 %v2848
    %v2883 = vunpack.c.l.b16 %v2849
    %v2884 = vunpack.c.l.b16 %v2850
    %v2885 = vpack.c.b16 %v2870, %v2869
    %v2886 = vpack.c.b16 %v2872, %v2871
    %v2887 = vpack.c.b16 %v2874, %v2873
    %v2888 = vpack.c.b16 %v2876, %v2875
    %v2889 = vpack.c.b16 %v2878, %v2877
    %v2890 = vpack.c.b16 %v2880, %v2879
    %v2891 = vpack.c.b16 %v2882, %v2881
    %v2892 = vpack.c.b16 %v2884, %v2883
    %2901 = vmatpush.bf16.msra.mxu0 %v2892
    %2902 = vmatpush.bf16.msra.mxu0 %v2891
    %2903 = vmatpush.bf16.msra.mxu0 %v2890
    %2904 = vmatpush.bf16.msra.mxu0 %v2889
    %2905 = vmatpush.bf16.msra.mxu0 %v2888
    %2906 = vmatpush.bf16.msra.mxu0 %v2887
    %2907 = vmatpush.bf16.msra.mxu0 %v2886
    %2908 = vmatpush.bf16.msra.mxu0 %v2885
    %2909 = vmatmul.bf16.gmra.mxu0 %v2851
    %v2910 = vpop.f32.mrf.mxu0
    %v2911 = vadd.f32 %v2852, %v2910
    %v2912 = vpop.f32.mrf.mxu0
    %2913 = vdwg.mxu0
    %s2914 = scalar_lea.vmem [#allocation6], 1216
    %v2915 = vld [vmem:[%s2914] sm:$0xf]
    %v2916 = vld [vmem:[%s2914 + $0x4] sm:$0xf]
    %v2917 = vld [vmem:[%s2914 + $0x8] sm:$0xf]
    %v2918 = vld [vmem:[%s2914 + $0xc] sm:$0xf]
    %v2919 = vld [vmem:[%s2914 + $0x10] sm:$0xf]
    %v2920 = vld [vmem:[%s2914 + $0x14] sm:$0xf]
    %v2921 = vld [vmem:[%s2914 + $0x18] sm:$0xf]
    %v2922 = vld [vmem:[%s2914 + $0x1c] sm:$0xf]
    %v2923 = vld [vmem:[%s2914 + $0x20] sm:$0xf]
    %v2924 = vld [vmem:[%s2914 + $0x24] sm:$0xf]
    %v2925 = vld [vmem:[%s2914 + $0x28] sm:$0xf]
    %v2926 = vld [vmem:[%s2914 + $0x2c] sm:$0xf]
    %v2927 = vld [vmem:[%s2914 + $0x30] sm:$0xf]
    %v2928 = vld [vmem:[%s2914 + $0x34] sm:$0xf]
    %v2929 = vld [vmem:[%s2914 + $0x38] sm:$0xf]
    %v2930 = vld [vmem:[%s2914 + $0x3c] sm:$0xf]
    %v2931 = vpack.c.bf16 %v2833, %v2833
    %v2932 = vperm.slane %v2780, 7
    %v2949 = vunpack.c.l.b16 %v2915
    %v2950 = vunpack.c.l.b16 %v2916
    %v2951 = vunpack.c.l.b16 %v2917
    %v2952 = vunpack.c.l.b16 %v2918
    %v2953 = vunpack.c.l.b16 %v2919
    %v2954 = vunpack.c.l.b16 %v2920
    %v2955 = vunpack.c.l.b16 %v2921
    %v2956 = vunpack.c.l.b16 %v2922
    %v2957 = vunpack.c.l.b16 %v2923
    %v2958 = vunpack.c.l.b16 %v2924
    %v2959 = vunpack.c.l.b16 %v2925
    %v2960 = vunpack.c.l.b16 %v2926
    %v2961 = vunpack.c.l.b16 %v2927
    %v2962 = vunpack.c.l.b16 %v2928
    %v2963 = vunpack.c.l.b16 %v2929
    %v2964 = vunpack.c.l.b16 %v2930
    %v2965 = vpack.c.b16 %v2950, %v2949
    %v2966 = vpack.c.b16 %v2952, %v2951
    %v2967 = vpack.c.b16 %v2954, %v2953
    %v2968 = vpack.c.b16 %v2956, %v2955
    %v2969 = vpack.c.b16 %v2958, %v2957
    %v2970 = vpack.c.b16 %v2960, %v2959
    %v2971 = vpack.c.b16 %v2962, %v2961
    %v2972 = vpack.c.b16 %v2964, %v2963
    %2981 = vmatpush.bf16.msra.mxu0 %v2972
    %2982 = vmatpush.bf16.msra.mxu0 %v2971
    %2983 = vmatpush.bf16.msra.mxu0 %v2970
    %2984 = vmatpush.bf16.msra.mxu0 %v2969
    %2985 = vmatpush.bf16.msra.mxu0 %v2968
    %2986 = vmatpush.bf16.msra.mxu0 %v2967
    %2987 = vmatpush.bf16.msra.mxu0 %v2966
    %2988 = vmatpush.bf16.msra.mxu0 %v2965
    %2989 = vmatmul.bf16.gmra.mxu0 %v2931
    %v2990 = vpop.f32.mrf.mxu0
    %v2991 = vadd.f32 %v2932, %v2990
    %v2992 = vpop.f32.mrf.mxu0
    %2993 = vdwg.mxu0
    %s2994 = scalar_lea.vmem [#allocation6], 1280
    %v2995 = vld [vmem:[%s2994] sm:$0xf]
    %v2996 = vld [vmem:[%s2994 + $0x4] sm:$0xf]
    %v2997 = vld [vmem:[%s2994 + $0x8] sm:$0xf]
    %v2998 = vld [vmem:[%s2994 + $0xc] sm:$0xf]
    %v2999 = vld [vmem:[%s2994 + $0x10] sm:$0xf]
    %v3000 = vld [vmem:[%s2994 + $0x14] sm:$0xf]
    %v3001 = vld [vmem:[%s2994 + $0x18] sm:$0xf]
    %v3002 = vld [vmem:[%s2994 + $0x1c] sm:$0xf]
    %v3003 = vld [vmem:[%s2994 + $0x20] sm:$0xf]
    %v3004 = vld [vmem:[%s2994 + $0x24] sm:$0xf]
    %v3005 = vld [vmem:[%s2994 + $0x28] sm:$0xf]
    %v3006 = vld [vmem:[%s2994 + $0x2c] sm:$0xf]
    %v3007 = vld [vmem:[%s2994 + $0x30] sm:$0xf]
    %v3008 = vld [vmem:[%s2994 + $0x34] sm:$0xf]
    %v3009 = vld [vmem:[%s2994 + $0x38] sm:$0xf]
    %v3010 = vld [vmem:[%s2994 + $0x3c] sm:$0xf]
    %v3011 = vperm.slane %v2781, 0
    %v3028 = vunpack.c.l.b16 %v2995
    %v3029 = vunpack.c.l.b16 %v2996
    %v3030 = vunpack.c.l.b16 %v2997
    %v3031 = vunpack.c.l.b16 %v2998
    %v3032 = vunpack.c.l.b16 %v2999
    %v3033 = vunpack.c.l.b16 %v3000
    %v3034 = vunpack.c.l.b16 %v3001
    %v3035 = vunpack.c.l.b16 %v3002
    %v3036 = vunpack.c.l.b16 %v3003
    %v3037 = vunpack.c.l.b16 %v3004
    %v3038 = vunpack.c.l.b16 %v3005
    %v3039 = vunpack.c.l.b16 %v3006
    %v3040 = vunpack.c.l.b16 %v3007
    %v3041 = vunpack.c.l.b16 %v3008
    %v3042 = vunpack.c.l.b16 %v3009
    %v3043 = vunpack.c.l.b16 %v3010
    %v3044 = vpack.c.b16 %v3029, %v3028
    %v3045 = vpack.c.b16 %v3031, %v3030
    %v3046 = vpack.c.b16 %v3033, %v3032
    %v3047 = vpack.c.b16 %v3035, %v3034
    %v3048 = vpack.c.b16 %v3037, %v3036
    %v3049 = vpack.c.b16 %v3039, %v3038
    %v3050 = vpack.c.b16 %v3041, %v3040
    %v3051 = vpack.c.b16 %v3043, %v3042
    %3060 = vmatpush.bf16.msra.mxu0 %v3051
    %3061 = vmatpush.bf16.msra.mxu0 %v3050
    %3062 = vmatpush.bf16.msra.mxu0 %v3049
    %3063 = vmatpush.bf16.msra.mxu0 %v3048
    %3064 = vmatpush.bf16.msra.mxu0 %v3047
    %3065 = vmatpush.bf16.msra.mxu0 %v3046
    %3066 = vmatpush.bf16.msra.mxu0 %v3045
    %3067 = vmatpush.bf16.msra.mxu0 %v3044
    %3068 = vmatmul.bf16.gmra.mxu0 %v2931
    %v3069 = vpop.f32.mrf.mxu0
    %v3070 = vadd.f32 %v3011, %v3069
    %v3071 = vpop.f32.mrf.mxu0
    %3072 = vdwg.mxu0
    %v3073 = vmul.f32 %v2911, %v391
    %v3074 = vpack.c.bf16 %v3073, %v3073
    %v3075 = vpack.c.bf16 %v2991, %v2991
    %3076 = vmatpush.bf16.xpose.msra.mxu0 0
    %3077 = vmatpush.bf16.xpose.msra.mxu0 0
    %3078 = vmatpush.bf16.xpose.msra.mxu0 0
    %3079 = vmatpush.bf16.xpose.msra.mxu0 0
    %3080 = vmatpush.bf16.xpose.msra.mxu0 0
    %3081 = vmatpush.bf16.xpose.msra.mxu0 0
    %3082 = vmatpush.bf16.xpose.msra.mxu0 0
    %3083 = vmatpush.bf16.xpose.msra.mxu0 %v3075
    %3084 = vmatmul.bf16.gmra.mxu0 %v3074
    %v3085 = vpop.f32.mrf.mxu0
    %v3086 = vadd.f32 0.0, %v3085
    %v3087 = vpop.f32.mrf.mxu0
    %3088 = vdwg.mxu0
    %v3089 = vsel %vm1060, %v3086, -inf
    %3090 = vmax.xlane.f32.xlu0 %v3089
    %v3091 = vpop.xlane.xlu0 %3090
    %v3092 = vsub.f32 %v3086, %v3091
    %v3093 = vmul.f32 %v3092, 1.442695
    %v3094 = vpow.pop %v3093
    %v3095 = vsel %vm1060, %v3094, 0.0
    %3096 = vadd.xlane.f32.xlu0 %v3095
    %v3097 = vpop.xlane.xlu0 %3096
    %v3098 = vrcp.pop %v3097
    %v3099 = vmul.f32 %v3094, %v3098
    %v3100 = vpack.c.bf16 %v3099, %v3099
    %v3101 = vpack.c.bf16 %v3070, %v3070
    %v3103 = vsel %vm1060, %v3100, 0
    %v3106 = vsel %vm1077, %v3101, 0
    %3108 = vmatpush.bf16.msra.mxu0 0
    %3109 = vmatpush.bf16.msra.mxu0 0
    %3110 = vmatpush.bf16.msra.mxu0 0
    %3111 = vmatpush.bf16.msra.mxu0 0
    %3112 = vmatpush.bf16.msra.mxu0 0
    %3113 = vmatpush.bf16.msra.mxu0 0
    %3114 = vmatpush.bf16.msra.mxu0 0
    %3115 = vmatpush.bf16.msra.mxu0 %v3106
    %3116 = vmatmul.bf16.gmra.mxu0 %v3103
    %v3117 = vpop.f32.mrf.mxu0
    %v3118 = vadd.f32 0.0, %v3117
    %v3119 = vpop.f32.mrf.mxu0
    %3120 = vdwg.mxu0
    %v3121 = vmul.f32 %v3118, %v438
    %v3122 = vadd.f32 %v3121, 0.0
    %v3123 = vmul.f32 %v2911, %v444
    %v3124 = vpack.c.bf16 %v3123, %v3123
    %3125 = vmatpush.bf16.xpose.msra.mxu0 0
    %3126 = vmatpush.bf16.xpose.msra.mxu0 0
    %3127 = vmatpush.bf16.xpose.msra.mxu0 0
    %3128 = vmatpush.bf16.xpose.msra.mxu0 0
    %3129 = vmatpush.bf16.xpose.msra.mxu0 0
    %3130 = vmatpush.bf16.xpose.msra.mxu0 0
    %3131 = vmatpush.bf16.xpose.msra.mxu0 0
    %3132 = vmatpush.bf16.xpose.msra.mxu0 %v3075
    %3133 = vmatmul.bf16.gmra.mxu0 %v3124
    %v3134 = vpop.f32.mrf.mxu0
    %v3135 = vadd.f32 0.0, %v3134
    %v3136 = vpop.f32.mrf.mxu0
    %3137 = vdwg.mxu0
    %v3138 = vsel %vm1060, %v3135, -inf
    %3139 = vmax.xlane.f32.xlu0 %v3138
    %v3140 = vpop.xlane.xlu0 %3139
    %v3141 = vsub.f32 %v3135, %v3140
    %v3142 = vmul.f32 %v3141, 1.442695
    %v3143 = vpow.pop %v3142
    %v3144 = vsel %vm1060, %v3143, 0.0
    %3145 = vadd.xlane.f32.xlu0 %v3144
    %v3146 = vpop.xlane.xlu0 %3145
    %v3147 = vrcp.pop %v3146
    %v3148 = vmul.f32 %v3143, %v3147
    %v3149 = vpack.c.bf16 %v3148, %v3148
    %v3151 = vsel %vm1060, %v3149, 0
    %3153 = vmatpush.bf16.msra.mxu0 0
    %3154 = vmatpush.bf16.msra.mxu0 0
    %3155 = vmatpush.bf16.msra.mxu0 0
    %3156 = vmatpush.bf16.msra.mxu0 0
    %3157 = vmatpush.bf16.msra.mxu0 0
    %3158 = vmatpush.bf16.msra.mxu0 0
    %3159 = vmatpush.bf16.msra.mxu0 0
    %3160 = vmatpush.bf16.msra.mxu0 %v3106
    %3161 = vmatmul.bf16.gmra.mxu0 %v3151
    %v3162 = vpop.f32.mrf.mxu0
    %v3163 = vadd.f32 0.0, %v3162
    %v3164 = vpop.f32.mrf.mxu0
    %3165 = vdwg.mxu0
    %v3166 = vmul.f32 %v3163, %v488
    %v3167 = vadd.f32 %v3122, %v3166
    %s3168 = scalar_lea.vmem [#allocation6], 1344
    %v3169 = vld [vmem:[%s3168] sm:$0xf]
    %v3170 = vld [vmem:[%s3168 + $0x4] sm:$0xf]
    %v3171 = vld [vmem:[%s3168 + $0x8] sm:$0xf]
    %v3172 = vld [vmem:[%s3168 + $0xc] sm:$0xf]
    %v3173 = vld [vmem:[%s3168 + $0x10] sm:$0xf]
    %v3174 = vld [vmem:[%s3168 + $0x14] sm:$0xf]
    %v3175 = vld [vmem:[%s3168 + $0x18] sm:$0xf]
    %v3176 = vld [vmem:[%s3168 + $0x1c] sm:$0xf]
    %v3177 = vld [vmem:[%s3168 + $0x20] sm:$0xf]
    %v3178 = vld [vmem:[%s3168 + $0x24] sm:$0xf]
    %v3179 = vld [vmem:[%s3168 + $0x28] sm:$0xf]
    %v3180 = vld [vmem:[%s3168 + $0x2c] sm:$0xf]
    %v3181 = vld [vmem:[%s3168 + $0x30] sm:$0xf]
    %v3182 = vld [vmem:[%s3168 + $0x34] sm:$0xf]
    %v3183 = vld [vmem:[%s3168 + $0x38] sm:$0xf]
    %v3184 = vld [vmem:[%s3168 + $0x3c] sm:$0xf]
    %v3185 = vpack.c.bf16 %v3167, %v3167
    %v3186 = vperm.slane %v2781, 1
    %v3203 = vunpack.c.l.b16 %v3169
    %v3204 = vunpack.c.l.b16 %v3170
    %v3205 = vunpack.c.l.b16 %v3171
    %v3206 = vunpack.c.l.b16 %v3172
    %v3207 = vunpack.c.l.b16 %v3173
    %v3208 = vunpack.c.l.b16 %v3174
    %v3209 = vunpack.c.l.b16 %v3175
    %v3210 = vunpack.c.l.b16 %v3176
    %v3211 = vunpack.c.l.b16 %v3177
    %v3212 = vunpack.c.l.b16 %v3178
    %v3213 = vunpack.c.l.b16 %v3179
    %v3214 = vunpack.c.l.b16 %v3180
    %v3215 = vunpack.c.l.b16 %v3181
    %v3216 = vunpack.c.l.b16 %v3182
    %v3217 = vunpack.c.l.b16 %v3183
    %v3218 = vunpack.c.l.b16 %v3184
    %v3219 = vpack.c.b16 %v3204, %v3203
    %v3220 = vpack.c.b16 %v3206, %v3205
    %v3221 = vpack.c.b16 %v3208, %v3207
    %v3222 = vpack.c.b16 %v3210, %v3209
    %v3223 = vpack.c.b16 %v3212, %v3211
    %v3224 = vpack.c.b16 %v3214, %v3213
    %v3225 = vpack.c.b16 %v3216, %v3215
    %v3226 = vpack.c.b16 %v3218, %v3217
    %3235 = vmatpush.bf16.msra.mxu0 %v3226
    %3236 = vmatpush.bf16.msra.mxu0 %v3225
    %3237 = vmatpush.bf16.msra.mxu0 %v3224
    %3238 = vmatpush.bf16.msra.mxu0 %v3223
    %3239 = vmatpush.bf16.msra.mxu0 %v3222
    %3240 = vmatpush.bf16.msra.mxu0 %v3221
    %3241 = vmatpush.bf16.msra.mxu0 %v3220
    %3242 = vmatpush.bf16.msra.mxu0 %v3219
    %3243 = vmatmul.bf16.gmra.mxu0 %v3185
    %v3244 = vpop.f32.mrf.mxu0
    %v3245 = vadd.f32 %v3186, %v3244
    %v3246 = vpop.f32.mrf.mxu0
    %3247 = vdwg.mxu0
    %v3248 = vadd.f32 %v2807, %v3245
    %3249 = vadd.xlane.f32.xlu0 %v3248
    %v3250 = vpop.xlane.xlu0 %3249
    %v3251 = vmul.f32 %v3250, 0.03125
    %v3252 = vmul.f32 %v3248, %v3248
    %3253 = vadd.xlane.f32.xlu0 %v3252
    %v3254 = vpop.xlane.xlu0 %3253
    %v3255 = vmul.f32 %v3254, 0.03125
    %v3256 = vmul.f32 %v3251, %v3251
    %v3257 = vsub.f32 %v3255, %v3256
    %v3258 = vsub.f32 %v3248, %v3251
    %v3259 = vadd.f32 %v3257, 1e-05
    %v3260 = vrsqrt.pop %v3259
    %v3261 = vmul.f32 %v3260, %v3259
    %v3262 = vmul.f32 %v3261, %v3260
    %v3263 = vmul.f32 0.5, %v3262
    %v3264 = vsub.f32 1.5, %v3263
    %v3265 = vmul.f32 %v3260, %v3264
    %vm3266 = vweird.f32 %v3259
    %vm3267 = vweird.f32 %v3260
    %vm3268 = vmor %vm3266, %vm3267
    %v3269 = vsel %vm3268, %v3260, %v3265
    %v3270 = vmul.f32 %v3258, %v3269
    %v3271 = vperm.slane %v2780, 4
    %v3272 = vmul.f32 %v3270, %v3271
    %v3273 = vperm.slane %v2780, 5
    %v3274 = vadd.f32 %v3272, %v3273
    %s3275 = scalar_lea.vmem [#allocation6], 1408
    %v3276 = vld [vmem:[%s3275] sm:$0xf]
    %v3277 = vld [vmem:[%s3275 + $0x4] sm:$0xf]
    %v3278 = vld [vmem:[%s3275 + $0x8] sm:$0xf]
    %v3279 = vld [vmem:[%s3275 + $0xc] sm:$0xf]
    %v3280 = vld [vmem:[%s3275 + $0x10] sm:$0xf]
    %v3281 = vld [vmem:[%s3275 + $0x14] sm:$0xf]
    %v3282 = vld [vmem:[%s3275 + $0x18] sm:$0xf]
    %v3283 = vld [vmem:[%s3275 + $0x1c] sm:$0xf]
    %v3284 = vld [vmem:[%s3275 + $0x20] sm:$0xf]
    %v3285 = vld [vmem:[%s3275 + $0x24] sm:$0xf]
    %v3286 = vld [vmem:[%s3275 + $0x28] sm:$0xf]
    %v3287 = vld [vmem:[%s3275 + $0x2c] sm:$0xf]
    %v3288 = vld [vmem:[%s3275 + $0x30] sm:$0xf]
    %v3289 = vld [vmem:[%s3275 + $0x34] sm:$0xf]
    %v3290 = vld [vmem:[%s3275 + $0x38] sm:$0xf]
    %v3291 = vld [vmem:[%s3275 + $0x3c] sm:$0xf]
    %v3292 = vpack.c.bf16 %v3274, %v3274
    %v3293 = vperm.slane %v2781, 2
    %v3310 = vunpack.c.l.b16 %v3276
    %v3311 = vunpack.c.l.b16 %v3277
    %v3312 = vunpack.c.l.b16 %v3278
    %v3313 = vunpack.c.l.b16 %v3279
    %v3314 = vunpack.c.l.b16 %v3280
    %v3315 = vunpack.c.l.b16 %v3281
    %v3316 = vunpack.c.l.b16 %v3282
    %v3317 = vunpack.c.l.b16 %v3283
    %v3318 = vunpack.c.l.b16 %v3284
    %v3319 = vunpack.c.l.b16 %v3285
    %v3320 = vunpack.c.l.b16 %v3286
    %v3321 = vunpack.c.l.b16 %v3287
    %v3322 = vunpack.c.l.b16 %v3288
    %v3323 = vunpack.c.l.b16 %v3289
    %v3324 = vunpack.c.l.b16 %v3290
    %v3325 = vunpack.c.l.b16 %v3291
    %v3326 = vpack.c.b16 %v3311, %v3310
    %v3327 = vpack.c.b16 %v3313, %v3312
    %v3328 = vpack.c.b16 %v3315, %v3314
    %v3329 = vpack.c.b16 %v3317, %v3316
    %v3330 = vpack.c.b16 %v3319, %v3318
    %v3331 = vpack.c.b16 %v3321, %v3320
    %v3332 = vpack.c.b16 %v3323, %v3322
    %v3333 = vpack.c.b16 %v3325, %v3324
    %3342 = vmatpush.bf16.msra.mxu0 %v3333
    %3343 = vmatpush.bf16.msra.mxu0 %v3332
    %3344 = vmatpush.bf16.msra.mxu0 %v3331
    %3345 = vmatpush.bf16.msra.mxu0 %v3330
    %3346 = vmatpush.bf16.msra.mxu0 %v3329
    %3347 = vmatpush.bf16.msra.mxu0 %v3328
    %3348 = vmatpush.bf16.msra.mxu0 %v3327
    %3349 = vmatpush.bf16.msra.mxu0 %v3326
    %3350 = vmatmul.bf16.gmra.mxu0 %v3292
    %v3351 = vpop.f32.mrf.mxu0
    %v3352 = vadd.f32 %v3293, %v3351
    %v3353 = vpop.f32.mrf.mxu0
    %3354 = vdwg.mxu0
    %v3355 = vmul.f32 %v3352, 0.5
    %v3356 = vmul.f32 %v3352, 0.044715
    %v3357 = vmul.f32 %v3356, %v3352
    %v3358 = vmul.f32 %v3357, %v3352
    %v3359 = vadd.f32 %v3352, %v3358
    %v3360 = vmul.f32 %v3359, 0.7978846
    %v3361 = vtanh.pop %v3360
    %v3362 = vadd.f32 %v3361, 1.0
    %v3363 = vmul.f32 %v3355, %v3362
    %s3364 = scalar_lea.vmem [#allocation6], 1472
    %v3365 = vld [vmem:[%s3364] sm:$0xf]
    %v3366 = vld [vmem:[%s3364 + $0x4] sm:$0xf]
    %v3367 = vld [vmem:[%s3364 + $0x8] sm:$0xf]
    %v3368 = vld [vmem:[%s3364 + $0xc] sm:$0xf]
    %v3369 = vld [vmem:[%s3364 + $0x10] sm:$0xf]
    %v3370 = vld [vmem:[%s3364 + $0x14] sm:$0xf]
    %v3371 = vld [vmem:[%s3364 + $0x18] sm:$0xf]
    %v3372 = vld [vmem:[%s3364 + $0x1c] sm:$0xf]
    %v3373 = vld [vmem:[%s3364 + $0x20] sm:$0xf]
    %v3374 = vld [vmem:[%s3364 + $0x24] sm:$0xf]
    %v3375 = vld [vmem:[%s3364 + $0x28] sm:$0xf]
    %v3376 = vld [vmem:[%s3364 + $0x2c] sm:$0xf]
    %v3377 = vld [vmem:[%s3364 + $0x30] sm:$0xf]
    %v3378 = vld [vmem:[%s3364 + $0x34] sm:$0xf]
    %v3379 = vld [vmem:[%s3364 + $0x38] sm:$0xf]
    %v3380 = vld [vmem:[%s3364 + $0x3c] sm:$0xf]
    %v3381 = vpack.c.bf16 %v3363, %v3363
    %v3382 = vperm.slane %v2781, 3
    %v3399 = vunpack.c.l.b16 %v3365
    %v3400 = vunpack.c.l.b16 %v3366
    %v3401 = vunpack.c.l.b16 %v3367
    %v3402 = vunpack.c.l.b16 %v3368
    %v3403 = vunpack.c.l.b16 %v3369
    %v3404 = vunpack.c.l.b16 %v3370
    %v3405 = vunpack.c.l.b16 %v3371
    %v3406 = vunpack.c.l.b16 %v3372
    %v3407 = vunpack.c.l.b16 %v3373
    %v3408 = vunpack.c.l.b16 %v3374
    %v3409 = vunpack.c.l.b16 %v3375
    %v3410 = vunpack.c.l.b16 %v3376
    %v3411 = vunpack.c.l.b16 %v3377
    %v3412 = vunpack.c.l.b16 %v3378
    %v3413 = vunpack.c.l.b16 %v3379
    %v3414 = vunpack.c.l.b16 %v3380
    %v3415 = vpack.c.b16 %v3400, %v3399
    %v3416 = vpack.c.b16 %v3402, %v3401
    %v3417 = vpack.c.b16 %v3404, %v3403
    %v3418 = vpack.c.b16 %v3406, %v3405
    %v3419 = vpack.c.b16 %v3408, %v3407
    %v3420 = vpack.c.b16 %v3410, %v3409
    %v3421 = vpack.c.b16 %v3412, %v3411
    %v3422 = vpack.c.b16 %v3414, %v3413
    %3431 = vmatpush.bf16.msra.mxu0 %v3422
    %3432 = vmatpush.bf16.msra.mxu0 %v3421
    %3433 = vmatpush.bf16.msra.mxu0 %v3420
    %3434 = vmatpush.bf16.msra.mxu0 %v3419
    %3435 = vmatpush.bf16.msra.mxu0 %v3418
    %3436 = vmatpush.bf16.msra.mxu0 %v3417
    %3437 = vmatpush.bf16.msra.mxu0 %v3416
    %3438 = vmatpush.bf16.msra.mxu0 %v3415
    %3439 = vmatmul.bf16.gmra.mxu0 %v3381
    %v3440 = vpop.f32.mrf.mxu0
    %v3441 = vadd.f32 %v3382, %v3440
    %v3442 = vpop.f32.mrf.mxu0
    %3443 = vdwg.mxu0
    %v3444 = vmul.f32 %v3441, 0.5
    %v3445 = vmul.f32 %v3441, 0.044715
    %v3446 = vmul.f32 %v3445, %v3441
    %v3447 = vmul.f32 %v3446, %v3441
    %v3448 = vadd.f32 %v3441, %v3447
    %v3449 = vmul.f32 %v3448, 0.7978846
    %v3450 = vtanh.pop %v3449
    %v3451 = vadd.f32 %v3450, 1.0
    %v3452 = vmul.f32 %v3444, %v3451
    %v3453 = vadd.f32 %v3274, %v3452
    %3454 = vst [vmem:[%s5] sm:$0xff] %v3453
    // Predicated region
    $region34: #{perceiver_forward.1} parent=1 // pred_check
      _
    $region35: #{perceiver_forward.1} parent=1 // pred_check_branch
      %3456 = sbr.rel (0) target = $region37
    $region36: #{perceiver_forward.1} parent=1 // pred_region
      _
    $region37: #{perceiver_forward.1} parent=1 // pred_fallthru
      _
    // Predicated region
    $region38: #{perceiver_forward.1} parent=1 // pred_check
      _
    $region39: #{perceiver_forward.1} parent=1 // pred_check_branch
      %3458 = sbr.rel (0) target = $region41
    $region40: #{perceiver_forward.1} parent=1 // pred_region
      _
    $region41: #{perceiver_forward.1} parent=1 // pred_fallthru
      _
    %3459 = vsyncpa [#allocation3], 1
    %3460 = vsyncpa [#allocation5], 1

</llo_original>
